<compile_context>
chip_gen: v6e
topology: v6e:2x2x1
jax: 0.10.0
libtpu: 0.0.40
codegen_flags: <defaults>
</compile_context>

<pallas_src>
import functools

import jax
import jax.numpy as jnp
from jax import lax
from jax.experimental import pallas as pl
from jax.experimental.pallas import tpu as pltpu


def _standgatx_kernel(*refs, layer_meta, negative_slope):
    # refs = (x_ref, mask_ref, [w_ext, bias] * n_layers, out_ref)
    #   x_ref:    [N, F0]          input node features (f32)
    #   mask_ref: [N, N]  int8     mask[i, j] = 1 iff edge j -> i (diag forced 1)
    #   w_ext:    [F_in, H*C+2H]   bf16: [proj | target-coeff cols | source-coeff cols]
    #   bias:     [1, H*C]         f32 concat bias
    #   out_ref:  [N, H_last*C_last]
    x_ref, mask_ref = refs[0], refs[1]
    out_ref = refs[-1]
    param_refs = refs[2:-1]

    # Additive mask, computed once and reused by all layers/heads:
    #   0 where edge j->i exists (incl. self-loops), -1e30 otherwise.
    neg_bias = (mask_ref[...].astype(jnp.float32) - 1.0) * 1e30        # [N, N]

    h = x_ref[...]                                                      # [N, F0] f32
    for li, (H, C, apply_relu) in enumerate(layer_meta):
        w_ext_ref, bias_ref = param_refs[2 * li], param_refs[2 * li + 1]
        HC = H * C

        # Single fused projection: features + both attention coefficients.
        proj = jnp.dot(h.astype(jnp.bfloat16), w_ext_ref[...],
                       preferred_element_type=jnp.float32)              # [N, HC+2H]
        xp = proj[:, :HC]                                               # [N, HC]

        # Target-node (row i) coefficients, one column per head -> [H, N, 1].
        ar_col = jnp.stack(
            [proj[:, HC + hh:HC + hh + 1] for hh in range(H)], axis=0)  # [H, N, 1]
        # Source-node (col j) coefficients -> [H, 1, N] (one small XLU transpose).
        al_row = proj[:, HC + H:HC + 2 * H].T[:, None, :]               # [H, 1, N]

        # Batched-over-heads attention logits + masked softmax (f32 throughout).
        logits = ar_col + al_row                                        # [H, N, N]
        logits = jnp.maximum(logits, negative_slope * logits)           # leaky ReLU
        masked = logits + neg_bias[None]                                # [H, N, N]
        m = jnp.max(masked, axis=-1, keepdims=True)                     # [H, N, 1]
        # Masked entries: exp(~-1e30 - m) underflows to exactly 0 (the diagonal
        # self-loop guarantees a finite row max), so no second select is needed.
        p = jnp.exp(masked - m)                                         # [H, N, N]
        denom = jnp.sum(p, axis=-1, keepdims=True)                      # [H, N, 1] f32

        # Batched aggregation: agg[h,i,c] = sum_j p[h,i,j] * xp[j, h*C+c].
        xp_h = jnp.stack(
            [xp[:, hh * C:(hh + 1) * C] for hh in range(H)], axis=0)    # [H, N, C]
        agg = lax.dot_general(p.astype(jnp.bfloat16), xp_h.astype(jnp.bfloat16),
                              (((2,), (1,)), ((0,), (0,))),
                              preferred_element_type=jnp.float32)       # [H, N, C]

        # Normalize after aggregation with a (nearly free) EUP reciprocal.
        scaled = agg * pl.reciprocal(denom, approx=True)                # [H, N, C]

        out = scaled[0] if H == 1 else jnp.concatenate(
            [scaled[hh] for hh in range(H)], axis=-1)                   # [N, HC]
        out = out + bias_ref[...]
        if apply_relu:
            out = jnp.maximum(out, 0.0)
        h = out

    out_ref[...] = h.astype(out_ref.dtype)


def _full_spec(shape):
    zeros = (0,) * len(shape)
    return pl.BlockSpec(shape, lambda i: zeros)


def standgatx_forward(x, mask, params, *, negative_slope=0.2):
    """StandGATX.forward: conv1 -> relu -> [convx -> relu]* -> conv2, fully fused.

    params: list of per-layer tuples (w[F_in, H*C], att_l[H, C], att_r[H, C],
            bias[1, H*C]); ReLU after all but the last layer.
    mask:   dense adjacency, mask[i, j] != 0 iff edge j -> i, diagonal must be 1
            (self-loops), i.e. remove_self_loops + add_self_loops already applied.
    """
    # TODO(synk): F.dropout on features / attention coefficients is omitted
    # (eval-mode forward; stochastic op).
    N = x.shape[0]
    n_layers = len(params)

    meta = []
    flat = []
    for li, (w, att_l, att_r, bias) in enumerate(params):
        H, C = att_l.shape
        f_in = w.shape[0]
        # Fold both attention-coefficient projections into the weight matrix:
        #   w_dst[:, h] = sum_c W[:, h*C+c] * att_r[h, c]  (target-node coeff)
        #   w_src[:, h] = sum_c W[:, h*C+c] * att_l[h, c]  (source-node coeff)
        w3 = w.reshape(f_in, H, C)
        w_dst = jnp.einsum('fhc,hc->fh', w3, att_r)
        w_src = jnp.einsum('fhc,hc->fh', w3, att_l)
        w_ext = jnp.concatenate([w, w_dst, w_src], axis=1).astype(jnp.bfloat16)
        meta.append((H, C, li < n_layers - 1))
        flat += [w_ext, bias]
    out_dim = meta[-1][0] * meta[-1][1]  # H*C of last layer

    mask_i8 = (mask > 0).astype(jnp.int8)  # 4x smaller DMA/VMEM than f32

    kern = functools.partial(_standgatx_kernel,
                             layer_meta=tuple(meta),
                             negative_slope=negative_slope)
    in_arrays = (x, mask_i8, *flat)

    return pl.pallas_call(
        kern,
        out_shape=jax.ShapeDtypeStruct((N, out_dim), jnp.float32),
        grid=(1,),
        in_specs=[_full_spec(a.shape) for a in in_arrays],
        out_specs=pl.BlockSpec((N, out_dim), lambda i: (0, 0)),
        compiler_params=pltpu.CompilerParams(
            dimension_semantics=("arbitrary",),
            vmem_limit_bytes=32 * 1024 * 1024),
    )(*in_arrays)


def init_gat_params(key, in_ch, out_ch, heads):
    """Glorot-uniform init matching GATConv.reset_parameters."""
    kw, kl, kr = jax.random.split(key, 3)
    hc = heads * out_ch

    bw = (6.0 / (in_ch + hc)) ** 0.5
    w = jax.random.uniform(kw, (in_ch, hc), jnp.float32, -bw, bw)          # lin_l weight^T

    ba = (6.0 / (heads + out_ch)) ** 0.5
    att_l = jax.random.uniform(kl, (heads, out_ch), jnp.float32, -ba, ba)  # source coeff
    att_r = jax.random.uniform(kr, (heads, out_ch), jnp.float32, -ba, ba)  # target coeff

    bias = jnp.zeros((1, hc), jnp.float32)                                 # zeros() init
    return (w, att_l, att_r, bias)


if __name__ == "__main__":
    # Small, module-consistent shapes.
    N, nfeat, nhid, nclass, nlayer = 64, 16, 32, 8, 3
    num_head = 4
    head_dim = nhid // num_head

    key = jax.random.PRNGKey(0)
    kx, ke1, ke2, k1, k2, k3 = jax.random.split(key, 6)

    x = jax.random.normal(kx, (N, nfeat), jnp.float32)

    # Deterministic random directed edge list [2, E]; converted to a dense
    # mask[i, j] = 1 iff edge j -> i, diagonal forced to 1 (self-loops), which
    # matches remove_self_loops + add_self_loops in the module.
    E = 256
    src = jax.random.randint(ke1, (E,), 0, N)
    dst = jax.random.randint(ke2, (E,), 0, N)
    mask = jnp.zeros((N, N), jnp.float32).at[dst, src].set(1.0)
    mask = mask.at[jnp.arange(N), jnp.arange(N)].set(1.0)

    layers = [init_gat_params(k1, nfeat, head_dim, num_head)]      # conv1
    kxl = jax.random.split(k2, max(nlayer - 2, 1))
    for i in range(nlayer - 2):                                    # convx
        layers.append(init_gat_params(kxl[i], nhid, head_dim, num_head))
    layers.append(init_gat_params(k3, nhid, nclass, 1))            # conv2

    out = jax.jit(standgatx_forward)(x, mask, layers)
    out = jax.block_until_ready(out)
    assert out.shape == (N, nclass), out.shape
    assert bool(jnp.all(jnp.isfinite(out)))
    print("KERNEL_OK")
</pallas_src>

<mosaic_0001>
module attributes {stable_mosaic.version = 11 : i64} {
  func.func @_standgatx_kernel(%arg0: i32, %arg1: memref<64x16xf32, #tpu.memory_space<vmem>>, %arg2: memref<64x64xi8, #tpu.memory_space<vmem>>, %arg3: memref<16x40xbf16, #tpu.memory_space<vmem>>, %arg4: memref<1x32xf32, #tpu.memory_space<vmem>>, %arg5: memref<32x40xbf16, #tpu.memory_space<vmem>>, %arg6: memref<1x32xf32, #tpu.memory_space<vmem>>, %arg7: memref<32x10xbf16, #tpu.memory_space<vmem>>, %arg8: memref<1x8xf32, #tpu.memory_space<vmem>>, %arg9: memref<64x8xf32, #tpu.memory_space<vmem>>) attributes {dimension_semantics = [#tpu.dimension_semantics<arbitrary>], iteration_bounds = array<i64: 1>, scalar_prefetch = 0 : i64, scratch_operands = 0 : i64, tpu.core_type = #tpu.core_type<tc>, window_params = [{pipeline_mode = #tpu.pipeline_mode<synchronous>, transform_indices = @transform_0, window_bounds = array<i64: 64, 16>}, {pipeline_mode = #tpu.pipeline_mode<synchronous>, transform_indices = @transform_1, window_bounds = array<i64: 64, 64>}, {pipeline_mode = #tpu.pipeline_mode<synchronous>, transform_indices = @transform_2, window_bounds = array<i64: 16, 40>}, {pipeline_mode = #tpu.pipeline_mode<synchronous>, transform_indices = @transform_3, window_bounds = array<i64: 1, 32>}, {pipeline_mode = #tpu.pipeline_mode<synchronous>, transform_indices = @transform_4, window_bounds = array<i64: 32, 40>}, {pipeline_mode = #tpu.pipeline_mode<synchronous>, transform_indices = @transform_5, window_bounds = array<i64: 1, 32>}, {pipeline_mode = #tpu.pipeline_mode<synchronous>, transform_indices = @transform_6, window_bounds = array<i64: 32, 10>}, {pipeline_mode = #tpu.pipeline_mode<synchronous>, transform_indices = @transform_7, window_bounds = array<i64: 1, 8>}, {pipeline_mode = #tpu.pipeline_mode<synchronous>, transform_indices = @transform_8, window_bounds = array<i64: 64, 8>}]} {
    %c0 = arith.constant 0 : index
    %c0_0 = arith.constant 0 : index
    %0 = vector.load %arg2[%c0, %c0_0] : memref<64x64xi8, #tpu.memory_space<vmem>>, vector<64x64xi8>
    %1 = arith.sitofp %0 : vector<64x64xi8> to vector<64x64xf32>
    %cst = arith.constant 1.000000e+00 : f32
    %2 = vector.broadcast %cst : f32 to vector<64x64xf32>
    %3 = arith.subf %1, %2 : vector<64x64xf32>
    %cst_1 = arith.constant 1.000000e+30 : f32
    %4 = vector.broadcast %cst_1 : f32 to vector<64x64xf32>
    %5 = arith.mulf %3, %4 : vector<64x64xf32>
    %c0_2 = arith.constant 0 : index
    %c0_3 = arith.constant 0 : index
    %6 = vector.load %arg1[%c0_2, %c0_3] : memref<64x16xf32, #tpu.memory_space<vmem>>, vector<64x16xf32>
    %7 = arith.truncf %6 : vector<64x16xf32> to vector<64x16xbf16>
    %c0_4 = arith.constant 0 : index
    %c0_5 = arith.constant 0 : index
    %8 = vector.load %arg3[%c0_4, %c0_5] : memref<16x40xbf16, #tpu.memory_space<vmem>>, vector<16x40xbf16>
    %cst_6 = arith.constant dense<0.000000e+00> : vector<64x40xf32>
    %9 = tpu.matmul %7, %8, %cst_6 {dimension_numbers = #tpu.dot_dimension_numbers<[1], [0], [0], [1], [0, 0, 1, 1], [], []>} : vector<64x16xbf16>, vector<16x40xbf16>, vector<64x40xf32> -> vector<64x40xf32>
    %10 = vector.extract_strided_slice %9 {offsets = [0, 0], sizes = [64, 32], strides = [1, 1]} : vector<64x40xf32> to vector<64x32xf32>
    %11 = vector.extract_strided_slice %9 {offsets = [0, 32], sizes = [64, 1], strides = [1, 1]} : vector<64x40xf32> to vector<64x1xf32>
    %12 = vector.extract_strided_slice %9 {offsets = [0, 33], sizes = [64, 1], strides = [1, 1]} : vector<64x40xf32> to vector<64x1xf32>
    %13 = vector.extract_strided_slice %9 {offsets = [0, 34], sizes = [64, 1], strides = [1, 1]} : vector<64x40xf32> to vector<64x1xf32>
    %14 = vector.extract_strided_slice %9 {offsets = [0, 35], sizes = [64, 1], strides = [1, 1]} : vector<64x40xf32> to vector<64x1xf32>
    %15 = vector.shape_cast %11 : vector<64x1xf32> to vector<1x64x1xf32>
    %16 = vector.shape_cast %12 : vector<64x1xf32> to vector<1x64x1xf32>
    %17 = vector.shape_cast %13 : vector<64x1xf32> to vector<1x64x1xf32>
    %18 = vector.shape_cast %14 : vector<64x1xf32> to vector<1x64x1xf32>
    %19 = tpu.concatenate %15, %16, %17, %18 in 0 : vector<1x64x1xf32>, vector<1x64x1xf32>, vector<1x64x1xf32>, vector<1x64x1xf32> -> vector<4x64x1xf32>
    %20 = vector.extract_strided_slice %9 {offsets = [0, 36], sizes = [64, 4], strides = [1, 1]} : vector<64x40xf32> to vector<64x4xf32>
    %21 = tpu.transpose %20, [1, 0] : vector<64x4xf32> -> vector<4x64xf32>
    %22 = vector.shape_cast %21 : vector<4x64xf32> to vector<4x1x64xf32>
    %23 = vector.broadcast %19 : vector<4x64x1xf32> to vector<4x64x64xf32>
    %24 = vector.broadcast %22 : vector<4x1x64xf32> to vector<4x64x64xf32>
    %25 = arith.addf %23, %24 : vector<4x64x64xf32>
    %cst_7 = arith.constant 2.000000e-01 : f32
    %26 = vector.broadcast %cst_7 : f32 to vector<4x64x64xf32>
    %27 = arith.mulf %26, %25 : vector<4x64x64xf32>
    %28 = arith.maximumf %25, %27 : vector<4x64x64xf32>
    %29 = vector.shape_cast %5 : vector<64x64xf32> to vector<1x64x64xf32>
    %30 = vector.broadcast %29 : vector<1x64x64xf32> to vector<4x64x64xf32>
    %31 = arith.addf %28, %30 : vector<4x64x64xf32>
    %cst_8 = arith.constant dense<0xFF800000> : vector<4x64xf32>
    %32 = vector.multi_reduction <maximumf>, %31, %cst_8 [2] : vector<4x64x64xf32> to vector<4x64xf32>
    %33 = vector.shape_cast %32 : vector<4x64xf32> to vector<4x64x1xf32>
    %34 = vector.broadcast %33 : vector<4x64x1xf32> to vector<4x64x64xf32>
    %35 = arith.subf %31, %34 : vector<4x64x64xf32>
    %36 = math.exp %35 : vector<4x64x64xf32>
    %cst_9 = arith.constant dense<0.000000e+00> : vector<4x64xf32>
    %37 = vector.multi_reduction <add>, %36, %cst_9 [2] : vector<4x64x64xf32> to vector<4x64xf32>
    %38 = vector.shape_cast %37 : vector<4x64xf32> to vector<4x64x1xf32>
    %39 = vector.extract_strided_slice %10 {offsets = [0, 0], sizes = [64, 8], strides = [1, 1]} : vector<64x32xf32> to vector<64x8xf32>
    %40 = vector.extract_strided_slice %10 {offsets = [0, 8], sizes = [64, 8], strides = [1, 1]} : vector<64x32xf32> to vector<64x8xf32>
    %41 = vector.extract_strided_slice %10 {offsets = [0, 16], sizes = [64, 8], strides = [1, 1]} : vector<64x32xf32> to vector<64x8xf32>
    %42 = vector.extract_strided_slice %10 {offsets = [0, 24], sizes = [64, 8], strides = [1, 1]} : vector<64x32xf32> to vector<64x8xf32>
    %43 = vector.shape_cast %39 : vector<64x8xf32> to vector<1x64x8xf32>
    %44 = vector.shape_cast %40 : vector<64x8xf32> to vector<1x64x8xf32>
    %45 = vector.shape_cast %41 : vector<64x8xf32> to vector<1x64x8xf32>
    %46 = vector.shape_cast %42 : vector<64x8xf32> to vector<1x64x8xf32>
    %47 = tpu.concatenate %43, %44, %45, %46 in 0 : vector<1x64x8xf32>, vector<1x64x8xf32>, vector<1x64x8xf32>, vector<1x64x8xf32> -> vector<4x64x8xf32>
    %48 = arith.truncf %36 : vector<4x64x64xf32> to vector<4x64x64xbf16>
    %49 = arith.truncf %47 : vector<4x64x8xf32> to vector<4x64x8xbf16>
    %cst_10 = arith.constant dense<0.000000e+00> : vector<4x64x8xf32>
    %50 = tpu.matmul %48, %49, %cst_10 {dimension_numbers = #tpu.dot_dimension_numbers<[2], [1], [1], [2], [0, 0, 0, 1, 1, 2], [0], [0]>} : vector<4x64x64xbf16>, vector<4x64x8xbf16>, vector<4x64x8xf32> -> vector<4x64x8xf32>
    %51 = tpu.reciprocal %38 {approx = true} : vector<4x64x1xf32> -> vector<4x64x1xf32>
    %52 = vector.broadcast %51 : vector<4x64x1xf32> to vector<4x64x8xf32>
    %53 = arith.mulf %50, %52 : vector<4x64x8xf32>
    %54 = vector.extract_strided_slice %53 {offsets = [0, 0, 0], sizes = [1, 64, 8], strides = [1, 1, 1]} : vector<4x64x8xf32> to vector<1x64x8xf32>
    %55 = vector.shape_cast %54 : vector<1x64x8xf32> to vector<64x8xf32>
    %56 = vector.extract_strided_slice %53 {offsets = [1, 0, 0], sizes = [1, 64, 8], strides = [1, 1, 1]} : vector<4x64x8xf32> to vector<1x64x8xf32>
    %57 = vector.shape_cast %56 : vector<1x64x8xf32> to vector<64x8xf32>
    %58 = vector.extract_strided_slice %53 {offsets = [2, 0, 0], sizes = [1, 64, 8], strides = [1, 1, 1]} : vector<4x64x8xf32> to vector<1x64x8xf32>
    %59 = vector.shape_cast %58 : vector<1x64x8xf32> to vector<64x8xf32>
    %60 = vector.extract_strided_slice %53 {offsets = [3, 0, 0], sizes = [1, 64, 8], strides = [1, 1, 1]} : vector<4x64x8xf32> to vector<1x64x8xf32>
    %61 = vector.shape_cast %60 : vector<1x64x8xf32> to vector<64x8xf32>
    %62 = tpu.concatenate %55, %57, %59, %61 in 1 : vector<64x8xf32>, vector<64x8xf32>, vector<64x8xf32>, vector<64x8xf32> -> vector<64x32xf32>
    %c0_11 = arith.constant 0 : index
    %c0_12 = arith.constant 0 : index
    %63 = vector.load %arg4[%c0_11, %c0_12] : memref<1x32xf32, #tpu.memory_space<vmem>>, vector<1x32xf32>
    %64 = vector.broadcast %63 : vector<1x32xf32> to vector<64x32xf32>
    %65 = arith.addf %62, %64 : vector<64x32xf32>
    %cst_13 = arith.constant 0.000000e+00 : f32
    %66 = vector.broadcast %cst_13 : f32 to vector<64x32xf32>
    %67 = arith.maximumf %65, %66 : vector<64x32xf32>
    %68 = arith.truncf %67 : vector<64x32xf32> to vector<64x32xbf16>
    %c0_14 = arith.constant 0 : index
    %c0_15 = arith.constant 0 : index
    %69 = vector.load %arg5[%c0_14, %c0_15] : memref<32x40xbf16, #tpu.memory_space<vmem>>, vector<32x40xbf16>
    %cst_16 = arith.constant dense<0.000000e+00> : vector<64x40xf32>
    %70 = tpu.matmul %68, %69, %cst_16 {dimension_numbers = #tpu.dot_dimension_numbers<[1], [0], [0], [1], [0, 0, 1, 1], [], []>} : vector<64x32xbf16>, vector<32x40xbf16>, vector<64x40xf32> -> vector<64x40xf32>
    %71 = vector.extract_strided_slice %70 {offsets = [0, 0], sizes = [64, 32], strides = [1, 1]} : vector<64x40xf32> to vector<64x32xf32>
    %72 = vector.extract_strided_slice %70 {offsets = [0, 32], sizes = [64, 1], strides = [1, 1]} : vector<64x40xf32> to vector<64x1xf32>
    %73 = vector.extract_strided_slice %70 {offsets = [0, 33], sizes = [64, 1], strides = [1, 1]} : vector<64x40xf32> to vector<64x1xf32>
    %74 = vector.extract_strided_slice %70 {offsets = [0, 34], sizes = [64, 1], strides = [1, 1]} : vector<64x40xf32> to vector<64x1xf32>
    %75 = vector.extract_strided_slice %70 {offsets = [0, 35], sizes = [64, 1], strides = [1, 1]} : vector<64x40xf32> to vector<64x1xf32>
    %76 = vector.shape_cast %72 : vector<64x1xf32> to vector<1x64x1xf32>
    %77 = vector.shape_cast %73 : vector<64x1xf32> to vector<1x64x1xf32>
    %78 = vector.shape_cast %74 : vector<64x1xf32> to vector<1x64x1xf32>
    %79 = vector.shape_cast %75 : vector<64x1xf32> to vector<1x64x1xf32>
    %80 = tpu.concatenate %76, %77, %78, %79 in 0 : vector<1x64x1xf32>, vector<1x64x1xf32>, vector<1x64x1xf32>, vector<1x64x1xf32> -> vector<4x64x1xf32>
    %81 = vector.extract_strided_slice %70 {offsets = [0, 36], sizes = [64, 4], strides = [1, 1]} : vector<64x40xf32> to vector<64x4xf32>
    %82 = tpu.transpose %81, [1, 0] : vector<64x4xf32> -> vector<4x64xf32>
    %83 = vector.shape_cast %82 : vector<4x64xf32> to vector<4x1x64xf32>
    %84 = vector.broadcast %80 : vector<4x64x1xf32> to vector<4x64x64xf32>
    %85 = vector.broadcast %83 : vector<4x1x64xf32> to vector<4x64x64xf32>
    %86 = arith.addf %84, %85 : vector<4x64x64xf32>
    %cst_17 = arith.constant 2.000000e-01 : f32
    %87 = vector.broadcast %cst_17 : f32 to vector<4x64x64xf32>
    %88 = arith.mulf %87, %86 : vector<4x64x64xf32>
    %89 = arith.maximumf %86, %88 : vector<4x64x64xf32>
    %90 = vector.shape_cast %5 : vector<64x64xf32> to vector<1x64x64xf32>
    %91 = vector.broadcast %90 : vector<1x64x64xf32> to vector<4x64x64xf32>
    %92 = arith.addf %89, %91 : vector<4x64x64xf32>
    %cst_18 = arith.constant dense<0xFF800000> : vector<4x64xf32>
    %93 = vector.multi_reduction <maximumf>, %92, %cst_18 [2] : vector<4x64x64xf32> to vector<4x64xf32>
    %94 = vector.shape_cast %93 : vector<4x64xf32> to vector<4x64x1xf32>
    %95 = vector.broadcast %94 : vector<4x64x1xf32> to vector<4x64x64xf32>
    %96 = arith.subf %92, %95 : vector<4x64x64xf32>
    %97 = math.exp %96 : vector<4x64x64xf32>
    %cst_19 = arith.constant dense<0.000000e+00> : vector<4x64xf32>
    %98 = vector.multi_reduction <add>, %97, %cst_19 [2] : vector<4x64x64xf32> to vector<4x64xf32>
    %99 = vector.shape_cast %98 : vector<4x64xf32> to vector<4x64x1xf32>
    %100 = vector.extract_strided_slice %71 {offsets = [0, 0], sizes = [64, 8], strides = [1, 1]} : vector<64x32xf32> to vector<64x8xf32>
    %101 = vector.extract_strided_slice %71 {offsets = [0, 8], sizes = [64, 8], strides = [1, 1]} : vector<64x32xf32> to vector<64x8xf32>
    %102 = vector.extract_strided_slice %71 {offsets = [0, 16], sizes = [64, 8], strides = [1, 1]} : vector<64x32xf32> to vector<64x8xf32>
    %103 = vector.extract_strided_slice %71 {offsets = [0, 24], sizes = [64, 8], strides = [1, 1]} : vector<64x32xf32> to vector<64x8xf32>
    %104 = vector.shape_cast %100 : vector<64x8xf32> to vector<1x64x8xf32>
    %105 = vector.shape_cast %101 : vector<64x8xf32> to vector<1x64x8xf32>
    %106 = vector.shape_cast %102 : vector<64x8xf32> to vector<1x64x8xf32>
    %107 = vector.shape_cast %103 : vector<64x8xf32> to vector<1x64x8xf32>
    %108 = tpu.concatenate %104, %105, %106, %107 in 0 : vector<1x64x8xf32>, vector<1x64x8xf32>, vector<1x64x8xf32>, vector<1x64x8xf32> -> vector<4x64x8xf32>
    %109 = arith.truncf %97 : vector<4x64x64xf32> to vector<4x64x64xbf16>
    %110 = arith.truncf %108 : vector<4x64x8xf32> to vector<4x64x8xbf16>
    %cst_20 = arith.constant dense<0.000000e+00> : vector<4x64x8xf32>
    %111 = tpu.matmul %109, %110, %cst_20 {dimension_numbers = #tpu.dot_dimension_numbers<[2], [1], [1], [2], [0, 0, 0, 1, 1, 2], [0], [0]>} : vector<4x64x64xbf16>, vector<4x64x8xbf16>, vector<4x64x8xf32> -> vector<4x64x8xf32>
    %112 = tpu.reciprocal %99 {approx = true} : vector<4x64x1xf32> -> vector<4x64x1xf32>
    %113 = vector.broadcast %112 : vector<4x64x1xf32> to vector<4x64x8xf32>
    %114 = arith.mulf %111, %113 : vector<4x64x8xf32>
    %115 = vector.extract_strided_slice %114 {offsets = [0, 0, 0], sizes = [1, 64, 8], strides = [1, 1, 1]} : vector<4x64x8xf32> to vector<1x64x8xf32>
    %116 = vector.shape_cast %115 : vector<1x64x8xf32> to vector<64x8xf32>
    %117 = vector.extract_strided_slice %114 {offsets = [1, 0, 0], sizes = [1, 64, 8], strides = [1, 1, 1]} : vector<4x64x8xf32> to vector<1x64x8xf32>
    %118 = vector.shape_cast %117 : vector<1x64x8xf32> to vector<64x8xf32>
    %119 = vector.extract_strided_slice %114 {offsets = [2, 0, 0], sizes = [1, 64, 8], strides = [1, 1, 1]} : vector<4x64x8xf32> to vector<1x64x8xf32>
    %120 = vector.shape_cast %119 : vector<1x64x8xf32> to vector<64x8xf32>
    %121 = vector.extract_strided_slice %114 {offsets = [3, 0, 0], sizes = [1, 64, 8], strides = [1, 1, 1]} : vector<4x64x8xf32> to vector<1x64x8xf32>
    %122 = vector.shape_cast %121 : vector<1x64x8xf32> to vector<64x8xf32>
    %123 = tpu.concatenate %116, %118, %120, %122 in 1 : vector<64x8xf32>, vector<64x8xf32>, vector<64x8xf32>, vector<64x8xf32> -> vector<64x32xf32>
    %c0_21 = arith.constant 0 : index
    %c0_22 = arith.constant 0 : index
    %124 = vector.load %arg6[%c0_21, %c0_22] : memref<1x32xf32, #tpu.memory_space<vmem>>, vector<1x32xf32>
    %125 = vector.broadcast %124 : vector<1x32xf32> to vector<64x32xf32>
    %126 = arith.addf %123, %125 : vector<64x32xf32>
    %cst_23 = arith.constant 0.000000e+00 : f32
    %127 = vector.broadcast %cst_23 : f32 to vector<64x32xf32>
    %128 = arith.maximumf %126, %127 : vector<64x32xf32>
    %129 = arith.truncf %128 : vector<64x32xf32> to vector<64x32xbf16>
    %c0_24 = arith.constant 0 : index
    %c0_25 = arith.constant 0 : index
    %130 = vector.load %arg7[%c0_24, %c0_25] : memref<32x10xbf16, #tpu.memory_space<vmem>>, vector<32x10xbf16>
    %cst_26 = arith.constant dense<0.000000e+00> : vector<64x10xf32>
    %131 = tpu.matmul %129, %130, %cst_26 {dimension_numbers = #tpu.dot_dimension_numbers<[1], [0], [0], [1], [0, 0, 1, 1], [], []>} : vector<64x32xbf16>, vector<32x10xbf16>, vector<64x10xf32> -> vector<64x10xf32>
    %132 = vector.extract_strided_slice %131 {offsets = [0, 0], sizes = [64, 8], strides = [1, 1]} : vector<64x10xf32> to vector<64x8xf32>
    %133 = vector.extract_strided_slice %131 {offsets = [0, 8], sizes = [64, 1], strides = [1, 1]} : vector<64x10xf32> to vector<64x1xf32>
    %134 = vector.shape_cast %133 : vector<64x1xf32> to vector<1x64x1xf32>
    %135 = vector.extract_strided_slice %131 {offsets = [0, 9], sizes = [64, 1], strides = [1, 1]} : vector<64x10xf32> to vector<64x1xf32>
    %136 = tpu.transpose %135, [1, 0] : vector<64x1xf32> -> vector<1x64xf32>
    %137 = vector.shape_cast %136 : vector<1x64xf32> to vector<1x1x64xf32>
    %138 = vector.broadcast %134 : vector<1x64x1xf32> to vector<1x64x64xf32>
    %139 = vector.broadcast %137 : vector<1x1x64xf32> to vector<1x64x64xf32>
    %140 = arith.addf %138, %139 : vector<1x64x64xf32>
    %cst_27 = arith.constant 2.000000e-01 : f32
    %141 = vector.broadcast %cst_27 : f32 to vector<1x64x64xf32>
    %142 = arith.mulf %141, %140 : vector<1x64x64xf32>
    %143 = arith.maximumf %140, %142 : vector<1x64x64xf32>
    %144 = vector.shape_cast %5 : vector<64x64xf32> to vector<1x64x64xf32>
    %145 = arith.addf %143, %144 : vector<1x64x64xf32>
    %cst_28 = arith.constant dense<0xFF800000> : vector<1x64xf32>
    %146 = vector.multi_reduction <maximumf>, %145, %cst_28 [2] : vector<1x64x64xf32> to vector<1x64xf32>
    %147 = vector.shape_cast %146 : vector<1x64xf32> to vector<1x64x1xf32>
    %148 = vector.broadcast %147 : vector<1x64x1xf32> to vector<1x64x64xf32>
    %149 = arith.subf %145, %148 : vector<1x64x64xf32>
    %150 = math.exp %149 : vector<1x64x64xf32>
    %cst_29 = arith.constant dense<0.000000e+00> : vector<1x64xf32>
    %151 = vector.multi_reduction <add>, %150, %cst_29 [2] : vector<1x64x64xf32> to vector<1x64xf32>
    %152 = vector.shape_cast %151 : vector<1x64xf32> to vector<1x64x1xf32>
    %153 = vector.shape_cast %132 : vector<64x8xf32> to vector<1x64x8xf32>
    %154 = arith.truncf %150 : vector<1x64x64xf32> to vector<1x64x64xbf16>
    %155 = arith.truncf %153 : vector<1x64x8xf32> to vector<1x64x8xbf16>
    %cst_30 = arith.constant dense<0.000000e+00> : vector<1x64x8xf32>
    %156 = tpu.matmul %154, %155, %cst_30 {dimension_numbers = #tpu.dot_dimension_numbers<[2], [1], [1], [2], [0, 0, 0, 1, 1, 2], [0], [0]>} : vector<1x64x64xbf16>, vector<1x64x8xbf16>, vector<1x64x8xf32> -> vector<1x64x8xf32>
    %157 = tpu.reciprocal %152 {approx = true} : vector<1x64x1xf32> -> vector<1x64x1xf32>
    %158 = vector.broadcast %157 : vector<1x64x1xf32> to vector<1x64x8xf32>
    %159 = arith.mulf %156, %158 : vector<1x64x8xf32>
    %160 = vector.shape_cast %159 : vector<1x64x8xf32> to vector<64x8xf32>
    %c0_31 = arith.constant 0 : index
    %c0_32 = arith.constant 0 : index
    %161 = vector.load %arg8[%c0_31, %c0_32] : memref<1x8xf32, #tpu.memory_space<vmem>>, vector<1x8xf32>
    %162 = vector.broadcast %161 : vector<1x8xf32> to vector<64x8xf32>
    %163 = arith.addf %160, %162 : vector<64x8xf32>
    %c0_33 = arith.constant 0 : index
    %c0_34 = arith.constant 0 : index
    %164 = vector.load %arg9[%c0_33, %c0_34] : memref<64x8xf32, #tpu.memory_space<vmem>>, vector<64x8xf32>
    tpu.vector_store %arg9[%c0_33, %c0_34], %163 {strides = array<i32>} : memref<64x8xf32, #tpu.memory_space<vmem>>, vector<64x8xf32>,
    return
  }
  func.func @transform_0(%arg0: i32) -> (i32, i32) {
    %c0_i32 = arith.constant 0 : i32
    %c0_i32_0 = arith.constant 0 : i32
    %c0_i32_1 = arith.constant 0 : i32
    return %c0_i32, %c0_i32_0 : i32, i32
  }
  func.func @transform_1(%arg0: i32) -> (i32, i32) {
    %c0_i32 = arith.constant 0 : i32
    %c0_i32_0 = arith.constant 0 : i32
    %c0_i32_1 = arith.constant 0 : i32
    return %c0_i32, %c0_i32_0 : i32, i32
  }
  func.func @transform_2(%arg0: i32) -> (i32, i32) {
    %c0_i32 = arith.constant 0 : i32
    %c0_i32_0 = arith.constant 0 : i32
    %c0_i32_1 = arith.constant 0 : i32
    return %c0_i32, %c0_i32_0 : i32, i32
  }
  func.func @transform_3(%arg0: i32) -> (i32, i32) {
    %c0_i32 = arith.constant 0 : i32
    %c0_i32_0 = arith.constant 0 : i32
    %c0_i32_1 = arith.constant 0 : i32
    return %c0_i32, %c0_i32_0 : i32, i32
  }
  func.func @transform_4(%arg0: i32) -> (i32, i32) {
    %c0_i32 = arith.constant 0 : i32
    %c0_i32_0 = arith.constant 0 : i32
    %c0_i32_1 = arith.constant 0 : i32
    return %c0_i32, %c0_i32_0 : i32, i32
  }
  func.func @transform_5(%arg0: i32) -> (i32, i32) {
    %c0_i32 = arith.constant 0 : i32
    %c0_i32_0 = arith.constant 0 : i32
    %c0_i32_1 = arith.constant 0 : i32
    return %c0_i32, %c0_i32_0 : i32, i32
  }
  func.func @transform_6(%arg0: i32) -> (i32, i32) {
    %c0_i32 = arith.constant 0 : i32
    %c0_i32_0 = arith.constant 0 : i32
    %c0_i32_1 = arith.constant 0 : i32
    return %c0_i32, %c0_i32_0 : i32, i32
  }
  func.func @transform_7(%arg0: i32) -> (i32, i32) {
    %c0_i32 = arith.constant 0 : i32
    %c0_i32_0 = arith.constant 0 : i32
    %c0_i32_1 = arith.constant 0 : i32
    return %c0_i32, %c0_i32_0 : i32, i32
  }
  func.func @transform_8(%arg0: i32) -> (i32, i32) {
    %c0_i32 = arith.constant 0 : i32
    %c0_i32_0 = arith.constant 0 : i32
    %c0_i32_1 = arith.constant 0 : i32
    return %c0_i32, %c0_i32_0 : i32, i32
  }
}

</mosaic_0001>

<llo_original>
// kernel: standgatx_forward.1
$region0: #{standgatx_forward.1}
  #allocation0 [shape = 'u32[]', space=smem, size = 0x4, offset = 0x4, fixed_abs, tag = 'smem constant byte address 0x4 - core index']
  #allocation1 [shape = 'u32[144,128]{1,0:T(1,128)}', space=vmem, size = 0x12000, scoped, tag = 'internal scratch']
  %s0 = inlined_call_operand.vmem [shape: f32[64,16], index: 0, kind: input, shape index: {}]
  %s1 = inlined_call_operand.vmem [shape: s8[64,64], index: 1, kind: input, shape index: {}]
  %s2 = inlined_call_operand.vmem [shape: bf16[16,40], index: 2, kind: input, shape index: {}]
  %s3 = inlined_call_operand.vmem [shape: f32[1,32], index: 3, kind: input, shape index: {}]
  %s4 = inlined_call_operand.vmem [shape: bf16[32,40], index: 4, kind: input, shape index: {}]
  %s5 = inlined_call_operand.vmem [shape: f32[1,32], index: 5, kind: input, shape index: {}]
  %s6 = inlined_call_operand.vmem [shape: bf16[32,10], index: 6, kind: input, shape index: {}]
  %s7 = inlined_call_operand.vmem [shape: f32[1,8], index: 7, kind: input, shape index: {}]
  %s8 = inlined_call_operand.vmem [shape: f32[64,8], index: 8, kind: output, shape index: {}]
  %s9 = sld [smem:[#allocation0]]
  $region42: #{standgatx_forward.1} parent=0
    _
  %s11 = ssub.s32 1, %s9
  %s12 = scalar_select 0, %s11, %s9
  // Predicated region
  $region2: #{standgatx_forward.1} parent=0 // pred_check
    _
  $region3: #{standgatx_forward.1} parent=0 // pred_check_branch
    %14 = sbr.rel (0) target = $region5
  $region4: #{standgatx_forward.1} parent=0 // pred_region
    _
  $region5: #{standgatx_forward.1} parent=0 // pred_fallthru
    _
  // Predicated region
  $region6: #{standgatx_forward.1} parent=0 // pred_check
    _
  $region7: #{standgatx_forward.1} parent=0 // pred_check_branch
    %16 = sbr.rel (0) target = $region9
  $region8: #{standgatx_forward.1} parent=0 // pred_region
    _
  $region9: #{standgatx_forward.1} parent=0 // pred_fallthru
    _
  // Predicated region
  $region10: #{standgatx_forward.1} parent=0 // pred_check
    _
  $region11: #{standgatx_forward.1} parent=0 // pred_check_branch
    %18 = sbr.rel (0) target = $region13
  $region12: #{standgatx_forward.1} parent=0 // pred_region
    _
  $region13: #{standgatx_forward.1} parent=0 // pred_fallthru
    _
  // Predicated region
  $region14: #{standgatx_forward.1} parent=0 // pred_check
    _
  $region15: #{standgatx_forward.1} parent=0 // pred_check_branch
    %20 = sbr.rel (0) target = $region17
  $region16: #{standgatx_forward.1} parent=0 // pred_region
    _
  $region17: #{standgatx_forward.1} parent=0 // pred_fallthru
    _
  // Predicated region
  $region18: #{standgatx_forward.1} parent=0 // pred_check
    _
  $region19: #{standgatx_forward.1} parent=0 // pred_check_branch
    %22 = sbr.rel (0) target = $region21
  $region20: #{standgatx_forward.1} parent=0 // pred_region
    _
  $region21: #{standgatx_forward.1} parent=0 // pred_fallthru
    _
  // Predicated region
  $region22: #{standgatx_forward.1} parent=0 // pred_check
    _
  $region23: #{standgatx_forward.1} parent=0 // pred_check_branch
    %24 = sbr.rel (0) target = $region25
  $region24: #{standgatx_forward.1} parent=0 // pred_region
    _
  $region25: #{standgatx_forward.1} parent=0 // pred_fallthru
    _
  // Predicated region
  $region26: #{standgatx_forward.1} parent=0 // pred_check
    _
  $region27: #{standgatx_forward.1} parent=0 // pred_check_branch
    %26 = sbr.rel (0) target = $region29
  $region28: #{standgatx_forward.1} parent=0 // pred_region
    _
  $region29: #{standgatx_forward.1} parent=0 // pred_fallthru
    _
  // Predicated region
  $region30: #{standgatx_forward.1} parent=0 // pred_check
    _
  $region31: #{standgatx_forward.1} parent=0 // pred_check_branch
    %28 = sbr.rel (0) target = $region33
  $region32: #{standgatx_forward.1} parent=0 // pred_region
    _
  $region33: #{standgatx_forward.1} parent=0 // pred_fallthru
    _
  %v30 = vld [vmem:[%s1] sm:$0xff]
  %v31 = vld [vmem:[%s1 + $0x8] sm:$0xff]
  %v32 = vunpack.c.0.s8 %v30
  %v33 = vunpack.c.1.s8 %v30
  %v34 = vunpack.c.2.s8 %v30
  %v35 = vunpack.c.3.s8 %v30
  %v36 = vunpack.c.0.s8 %v31
  %v37 = vunpack.c.1.s8 %v31
  %v38 = vunpack.c.2.s8 %v31
  %v39 = vunpack.c.3.s8 %v31
  %v40 = vcvt.s32.f32 %v32
  %v41 = vcvt.s32.f32 %v33
  %v42 = vcvt.s32.f32 %v34
  %v43 = vcvt.s32.f32 %v35
  %v44 = vcvt.s32.f32 %v36
  %v45 = vcvt.s32.f32 %v37
  %v46 = vcvt.s32.f32 %v38
  %v47 = vcvt.s32.f32 %v39
  %v48 = vsub.f32 %v40, 1.0
  %v49 = vsub.f32 %v41, 1.0
  %v50 = vsub.f32 %v42, 1.0
  %v51 = vsub.f32 %v43, 1.0
  %v52 = vsub.f32 %v44, 1.0
  %v53 = vsub.f32 %v45, 1.0
  %v54 = vsub.f32 %v46, 1.0
  %v55 = vsub.f32 %v47, 1.0
  %v56 = vmul.f32 %v48, 1e+30
  %v57 = vmul.f32 %v49, 1e+30
  %v58 = vmul.f32 %v50, 1e+30
  %v59 = vmul.f32 %v51, 1e+30
  %v60 = vmul.f32 %v52, 1e+30
  %v61 = vmul.f32 %v53, 1e+30
  %v62 = vmul.f32 %v54, 1e+30
  %v63 = vmul.f32 %v55, 1e+30
  %v64 = vld [vmem:[%s0] sm:$0xff]
  %v65 = vld [vmem:[%s0 + $0x8] sm:$0xff]
  %v66 = vld [vmem:[%s0 + $0x10] sm:$0xff]
  %v67 = vld [vmem:[%s0 + $0x18] sm:$0xff]
  %v68 = vld [vmem:[%s0 + $0x20] sm:$0xff]
  %v69 = vld [vmem:[%s0 + $0x28] sm:$0xff]
  %v70 = vld [vmem:[%s0 + $0x30] sm:$0xff]
  %v71 = vld [vmem:[%s0 + $0x38] sm:$0xff]
  %v72 = vpack.c.bf16 %v65, %v64
  %v73 = vpack.c.bf16 %v67, %v66
  %v74 = vpack.c.bf16 %v69, %v68
  %v75 = vpack.c.bf16 %v71, %v70
  %v76 = vld [vmem:[%s2] sm:$0xf]
  %v77 = vld [vmem:[%s2 + $0x4] sm:$0xf]
  %v80 = vunpack.c.l.b16 %v76
  %v81 = vunpack.c.l.b16 %v77
  %v82 = vpack.c.b16 %v81, %v80
  %vm84 = vcmask 130048
  %v86 = vsel %vm84, %v72, 0
  %v89 = vsel %vm84, %v73, 0
  %v92 = vsel %vm84, %v74, 0
  %v95 = vsel %vm84, %v75, 0
  %97 = vmatprep.subr.bf16.mxu0 0
  %98 = vmatpush1.bf16.msra.mxu0 0
  %99 = vmatprep.subr.bf16.mxu0 0
  %100 = vmatpush1.bf16.msra.mxu0 0
  %101 = vmatprep.subr.bf16.mxu0 0
  %102 = vmatpush1.bf16.msra.mxu0 0
  %103 = vmatprep.subr.bf16.mxu0 0
  %104 = vmatpush1.bf16.msra.mxu0 0
  %105 = vmatprep.subr.bf16.mxu0 0
  %106 = vmatpush1.bf16.msra.mxu0 0
  %107 = vmatprep.subr.bf16.mxu0 0
  %108 = vmatpush1.bf16.msra.mxu0 0
  %109 = vmatprep.subr.bf16.mxu0 0
  %110 = vmatpush1.bf16.msra.mxu0 0
  %111 = vmatprep.subr.bf16.mxu0 0
  %112 = vmatpush1.bf16.msra.mxu0 %v82
  %113 = vmatprep.subr.bf16.mxu0 0
  %114 = vmatpush2.bf16.msra.mxu0 0
  %115 = vmatprep.subr.bf16.mxu0 0
  %116 = vmatpush2.bf16.msra.mxu0 0
  %117 = vmatprep.subr.bf16.mxu0 0
  %118 = vmatpush2.bf16.msra.mxu0 0
  %119 = vmatprep.subr.bf16.mxu0 0
  %120 = vmatpush2.bf16.msra.mxu0 0
  %121 = vmatprep.subr.bf16.mxu0 0
  %122 = vmatpush2.bf16.msra.mxu0 0
  %123 = vmatprep.subr.bf16.mxu0 0
  %124 = vmatpush2.bf16.msra.mxu0 0
  %125 = vmatprep.subr.bf16.mxu0 0
  %126 = vmatpush2.bf16.msra.mxu0 0
  %127 = vmatprep.subr.bf16.mxu0 0
  %128 = vmatpush2.bf16.msra.mxu0 0
  %129 = vmatprep.mubr.bf16.mxu0 0
  %130 = vmatmul.mubr.bf16.gmra.mxu0 %v86
  %v131 = vpop.f32.mrf.mxu0
  %v132 = vadd.f32 0.0, %v131
  %v133 = vpop.f32.mrf.mxu0
  %v134 = vpop.f32.mrf.mxu0
  %v135 = vadd.f32 0.0, %v134
  %v136 = vpop.f32.mrf.mxu0
  %137 = vmatprep.mubr.bf16.mxu0 0
  %138 = vmatmul.mubr.bf16.gmra.mxu0 %v89
  %v139 = vpop.f32.mrf.mxu0
  %v140 = vadd.f32 0.0, %v139
  %v141 = vpop.f32.mrf.mxu0
  %v142 = vpop.f32.mrf.mxu0
  %v143 = vadd.f32 0.0, %v142
  %v144 = vpop.f32.mrf.mxu0
  %145 = vmatprep.mubr.bf16.mxu0 0
  %146 = vmatmul.mubr.bf16.gmra.mxu0 %v92
  %v147 = vpop.f32.mrf.mxu0
  %v148 = vadd.f32 0.0, %v147
  %v149 = vpop.f32.mrf.mxu0
  %v150 = vpop.f32.mrf.mxu0
  %v151 = vadd.f32 0.0, %v150
  %v152 = vpop.f32.mrf.mxu0
  %153 = vmatprep.mubr.bf16.mxu0 0
  %154 = vmatmul.mubr.bf16.gmra.mxu0 %v95
  %v155 = vpop.f32.mrf.mxu0
  %v156 = vadd.f32 0.0, %v155
  %v157 = vpop.f32.mrf.mxu0
  %v158 = vpop.f32.mrf.mxu0
  %v159 = vadd.f32 0.0, %v158
  %v160 = vpop.f32.mrf.mxu0
  %161 = vdwg.mxu0
  %170 = vrot.lane.b32.xlu0 %v132, 127
  %v171 = vpop.permute.xlu0 %170
  %172 = vrot.lane.b32.xlu0 %v135, 127
  %v173 = vpop.permute.xlu0 %172
  %174 = vrot.lane.b32.xlu0 %v140, 127
  %v175 = vpop.permute.xlu0 %174
  %176 = vrot.lane.b32.xlu0 %v143, 127
  %v177 = vpop.permute.xlu0 %176
  %178 = vrot.lane.b32.xlu0 %v148, 127
  %v179 = vpop.permute.xlu0 %178
  %180 = vrot.lane.b32.xlu0 %v151, 127
  %v181 = vpop.permute.xlu0 %180
  %182 = vrot.lane.b32.xlu0 %v156, 127
  %v183 = vpop.permute.xlu0 %182
  %184 = vrot.lane.b32.xlu0 %v159, 127
  %v185 = vpop.permute.xlu0 %184
  %186 = vrot.lane.b32.xlu0 %v132, 126
  %v187 = vpop.permute.xlu0 %186
  %188 = vrot.lane.b32.xlu0 %v135, 126
  %v189 = vpop.permute.xlu0 %188
  %190 = vrot.lane.b32.xlu0 %v140, 126
  %v191 = vpop.permute.xlu0 %190
  %192 = vrot.lane.b32.xlu0 %v143, 126
  %v193 = vpop.permute.xlu0 %192
  %194 = vrot.lane.b32.xlu0 %v148, 126
  %v195 = vpop.permute.xlu0 %194
  %196 = vrot.lane.b32.xlu0 %v151, 126
  %v197 = vpop.permute.xlu0 %196
  %198 = vrot.lane.b32.xlu0 %v156, 126
  %v199 = vpop.permute.xlu0 %198
  %200 = vrot.lane.b32.xlu0 %v159, 126
  %v201 = vpop.permute.xlu0 %200
  %202 = vrot.lane.b32.xlu0 %v132, 125
  %v203 = vpop.permute.xlu0 %202
  %204 = vrot.lane.b32.xlu0 %v135, 125
  %v205 = vpop.permute.xlu0 %204
  %206 = vrot.lane.b32.xlu0 %v140, 125
  %v207 = vpop.permute.xlu0 %206
  %208 = vrot.lane.b32.xlu0 %v143, 125
  %v209 = vpop.permute.xlu0 %208
  %210 = vrot.lane.b32.xlu0 %v148, 125
  %v211 = vpop.permute.xlu0 %210
  %212 = vrot.lane.b32.xlu0 %v151, 125
  %v213 = vpop.permute.xlu0 %212
  %214 = vrot.lane.b32.xlu0 %v156, 125
  %v215 = vpop.permute.xlu0 %214
  %216 = vrot.lane.b32.xlu0 %v159, 125
  %v217 = vpop.permute.xlu0 %216
  %218 = vrot.lane.b32.xlu0 %v132, 92
  %v219 = vpop.permute.xlu0 %218
  %220 = vrot.lane.b32.xlu0 %v135, 92
  %v221 = vpop.permute.xlu0 %220
  %222 = vrot.lane.b32.xlu0 %v140, 92
  %v223 = vpop.permute.xlu0 %222
  %224 = vrot.lane.b32.xlu0 %v143, 92
  %v225 = vpop.permute.xlu0 %224
  %226 = vrot.lane.b32.xlu0 %v148, 92
  %v227 = vpop.permute.xlu0 %226
  %228 = vrot.lane.b32.xlu0 %v151, 92
  %v229 = vpop.permute.xlu0 %228
  %230 = vrot.lane.b32.xlu0 %v156, 92
  %v231 = vpop.permute.xlu0 %230
  %232 = vrot.lane.b32.xlu0 %v159, 92
  %v233 = vpop.permute.xlu0 %232
  %242 = vxpose.xlu0.b32.start [1/16] %v219, 128
  %243 = vxpose.xlu0.b32.cont [2/16] %v221, 128
  %244 = vxpose.xlu0.b32.cont [3/16] %v223, 128
  %245 = vxpose.xlu0.b32.cont [4/16] %v225, 128
  %246 = vxpose.xlu0.b32.cont [5/16] %v227, 128
  %247 = vxpose.xlu0.b32.cont [6/16] %v229, 128
  %248 = vxpose.xlu0.b32.cont [7/16] %v231, 128
  %249 = vxpose.xlu0.b32.cont [8/16] %v233, 128
  %250 = vxpose.xlu0.b32.cont [9/16] 0.0, 128
  %251 = vxpose.xlu0.b32.cont [10/16] 0.0, 128
  %252 = vxpose.xlu0.b32.cont [11/16] 0.0, 128
  %253 = vxpose.xlu0.b32.cont [12/16] 0.0, 128
  %254 = vxpose.xlu0.b32.cont [13/16] 0.0, 128
  %255 = vxpose.xlu0.b32.cont [14/16] 0.0, 128
  %256 = vxpose.xlu0.b32.cont [15/16] 0.0, 128
  %257 = vxpose.xlu0.b32.end [16/16] 0.0, 128
  %v258 = vpop.trf.xlu0
  %v259 = vpop.trf.xlu0
  %v260 = vpop.trf.xlu0
  %v261 = vpop.trf.xlu0
  %v262 = vpop.trf.xlu0
  %v263 = vpop.trf.xlu0
  %v264 = vpop.trf.xlu0
  %v265 = vpop.trf.xlu0
  %v266 = vpop.trf.xlu0
  %v267 = vpop.trf.xlu0
  %v268 = vpop.trf.xlu0
  %v269 = vpop.trf.xlu0
  %v270 = vpop.trf.xlu0
  %v271 = vpop.trf.xlu0
  %v272 = vpop.trf.xlu0
  %v273 = vpop.trf.xlu0
  %v276 = vunpack.c.l.s4 1966171168
  %v277 = vunpack.c.0.s8 %v276
  %v278 = vlaneseq
  %v279 = vshrl.u32 %v278, 7
  %v280 = vsub.s32 %v277, %v279
  %v281 = vrot.slane %v258, %v280
  %v282 = vcombine.high %v281, %v281
  %v284 = vunpack.c.l.s4 1966171168
  %v285 = vunpack.c.0.s8 %v284
  %v286 = vlaneseq
  %v287 = vshrl.u32 %v286, 7
  %v288 = vsub.s32 %v285, %v287
  %v289 = vrot.slane %v281, %v288
  %v291 = vunpack.c.l.s4 1966171168
  %v292 = vunpack.c.0.s8 %v291
  %v293 = vlaneseq
  %v294 = vshrl.u32 %v293, 7
  %v295 = vsub.s32 %v292, %v294
  %v296 = vrot.slane %v282, %v295
  %v297 = vcombine.high %v289, %v289
  %v298 = vcombine.high %v296, %v296
  %299 = vset.pattern.permute.xlu0 32
  %300 = vperm.xlu0 %299, %v132
  %v301 = vpop.permute.xlu0 %300
  %303 = vset.pattern.permute.xlu0 32
  %304 = vperm.xlu0 %303, %v135
  %v305 = vpop.permute.xlu0 %304
  %307 = vset.pattern.permute.xlu0 32
  %308 = vperm.xlu0 %307, %v140
  %v309 = vpop.permute.xlu0 %308
  %311 = vset.pattern.permute.xlu0 32
  %312 = vperm.xlu0 %311, %v143
  %v313 = vpop.permute.xlu0 %312
  %315 = vset.pattern.permute.xlu0 32
  %316 = vperm.xlu0 %315, %v148
  %v317 = vpop.permute.xlu0 %316
  %319 = vset.pattern.permute.xlu0 32
  %320 = vperm.xlu0 %319, %v151
  %v321 = vpop.permute.xlu0 %320
  %323 = vset.pattern.permute.xlu0 32
  %324 = vperm.xlu0 %323, %v156
  %v325 = vpop.permute.xlu0 %324
  %327 = vset.pattern.permute.xlu0 32
  %328 = vperm.xlu0 %327, %v159
  %v329 = vpop.permute.xlu0 %328
  %331 = vset.pattern.permute.xlu0 32
  %332 = vperm.xlu0 %331, %v171
  %v333 = vpop.permute.xlu0 %332
  %335 = vset.pattern.permute.xlu0 32
  %336 = vperm.xlu0 %335, %v173
  %v337 = vpop.permute.xlu0 %336
  %339 = vset.pattern.permute.xlu0 32
  %340 = vperm.xlu0 %339, %v175
  %v341 = vpop.permute.xlu0 %340
  %343 = vset.pattern.permute.xlu0 32
  %344 = vperm.xlu0 %343, %v177
  %v345 = vpop.permute.xlu0 %344
  %347 = vset.pattern.permute.xlu0 32
  %348 = vperm.xlu0 %347, %v179
  %v349 = vpop.permute.xlu0 %348
  %351 = vset.pattern.permute.xlu0 32
  %352 = vperm.xlu0 %351, %v181
  %v353 = vpop.permute.xlu0 %352
  %355 = vset.pattern.permute.xlu0 32
  %356 = vperm.xlu0 %355, %v183
  %v357 = vpop.permute.xlu0 %356
  %359 = vset.pattern.permute.xlu0 32
  %360 = vperm.xlu0 %359, %v185
  %v361 = vpop.permute.xlu0 %360
  %363 = vset.pattern.permute.xlu0 32
  %364 = vperm.xlu0 %363, %v187
  %v365 = vpop.permute.xlu0 %364
  %367 = vset.pattern.permute.xlu0 32
  %368 = vperm.xlu0 %367, %v189
  %v369 = vpop.permute.xlu0 %368
  %371 = vset.pattern.permute.xlu0 32
  %372 = vperm.xlu0 %371, %v191
  %v373 = vpop.permute.xlu0 %372
  %375 = vset.pattern.permute.xlu0 32
  %376 = vperm.xlu0 %375, %v193
  %v377 = vpop.permute.xlu0 %376
  %379 = vset.pattern.permute.xlu0 32
  %380 = vperm.xlu0 %379, %v195
  %v381 = vpop.permute.xlu0 %380
  %383 = vset.pattern.permute.xlu0 32
  %384 = vperm.xlu0 %383, %v197
  %v385 = vpop.permute.xlu0 %384
  %387 = vset.pattern.permute.xlu0 32
  %388 = vperm.xlu0 %387, %v199
  %v389 = vpop.permute.xlu0 %388
  %391 = vset.pattern.permute.xlu0 32
  %392 = vperm.xlu0 %391, %v201
  %v393 = vpop.permute.xlu0 %392
  %395 = vset.pattern.permute.xlu0 32
  %396 = vperm.xlu0 %395, %v203
  %v397 = vpop.permute.xlu0 %396
  %399 = vset.pattern.permute.xlu0 32
  %400 = vperm.xlu0 %399, %v205
  %v401 = vpop.permute.xlu0 %400
  %403 = vset.pattern.permute.xlu0 32
  %404 = vperm.xlu0 %403, %v207
  %v405 = vpop.permute.xlu0 %404
  %407 = vset.pattern.permute.xlu0 32
  %408 = vperm.xlu0 %407, %v209
  %v409 = vpop.permute.xlu0 %408
  %411 = vset.pattern.permute.xlu0 32
  %412 = vperm.xlu0 %411, %v211
  %v413 = vpop.permute.xlu0 %412
  %415 = vset.pattern.permute.xlu0 32
  %416 = vperm.xlu0 %415, %v213
  %v417 = vpop.permute.xlu0 %416
  %419 = vset.pattern.permute.xlu0 32
  %420 = vperm.xlu0 %419, %v215
  %v421 = vpop.permute.xlu0 %420
  %423 = vset.pattern.permute.xlu0 32
  %424 = vperm.xlu0 %423, %v217
  %v425 = vpop.permute.xlu0 %424
  %v427 = vlaneseq
  %v428 = vshrl.u32 %v427, 7
  %v429 = vsub.s32 0, %v428
  %v430 = vrot.slane %v289, %v429
  %v431 = vlaneseq
  %v432 = vshrl.u32 %v431, 7
  %v433 = vsub.s32 0, %v432
  %v434 = vrot.slane %v296, %v433
  %v435 = vlaneseq
  %v436 = vshrl.u32 %v435, 7
  %v437 = vsub.s32 0, %v436
  %v438 = vrot.slane %v297, %v437
  %v439 = vlaneseq
  %v440 = vshrl.u32 %v439, 7
  %v441 = vsub.s32 0, %v440
  %v442 = vrot.slane %v298, %v441
  %v447 = vadd.f32 %v301, %v430
  %v448 = vadd.f32 %v305, %v430
  %v449 = vadd.f32 %v309, %v430
  %v450 = vadd.f32 %v313, %v430
  %v451 = vadd.f32 %v317, %v430
  %v452 = vadd.f32 %v321, %v430
  %v453 = vadd.f32 %v325, %v430
  %v454 = vadd.f32 %v329, %v430
  %v455 = vadd.f32 %v333, %v434
  %v456 = vadd.f32 %v337, %v434
  %v457 = vadd.f32 %v341, %v434
  %v458 = vadd.f32 %v345, %v434
  %v459 = vadd.f32 %v349, %v434
  %v460 = vadd.f32 %v353, %v434
  %v461 = vadd.f32 %v357, %v434
  %v462 = vadd.f32 %v361, %v434
  %v463 = vadd.f32 %v365, %v438
  %v464 = vadd.f32 %v369, %v438
  %v465 = vadd.f32 %v373, %v438
  %v466 = vadd.f32 %v377, %v438
  %v467 = vadd.f32 %v381, %v438
  %v468 = vadd.f32 %v385, %v438
  %v469 = vadd.f32 %v389, %v438
  %v470 = vadd.f32 %v393, %v438
  %v471 = vadd.f32 %v397, %v442
  %v472 = vadd.f32 %v401, %v442
  %v473 = vadd.f32 %v405, %v442
  %v474 = vadd.f32 %v409, %v442
  %v475 = vadd.f32 %v413, %v442
  %v476 = vadd.f32 %v417, %v442
  %v477 = vadd.f32 %v421, %v442
  %v478 = vadd.f32 %v425, %v442
  %v479 = vmul.f32 %v447, 0.2
  %v480 = vmul.f32 %v448, 0.2
  %v481 = vmul.f32 %v449, 0.2
  %v482 = vmul.f32 %v450, 0.2
  %v483 = vmul.f32 %v451, 0.2
  %v484 = vmul.f32 %v452, 0.2
  %v485 = vmul.f32 %v453, 0.2
  %v486 = vmul.f32 %v454, 0.2
  %v487 = vmul.f32 %v455, 0.2
  %v488 = vmul.f32 %v456, 0.2
  %v489 = vmul.f32 %v457, 0.2
  %v490 = vmul.f32 %v458, 0.2
  %v491 = vmul.f32 %v459, 0.2
  %v492 = vmul.f32 %v460, 0.2
  %v493 = vmul.f32 %v461, 0.2
  %v494 = vmul.f32 %v462, 0.2
  %v495 = vmul.f32 %v463, 0.2
  %v496 = vmul.f32 %v464, 0.2
  %v497 = vmul.f32 %v465, 0.2
  %v498 = vmul.f32 %v466, 0.2
  %v499 = vmul.f32 %v467, 0.2
  %v500 = vmul.f32 %v468, 0.2
  %v501 = vmul.f32 %v469, 0.2
  %v502 = vmul.f32 %v470, 0.2
  %v503 = vmul.f32 %v471, 0.2
  %v504 = vmul.f32 %v472, 0.2
  %v505 = vmul.f32 %v473, 0.2
  %v506 = vmul.f32 %v474, 0.2
  %v507 = vmul.f32 %v475, 0.2
  %v508 = vmul.f32 %v476, 0.2
  %v509 = vmul.f32 %v477, 0.2
  %v510 = vmul.f32 %v478, 0.2
  %v511 = vmax.f32 %v447, %v479
  %v512 = vmax.f32 %v448, %v480
  %v513 = vmax.f32 %v449, %v481
  %v514 = vmax.f32 %v450, %v482
  %v515 = vmax.f32 %v451, %v483
  %v516 = vmax.f32 %v452, %v484
  %v517 = vmax.f32 %v453, %v485
  %v518 = vmax.f32 %v454, %v486
  %v519 = vmax.f32 %v455, %v487
  %v520 = vmax.f32 %v456, %v488
  %v521 = vmax.f32 %v457, %v489
  %v522 = vmax.f32 %v458, %v490
  %v523 = vmax.f32 %v459, %v491
  %v524 = vmax.f32 %v460, %v492
  %v525 = vmax.f32 %v461, %v493
  %v526 = vmax.f32 %v462, %v494
  %v527 = vmax.f32 %v463, %v495
  %v528 = vmax.f32 %v464, %v496
  %v529 = vmax.f32 %v465, %v497
  %v530 = vmax.f32 %v466, %v498
  %v531 = vmax.f32 %v467, %v499
  %v532 = vmax.f32 %v468, %v500
  %v533 = vmax.f32 %v469, %v501
  %v534 = vmax.f32 %v470, %v502
  %v535 = vmax.f32 %v471, %v503
  %v536 = vmax.f32 %v472, %v504
  %v537 = vmax.f32 %v473, %v505
  %v538 = vmax.f32 %v474, %v506
  %v539 = vmax.f32 %v475, %v507
  %v540 = vmax.f32 %v476, %v508
  %v541 = vmax.f32 %v477, %v509
  %v542 = vmax.f32 %v478, %v510
  %v543 = vadd.f32 %v511, %v56
  %v544 = vadd.f32 %v512, %v57
  %v545 = vadd.f32 %v513, %v58
  %v546 = vadd.f32 %v514, %v59
  %v547 = vadd.f32 %v515, %v60
  %v548 = vadd.f32 %v516, %v61
  %v549 = vadd.f32 %v517, %v62
  %v550 = vadd.f32 %v518, %v63
  %v551 = vadd.f32 %v519, %v56
  %v552 = vadd.f32 %v520, %v57
  %v553 = vadd.f32 %v521, %v58
  %v554 = vadd.f32 %v522, %v59
  %v555 = vadd.f32 %v523, %v60
  %v556 = vadd.f32 %v524, %v61
  %v557 = vadd.f32 %v525, %v62
  %v558 = vadd.f32 %v526, %v63
  %v559 = vadd.f32 %v527, %v56
  %v560 = vadd.f32 %v528, %v57
  %v561 = vadd.f32 %v529, %v58
  %v562 = vadd.f32 %v530, %v59
  %v563 = vadd.f32 %v531, %v60
  %v564 = vadd.f32 %v532, %v61
  %v565 = vadd.f32 %v533, %v62
  %v566 = vadd.f32 %v534, %v63
  %v567 = vadd.f32 %v535, %v56
  %v568 = vadd.f32 %v536, %v57
  %v569 = vadd.f32 %v537, %v58
  %v570 = vadd.f32 %v538, %v59
  %v571 = vadd.f32 %v539, %v60
  %v572 = vadd.f32 %v540, %v61
  %v573 = vadd.f32 %v541, %v62
  %v574 = vadd.f32 %v542, %v63
  %vm575 = vcmask 523264
  %v576 = vsel %vm575, %v543, -inf
  %577 = vmax.xlane.f32.xlu0 %v576
  %v578 = vpop.xlane.xlu0 %577
  %v579 = vsel %vm575, %v544, -inf
  %580 = vmax.xlane.f32.xlu0 %v579
  %v581 = vpop.xlane.xlu0 %580
  %v582 = vsel %vm575, %v545, -inf
  %583 = vmax.xlane.f32.xlu0 %v582
  %v584 = vpop.xlane.xlu0 %583
  %v585 = vsel %vm575, %v546, -inf
  %586 = vmax.xlane.f32.xlu0 %v585
  %v587 = vpop.xlane.xlu0 %586
  %v588 = vsel %vm575, %v547, -inf
  %589 = vmax.xlane.f32.xlu0 %v588
  %v590 = vpop.xlane.xlu0 %589
  %v591 = vsel %vm575, %v548, -inf
  %592 = vmax.xlane.f32.xlu0 %v591
  %v593 = vpop.xlane.xlu0 %592
  %v594 = vsel %vm575, %v549, -inf
  %595 = vmax.xlane.f32.xlu0 %v594
  %v596 = vpop.xlane.xlu0 %595
  %v597 = vsel %vm575, %v550, -inf
  %598 = vmax.xlane.f32.xlu0 %v597
  %v599 = vpop.xlane.xlu0 %598
  %v600 = vsel %vm575, %v551, -inf
  %601 = vmax.xlane.f32.xlu0 %v600
  %v602 = vpop.xlane.xlu0 %601
  %v603 = vsel %vm575, %v552, -inf
  %604 = vmax.xlane.f32.xlu0 %v603
  %v605 = vpop.xlane.xlu0 %604
  %v606 = vsel %vm575, %v553, -inf
  %607 = vmax.xlane.f32.xlu0 %v606
  %v608 = vpop.xlane.xlu0 %607
  %v609 = vsel %vm575, %v554, -inf
  %610 = vmax.xlane.f32.xlu0 %v609
  %v611 = vpop.xlane.xlu0 %610
  %v612 = vsel %vm575, %v555, -inf
  %613 = vmax.xlane.f32.xlu0 %v612
  %v614 = vpop.xlane.xlu0 %613
  %v615 = vsel %vm575, %v556, -inf
  %616 = vmax.xlane.f32.xlu0 %v615
  %v617 = vpop.xlane.xlu0 %616
  %v618 = vsel %vm575, %v557, -inf
  %619 = vmax.xlane.f32.xlu0 %v618
  %v620 = vpop.xlane.xlu0 %619
  %v621 = vsel %vm575, %v558, -inf
  %622 = vmax.xlane.f32.xlu0 %v621
  %v623 = vpop.xlane.xlu0 %622
  %v624 = vsel %vm575, %v559, -inf
  %625 = vmax.xlane.f32.xlu0 %v624
  %v626 = vpop.xlane.xlu0 %625
  %v627 = vsel %vm575, %v560, -inf
  %628 = vmax.xlane.f32.xlu0 %v627
  %v629 = vpop.xlane.xlu0 %628
  %v630 = vsel %vm575, %v561, -inf
  %631 = vmax.xlane.f32.xlu0 %v630
  %v632 = vpop.xlane.xlu0 %631
  %v633 = vsel %vm575, %v562, -inf
  %634 = vmax.xlane.f32.xlu0 %v633
  %v635 = vpop.xlane.xlu0 %634
  %v636 = vsel %vm575, %v563, -inf
  %637 = vmax.xlane.f32.xlu0 %v636
  %v638 = vpop.xlane.xlu0 %637
  %v639 = vsel %vm575, %v564, -inf
  %640 = vmax.xlane.f32.xlu0 %v639
  %v641 = vpop.xlane.xlu0 %640
  %v642 = vsel %vm575, %v565, -inf
  %643 = vmax.xlane.f32.xlu0 %v642
  %v644 = vpop.xlane.xlu0 %643
  %v645 = vsel %vm575, %v566, -inf
  %646 = vmax.xlane.f32.xlu0 %v645
  %v647 = vpop.xlane.xlu0 %646
  %v648 = vsel %vm575, %v567, -inf
  %649 = vmax.xlane.f32.xlu0 %v648
  %v650 = vpop.xlane.xlu0 %649
  %v651 = vsel %vm575, %v568, -inf
  %652 = vmax.xlane.f32.xlu0 %v651
  %v653 = vpop.xlane.xlu0 %652
  %v654 = vsel %vm575, %v569, -inf
  %655 = vmax.xlane.f32.xlu0 %v654
  %v656 = vpop.xlane.xlu0 %655
  %v657 = vsel %vm575, %v570, -inf
  %658 = vmax.xlane.f32.xlu0 %v657
  %v659 = vpop.xlane.xlu0 %658
  %v660 = vsel %vm575, %v571, -inf
  %661 = vmax.xlane.f32.xlu0 %v660
  %v662 = vpop.xlane.xlu0 %661
  %v663 = vsel %vm575, %v572, -inf
  %664 = vmax.xlane.f32.xlu0 %v663
  %v665 = vpop.xlane.xlu0 %664
  %v666 = vsel %vm575, %v573, -inf
  %667 = vmax.xlane.f32.xlu0 %v666
  %v668 = vpop.xlane.xlu0 %667
  %v669 = vsel %vm575, %v574, -inf
  %670 = vmax.xlane.f32.xlu0 %v669
  %v671 = vpop.xlane.xlu0 %670
  %v672 = vsub.f32 %v543, %v578
  %v673 = vsub.f32 %v544, %v581
  %v674 = vsub.f32 %v545, %v584
  %v675 = vsub.f32 %v546, %v587
  %v676 = vsub.f32 %v547, %v590
  %v677 = vsub.f32 %v548, %v593
  %v678 = vsub.f32 %v549, %v596
  %v679 = vsub.f32 %v550, %v599
  %v680 = vsub.f32 %v551, %v602
  %v681 = vsub.f32 %v552, %v605
  %v682 = vsub.f32 %v553, %v608
  %v683 = vsub.f32 %v554, %v611
  %v684 = vsub.f32 %v555, %v614
  %v685 = vsub.f32 %v556, %v617
  %v686 = vsub.f32 %v557, %v620
  %v687 = vsub.f32 %v558, %v623
  %v688 = vsub.f32 %v559, %v626
  %v689 = vsub.f32 %v560, %v629
  %v690 = vsub.f32 %v561, %v632
  %v691 = vsub.f32 %v562, %v635
  %v692 = vsub.f32 %v563, %v638
  %v693 = vsub.f32 %v564, %v641
  %v694 = vsub.f32 %v565, %v644
  %v695 = vsub.f32 %v566, %v647
  %v696 = vsub.f32 %v567, %v650
  %v697 = vsub.f32 %v568, %v653
  %v698 = vsub.f32 %v569, %v656
  %v699 = vsub.f32 %v570, %v659
  %v700 = vsub.f32 %v571, %v662
  %v701 = vsub.f32 %v572, %v665
  %v702 = vsub.f32 %v573, %v668
  %v703 = vsub.f32 %v574, %v671
  %v704 = vmul.f32 %v672, 1.442695
  %v705 = vpow.pop %v704
  %v706 = vmul.f32 %v673, 1.442695
  %v707 = vpow.pop %v706
  %v708 = vmul.f32 %v674, 1.442695
  %v709 = vpow.pop %v708
  %v710 = vmul.f32 %v675, 1.442695
  %v711 = vpow.pop %v710
  %v712 = vmul.f32 %v676, 1.442695
  %v713 = vpow.pop %v712
  %v714 = vmul.f32 %v677, 1.442695
  %v715 = vpow.pop %v714
  %v716 = vmul.f32 %v678, 1.442695
  %v717 = vpow.pop %v716
  %v718 = vmul.f32 %v679, 1.442695
  %v719 = vpow.pop %v718
  %v720 = vmul.f32 %v680, 1.442695
  %v721 = vpow.pop %v720
  %v722 = vmul.f32 %v681, 1.442695
  %v723 = vpow.pop %v722
  %v724 = vmul.f32 %v682, 1.442695
  %v725 = vpow.pop %v724
  %v726 = vmul.f32 %v683, 1.442695
  %v727 = vpow.pop %v726
  %v728 = vmul.f32 %v684, 1.442695
  %v729 = vpow.pop %v728
  %v730 = vmul.f32 %v685, 1.442695
  %v731 = vpow.pop %v730
  %v732 = vmul.f32 %v686, 1.442695
  %v733 = vpow.pop %v732
  %v734 = vmul.f32 %v687, 1.442695
  %v735 = vpow.pop %v734
  %v736 = vmul.f32 %v688, 1.442695
  %v737 = vpow.pop %v736
  %v738 = vmul.f32 %v689, 1.442695
  %v739 = vpow.pop %v738
  %v740 = vmul.f32 %v690, 1.442695
  %v741 = vpow.pop %v740
  %v742 = vmul.f32 %v691, 1.442695
  %v743 = vpow.pop %v742
  %v744 = vmul.f32 %v692, 1.442695
  %v745 = vpow.pop %v744
  %v746 = vmul.f32 %v693, 1.442695
  %v747 = vpow.pop %v746
  %v748 = vmul.f32 %v694, 1.442695
  %v749 = vpow.pop %v748
  %v750 = vmul.f32 %v695, 1.442695
  %v751 = vpow.pop %v750
  %v752 = vmul.f32 %v696, 1.442695
  %v753 = vpow.pop %v752
  %v754 = vmul.f32 %v697, 1.442695
  %v755 = vpow.pop %v754
  %v756 = vmul.f32 %v698, 1.442695
  %v757 = vpow.pop %v756
  %v758 = vmul.f32 %v699, 1.442695
  %v759 = vpow.pop %v758
  %v760 = vmul.f32 %v700, 1.442695
  %v761 = vpow.pop %v760
  %v762 = vmul.f32 %v701, 1.442695
  %v763 = vpow.pop %v762
  %v764 = vmul.f32 %v702, 1.442695
  %v765 = vpow.pop %v764
  %v766 = vmul.f32 %v703, 1.442695
  %v767 = vpow.pop %v766
  %v768 = vsel %vm575, %v705, 0.0
  %769 = vadd.xlane.f32.xlu0 %v768
  %v770 = vpop.xlane.xlu0 %769
  %v771 = vsel %vm575, %v707, 0.0
  %772 = vadd.xlane.f32.xlu0 %v771
  %v773 = vpop.xlane.xlu0 %772
  %v774 = vsel %vm575, %v709, 0.0
  %775 = vadd.xlane.f32.xlu0 %v774
  %v776 = vpop.xlane.xlu0 %775
  %v777 = vsel %vm575, %v711, 0.0
  %778 = vadd.xlane.f32.xlu0 %v777
  %v779 = vpop.xlane.xlu0 %778
  %v780 = vsel %vm575, %v713, 0.0
  %781 = vadd.xlane.f32.xlu0 %v780
  %v782 = vpop.xlane.xlu0 %781
  %v783 = vsel %vm575, %v715, 0.0
  %784 = vadd.xlane.f32.xlu0 %v783
  %v785 = vpop.xlane.xlu0 %784
  %v786 = vsel %vm575, %v717, 0.0
  %787 = vadd.xlane.f32.xlu0 %v786
  %v788 = vpop.xlane.xlu0 %787
  %v789 = vsel %vm575, %v719, 0.0
  %790 = vadd.xlane.f32.xlu0 %v789
  %v791 = vpop.xlane.xlu0 %790
  %v792 = vsel %vm575, %v721, 0.0
  %793 = vadd.xlane.f32.xlu0 %v792
  %v794 = vpop.xlane.xlu0 %793
  %v795 = vsel %vm575, %v723, 0.0
  %796 = vadd.xlane.f32.xlu0 %v795
  %v797 = vpop.xlane.xlu0 %796
  %v798 = vsel %vm575, %v725, 0.0
  %799 = vadd.xlane.f32.xlu0 %v798
  %v800 = vpop.xlane.xlu0 %799
  %v801 = vsel %vm575, %v727, 0.0
  %802 = vadd.xlane.f32.xlu0 %v801
  %v803 = vpop.xlane.xlu0 %802
  %v804 = vsel %vm575, %v729, 0.0
  %805 = vadd.xlane.f32.xlu0 %v804
  %v806 = vpop.xlane.xlu0 %805
  %v807 = vsel %vm575, %v731, 0.0
  %808 = vadd.xlane.f32.xlu0 %v807
  %v809 = vpop.xlane.xlu0 %808
  %v810 = vsel %vm575, %v733, 0.0
  %811 = vadd.xlane.f32.xlu0 %v810
  %v812 = vpop.xlane.xlu0 %811
  %v813 = vsel %vm575, %v735, 0.0
  %814 = vadd.xlane.f32.xlu0 %v813
  %v815 = vpop.xlane.xlu0 %814
  %v816 = vsel %vm575, %v737, 0.0
  %817 = vadd.xlane.f32.xlu0 %v816
  %v818 = vpop.xlane.xlu0 %817
  %v819 = vsel %vm575, %v739, 0.0
  %820 = vadd.xlane.f32.xlu0 %v819
  %v821 = vpop.xlane.xlu0 %820
  %v822 = vsel %vm575, %v741, 0.0
  %823 = vadd.xlane.f32.xlu0 %v822
  %v824 = vpop.xlane.xlu0 %823
  %v825 = vsel %vm575, %v743, 0.0
  %826 = vadd.xlane.f32.xlu0 %v825
  %v827 = vpop.xlane.xlu0 %826
  %v828 = vsel %vm575, %v745, 0.0
  %829 = vadd.xlane.f32.xlu0 %v828
  %v830 = vpop.xlane.xlu0 %829
  %v831 = vsel %vm575, %v747, 0.0
  %832 = vadd.xlane.f32.xlu0 %v831
  %v833 = vpop.xlane.xlu0 %832
  %v834 = vsel %vm575, %v749, 0.0
  %835 = vadd.xlane.f32.xlu0 %v834
  %v836 = vpop.xlane.xlu0 %835
  %v837 = vsel %vm575, %v751, 0.0
  %838 = vadd.xlane.f32.xlu0 %v837
  %v839 = vpop.xlane.xlu0 %838
  %v840 = vsel %vm575, %v753, 0.0
  %841 = vadd.xlane.f32.xlu0 %v840
  %v842 = vpop.xlane.xlu0 %841
  %v843 = vsel %vm575, %v755, 0.0
  %844 = vadd.xlane.f32.xlu0 %v843
  %v845 = vpop.xlane.xlu0 %844
  %v846 = vsel %vm575, %v757, 0.0
  %847 = vadd.xlane.f32.xlu0 %v846
  %v848 = vpop.xlane.xlu0 %847
  %v849 = vsel %vm575, %v759, 0.0
  %850 = vadd.xlane.f32.xlu0 %v849
  %v851 = vpop.xlane.xlu0 %850
  %v852 = vsel %vm575, %v761, 0.0
  %853 = vadd.xlane.f32.xlu0 %v852
  %v854 = vpop.xlane.xlu0 %853
  %v855 = vsel %vm575, %v763, 0.0
  %856 = vadd.xlane.f32.xlu0 %v855
  %v857 = vpop.xlane.xlu0 %856
  %v858 = vsel %vm575, %v765, 0.0
  %859 = vadd.xlane.f32.xlu0 %v858
  %v860 = vpop.xlane.xlu0 %859
  %v861 = vsel %vm575, %v767, 0.0
  %862 = vadd.xlane.f32.xlu0 %v861
  %v863 = vpop.xlane.xlu0 %862
  %864 = vrot.lane.b32.xlu0 %v132, 120
  %v865 = vpop.permute.xlu0 %864
  %866 = vrot.lane.b32.xlu0 %v135, 120
  %v867 = vpop.permute.xlu0 %866
  %868 = vrot.lane.b32.xlu0 %v140, 120
  %v869 = vpop.permute.xlu0 %868
  %870 = vrot.lane.b32.xlu0 %v143, 120
  %v871 = vpop.permute.xlu0 %870
  %872 = vrot.lane.b32.xlu0 %v148, 120
  %v873 = vpop.permute.xlu0 %872
  %874 = vrot.lane.b32.xlu0 %v151, 120
  %v875 = vpop.permute.xlu0 %874
  %876 = vrot.lane.b32.xlu0 %v156, 120
  %v877 = vpop.permute.xlu0 %876
  %878 = vrot.lane.b32.xlu0 %v159, 120
  %v879 = vpop.permute.xlu0 %878
  %888 = vrot.lane.b32.xlu0 %v132, 112
  %v889 = vpop.permute.xlu0 %888
  %890 = vrot.lane.b32.xlu0 %v135, 112
  %v891 = vpop.permute.xlu0 %890
  %892 = vrot.lane.b32.xlu0 %v140, 112
  %v893 = vpop.permute.xlu0 %892
  %894 = vrot.lane.b32.xlu0 %v143, 112
  %v895 = vpop.permute.xlu0 %894
  %896 = vrot.lane.b32.xlu0 %v148, 112
  %v897 = vpop.permute.xlu0 %896
  %898 = vrot.lane.b32.xlu0 %v151, 112
  %v899 = vpop.permute.xlu0 %898
  %900 = vrot.lane.b32.xlu0 %v156, 112
  %v901 = vpop.permute.xlu0 %900
  %902 = vrot.lane.b32.xlu0 %v159, 112
  %v903 = vpop.permute.xlu0 %902
  %912 = vrot.lane.b32.xlu0 %v132, 104
  %v913 = vpop.permute.xlu0 %912
  %914 = vrot.lane.b32.xlu0 %v135, 104
  %v915 = vpop.permute.xlu0 %914
  %916 = vrot.lane.b32.xlu0 %v140, 104
  %v917 = vpop.permute.xlu0 %916
  %918 = vrot.lane.b32.xlu0 %v143, 104
  %v919 = vpop.permute.xlu0 %918
  %920 = vrot.lane.b32.xlu0 %v148, 104
  %v921 = vpop.permute.xlu0 %920
  %922 = vrot.lane.b32.xlu0 %v151, 104
  %v923 = vpop.permute.xlu0 %922
  %924 = vrot.lane.b32.xlu0 %v156, 104
  %v925 = vpop.permute.xlu0 %924
  %926 = vrot.lane.b32.xlu0 %v159, 104
  %v927 = vpop.permute.xlu0 %926
  %v936 = vpack.c.bf16 %v707, %v705
  %v937 = vpack.c.bf16 %v711, %v709
  %v938 = vpack.c.bf16 %v715, %v713
  %v939 = vpack.c.bf16 %v719, %v717
  %v940 = vpack.c.bf16 %v723, %v721
  %v941 = vpack.c.bf16 %v727, %v725
  %v942 = vpack.c.bf16 %v731, %v729
  %v943 = vpack.c.bf16 %v735, %v733
  %v944 = vpack.c.bf16 %v739, %v737
  %v945 = vpack.c.bf16 %v743, %v741
  %v946 = vpack.c.bf16 %v747, %v745
  %v947 = vpack.c.bf16 %v751, %v749
  %v948 = vpack.c.bf16 %v755, %v753
  %v949 = vpack.c.bf16 %v759, %v757
  %v950 = vpack.c.bf16 %v763, %v761
  %v951 = vpack.c.bf16 %v767, %v765
  %v952 = vpack.c.bf16 %v135, %v132
  %v953 = vpack.c.bf16 %v143, %v140
  %v954 = vpack.c.bf16 %v151, %v148
  %v955 = vpack.c.bf16 %v159, %v156
  %v956 = vpack.c.bf16 %v867, %v865
  %v957 = vpack.c.bf16 %v871, %v869
  %v958 = vpack.c.bf16 %v875, %v873
  %v959 = vpack.c.bf16 %v879, %v877
  %v960 = vpack.c.bf16 %v891, %v889
  %v961 = vpack.c.bf16 %v895, %v893
  %v962 = vpack.c.bf16 %v899, %v897
  %v963 = vpack.c.bf16 %v903, %v901
  %v964 = vpack.c.bf16 %v915, %v913
  %v965 = vpack.c.bf16 %v919, %v917
  %v966 = vpack.c.bf16 %v923, %v921
  %v967 = vpack.c.bf16 %v927, %v925
  %v969 = vsel %vm575, %v936, 0
  %v972 = vsel %vm575, %v937, 0
  %v975 = vsel %vm575, %v938, 0
  %v978 = vsel %vm575, %v939, 0
  %980 = vmatprep.subr.bf16.mxu0 0
  %981 = vmatpush1.bf16.msra.mxu0 0
  %982 = vmatprep.subr.bf16.mxu0 0
  %983 = vmatpush1.bf16.msra.mxu0 0
  %984 = vmatprep.subr.bf16.mxu0 0
  %985 = vmatpush1.bf16.msra.mxu0 0
  %986 = vmatprep.subr.bf16.mxu0 0
  %987 = vmatpush1.bf16.msra.mxu0 0
  %988 = vmatprep.subr.bf16.mxu0 0
  %989 = vmatpush1.bf16.msra.mxu0 %v955
  %990 = vmatprep.subr.bf16.mxu0 0
  %991 = vmatpush1.bf16.msra.mxu0 %v954
  %992 = vmatprep.subr.bf16.mxu0 0
  %993 = vmatpush1.bf16.msra.mxu0 %v953
  %994 = vmatprep.subr.bf16.mxu0 0
  %995 = vmatpush1.bf16.msra.mxu0 %v952
  %996 = vmatprep.subr.bf16.mxu0 0
  %997 = vmatpush2.bf16.msra.mxu0 0
  %998 = vmatprep.subr.bf16.mxu0 0
  %999 = vmatpush2.bf16.msra.mxu0 0
  %1000 = vmatprep.subr.bf16.mxu0 0
  %1001 = vmatpush2.bf16.msra.mxu0 0
  %1002 = vmatprep.subr.bf16.mxu0 0
  %1003 = vmatpush2.bf16.msra.mxu0 0
  %1004 = vmatprep.subr.bf16.mxu0 0
  %1005 = vmatpush2.bf16.msra.mxu0 0
  %1006 = vmatprep.subr.bf16.mxu0 0
  %1007 = vmatpush2.bf16.msra.mxu0 0
  %1008 = vmatprep.subr.bf16.mxu0 0
  %1009 = vmatpush2.bf16.msra.mxu0 0
  %1010 = vmatprep.subr.bf16.mxu0 0
  %1011 = vmatpush2.bf16.msra.mxu0 0
  %1012 = vmatprep.mubr.bf16.mxu0 0
  %1013 = vmatmul.mubr.bf16.gmra.mxu0 %v969
  %v1014 = vpop.f32.mrf.mxu0
  %v1015 = vadd.f32 0.0, %v1014
  %v1016 = vpop.f32.mrf.mxu0
  %v1017 = vpop.f32.mrf.mxu0
  %v1018 = vadd.f32 0.0, %v1017
  %v1019 = vpop.f32.mrf.mxu0
  %1020 = vmatprep.mubr.bf16.mxu0 0
  %1021 = vmatmul.mubr.bf16.gmra.mxu0 %v972
  %v1022 = vpop.f32.mrf.mxu0
  %v1023 = vadd.f32 0.0, %v1022
  %v1024 = vpop.f32.mrf.mxu0
  %v1025 = vpop.f32.mrf.mxu0
  %v1026 = vadd.f32 0.0, %v1025
  %v1027 = vpop.f32.mrf.mxu0
  %1028 = vmatprep.mubr.bf16.mxu0 0
  %1029 = vmatmul.mubr.bf16.gmra.mxu0 %v975
  %v1030 = vpop.f32.mrf.mxu0
  %v1031 = vadd.f32 0.0, %v1030
  %v1032 = vpop.f32.mrf.mxu0
  %v1033 = vpop.f32.mrf.mxu0
  %v1034 = vadd.f32 0.0, %v1033
  %v1035 = vpop.f32.mrf.mxu0
  %1036 = vmatprep.mubr.bf16.mxu0 0
  %1037 = vmatmul.mubr.bf16.gmra.mxu0 %v978
  %v1038 = vpop.f32.mrf.mxu0
  %v1039 = vadd.f32 0.0, %v1038
  %v1040 = vpop.f32.mrf.mxu0
  %v1041 = vpop.f32.mrf.mxu0
  %v1042 = vadd.f32 0.0, %v1041
  %v1043 = vpop.f32.mrf.mxu0
  %1044 = vdwg.mxu0
  %v1046 = vsel %vm575, %v940, 0
  %v1049 = vsel %vm575, %v941, 0
  %v1052 = vsel %vm575, %v942, 0
  %v1055 = vsel %vm575, %v943, 0
  %1057 = vmatprep.subr.bf16.mxu0 0
  %1058 = vmatpush1.bf16.msra.mxu0 0
  %1059 = vmatprep.subr.bf16.mxu0 0
  %1060 = vmatpush1.bf16.msra.mxu0 0
  %1061 = vmatprep.subr.bf16.mxu0 0
  %1062 = vmatpush1.bf16.msra.mxu0 0
  %1063 = vmatprep.subr.bf16.mxu0 0
  %1064 = vmatpush1.bf16.msra.mxu0 0
  %1065 = vmatprep.subr.bf16.mxu0 0
  %1066 = vmatpush1.bf16.msra.mxu0 %v959
  %1067 = vmatprep.subr.bf16.mxu0 0
  %1068 = vmatpush1.bf16.msra.mxu0 %v958
  %1069 = vmatprep.subr.bf16.mxu0 0
  %1070 = vmatpush1.bf16.msra.mxu0 %v957
  %1071 = vmatprep.subr.bf16.mxu0 0
  %1072 = vmatpush1.bf16.msra.mxu0 %v956
  %1073 = vmatprep.subr.bf16.mxu0 0
  %1074 = vmatpush2.bf16.msra.mxu0 0
  %1075 = vmatprep.subr.bf16.mxu0 0
  %1076 = vmatpush2.bf16.msra.mxu0 0
  %1077 = vmatprep.subr.bf16.mxu0 0
  %1078 = vmatpush2.bf16.msra.mxu0 0
  %1079 = vmatprep.subr.bf16.mxu0 0
  %1080 = vmatpush2.bf16.msra.mxu0 0
  %1081 = vmatprep.subr.bf16.mxu0 0
  %1082 = vmatpush2.bf16.msra.mxu0 0
  %1083 = vmatprep.subr.bf16.mxu0 0
  %1084 = vmatpush2.bf16.msra.mxu0 0
  %1085 = vmatprep.subr.bf16.mxu0 0
  %1086 = vmatpush2.bf16.msra.mxu0 0
  %1087 = vmatprep.subr.bf16.mxu0 0
  %1088 = vmatpush2.bf16.msra.mxu0 0
  %1089 = vmatprep.mubr.bf16.mxu0 0
  %1090 = vmatmul.mubr.bf16.gmra.mxu0 %v1046
  %v1091 = vpop.f32.mrf.mxu0
  %v1092 = vadd.f32 0.0, %v1091
  %v1093 = vpop.f32.mrf.mxu0
  %v1094 = vpop.f32.mrf.mxu0
  %v1095 = vadd.f32 0.0, %v1094
  %v1096 = vpop.f32.mrf.mxu0
  %1097 = vmatprep.mubr.bf16.mxu0 0
  %1098 = vmatmul.mubr.bf16.gmra.mxu0 %v1049
  %v1099 = vpop.f32.mrf.mxu0
  %v1100 = vadd.f32 0.0, %v1099
  %v1101 = vpop.f32.mrf.mxu0
  %v1102 = vpop.f32.mrf.mxu0
  %v1103 = vadd.f32 0.0, %v1102
  %v1104 = vpop.f32.mrf.mxu0
  %1105 = vmatprep.mubr.bf16.mxu0 0
  %1106 = vmatmul.mubr.bf16.gmra.mxu0 %v1052
  %v1107 = vpop.f32.mrf.mxu0
  %v1108 = vadd.f32 0.0, %v1107
  %v1109 = vpop.f32.mrf.mxu0
  %v1110 = vpop.f32.mrf.mxu0
  %v1111 = vadd.f32 0.0, %v1110
  %v1112 = vpop.f32.mrf.mxu0
  %1113 = vmatprep.mubr.bf16.mxu0 0
  %1114 = vmatmul.mubr.bf16.gmra.mxu0 %v1055
  %v1115 = vpop.f32.mrf.mxu0
  %v1116 = vadd.f32 0.0, %v1115
  %v1117 = vpop.f32.mrf.mxu0
  %v1118 = vpop.f32.mrf.mxu0
  %v1119 = vadd.f32 0.0, %v1118
  %v1120 = vpop.f32.mrf.mxu0
  %1121 = vdwg.mxu0
  %v1123 = vsel %vm575, %v944, 0
  %v1126 = vsel %vm575, %v945, 0
  %v1129 = vsel %vm575, %v946, 0
  %v1132 = vsel %vm575, %v947, 0
  %1134 = vmatprep.subr.bf16.mxu0 0
  %1135 = vmatpush1.bf16.msra.mxu0 0
  %1136 = vmatprep.subr.bf16.mxu0 0
  %1137 = vmatpush1.bf16.msra.mxu0 0
  %1138 = vmatprep.subr.bf16.mxu0 0
  %1139 = vmatpush1.bf16.msra.mxu0 0
  %1140 = vmatprep.subr.bf16.mxu0 0
  %1141 = vmatpush1.bf16.msra.mxu0 0
  %1142 = vmatprep.subr.bf16.mxu0 0
  %1143 = vmatpush1.bf16.msra.mxu0 %v963
  %1144 = vmatprep.subr.bf16.mxu0 0
  %1145 = vmatpush1.bf16.msra.mxu0 %v962
  %1146 = vmatprep.subr.bf16.mxu0 0
  %1147 = vmatpush1.bf16.msra.mxu0 %v961
  %1148 = vmatprep.subr.bf16.mxu0 0
  %1149 = vmatpush1.bf16.msra.mxu0 %v960
  %1150 = vmatprep.subr.bf16.mxu0 0
  %1151 = vmatpush2.bf16.msra.mxu0 0
  %1152 = vmatprep.subr.bf16.mxu0 0
  %1153 = vmatpush2.bf16.msra.mxu0 0
  %1154 = vmatprep.subr.bf16.mxu0 0
  %1155 = vmatpush2.bf16.msra.mxu0 0
  %1156 = vmatprep.subr.bf16.mxu0 0
  %1157 = vmatpush2.bf16.msra.mxu0 0
  %1158 = vmatprep.subr.bf16.mxu0 0
  %1159 = vmatpush2.bf16.msra.mxu0 0
  %1160 = vmatprep.subr.bf16.mxu0 0
  %1161 = vmatpush2.bf16.msra.mxu0 0
  %1162 = vmatprep.subr.bf16.mxu0 0
  %1163 = vmatpush2.bf16.msra.mxu0 0
  %1164 = vmatprep.subr.bf16.mxu0 0
  %1165 = vmatpush2.bf16.msra.mxu0 0
  %1166 = vmatprep.mubr.bf16.mxu0 0
  %1167 = vmatmul.mubr.bf16.gmra.mxu0 %v1123
  %v1168 = vpop.f32.mrf.mxu0
  %v1169 = vadd.f32 0.0, %v1168
  %v1170 = vpop.f32.mrf.mxu0
  %v1171 = vpop.f32.mrf.mxu0
  %v1172 = vadd.f32 0.0, %v1171
  %v1173 = vpop.f32.mrf.mxu0
  %1174 = vmatprep.mubr.bf16.mxu0 0
  %1175 = vmatmul.mubr.bf16.gmra.mxu0 %v1126
  %v1176 = vpop.f32.mrf.mxu0
  %v1177 = vadd.f32 0.0, %v1176
  %v1178 = vpop.f32.mrf.mxu0
  %v1179 = vpop.f32.mrf.mxu0
  %v1180 = vadd.f32 0.0, %v1179
  %v1181 = vpop.f32.mrf.mxu0
  %1182 = vmatprep.mubr.bf16.mxu0 0
  %1183 = vmatmul.mubr.bf16.gmra.mxu0 %v1129
  %v1184 = vpop.f32.mrf.mxu0
  %v1185 = vadd.f32 0.0, %v1184
  %v1186 = vpop.f32.mrf.mxu0
  %v1187 = vpop.f32.mrf.mxu0
  %v1188 = vadd.f32 0.0, %v1187
  %v1189 = vpop.f32.mrf.mxu0
  %1190 = vmatprep.mubr.bf16.mxu0 0
  %1191 = vmatmul.mubr.bf16.gmra.mxu0 %v1132
  %v1192 = vpop.f32.mrf.mxu0
  %v1193 = vadd.f32 0.0, %v1192
  %v1194 = vpop.f32.mrf.mxu0
  %v1195 = vpop.f32.mrf.mxu0
  %v1196 = vadd.f32 0.0, %v1195
  %v1197 = vpop.f32.mrf.mxu0
  %1198 = vdwg.mxu0
  %v1200 = vsel %vm575, %v948, 0
  %v1203 = vsel %vm575, %v949, 0
  %v1206 = vsel %vm575, %v950, 0
  %v1209 = vsel %vm575, %v951, 0
  %1211 = vmatprep.subr.bf16.mxu0 0
  %1212 = vmatpush1.bf16.msra.mxu0 0
  %1213 = vmatprep.subr.bf16.mxu0 0
  %1214 = vmatpush1.bf16.msra.mxu0 0
  %1215 = vmatprep.subr.bf16.mxu0 0
  %1216 = vmatpush1.bf16.msra.mxu0 0
  %1217 = vmatprep.subr.bf16.mxu0 0
  %1218 = vmatpush1.bf16.msra.mxu0 0
  %1219 = vmatprep.subr.bf16.mxu0 0
  %1220 = vmatpush1.bf16.msra.mxu0 %v967
  %1221 = vmatprep.subr.bf16.mxu0 0
  %1222 = vmatpush1.bf16.msra.mxu0 %v966
  %1223 = vmatprep.subr.bf16.mxu0 0
  %1224 = vmatpush1.bf16.msra.mxu0 %v965
  %1225 = vmatprep.subr.bf16.mxu0 0
  %1226 = vmatpush1.bf16.msra.mxu0 %v964
  %1227 = vmatprep.subr.bf16.mxu0 0
  %1228 = vmatpush2.bf16.msra.mxu0 0
  %1229 = vmatprep.subr.bf16.mxu0 0
  %1230 = vmatpush2.bf16.msra.mxu0 0
  %1231 = vmatprep.subr.bf16.mxu0 0
  %1232 = vmatpush2.bf16.msra.mxu0 0
  %1233 = vmatprep.subr.bf16.mxu0 0
  %1234 = vmatpush2.bf16.msra.mxu0 0
  %1235 = vmatprep.subr.bf16.mxu0 0
  %1236 = vmatpush2.bf16.msra.mxu0 0
  %1237 = vmatprep.subr.bf16.mxu0 0
  %1238 = vmatpush2.bf16.msra.mxu0 0
  %1239 = vmatprep.subr.bf16.mxu0 0
  %1240 = vmatpush2.bf16.msra.mxu0 0
  %1241 = vmatprep.subr.bf16.mxu0 0
  %1242 = vmatpush2.bf16.msra.mxu0 0
  %1243 = vmatprep.mubr.bf16.mxu0 0
  %1244 = vmatmul.mubr.bf16.gmra.mxu0 %v1200
  %v1245 = vpop.f32.mrf.mxu0
  %v1246 = vadd.f32 0.0, %v1245
  %v1247 = vpop.f32.mrf.mxu0
  %v1248 = vpop.f32.mrf.mxu0
  %v1249 = vadd.f32 0.0, %v1248
  %v1250 = vpop.f32.mrf.mxu0
  %1251 = vmatprep.mubr.bf16.mxu0 0
  %1252 = vmatmul.mubr.bf16.gmra.mxu0 %v1203
  %v1253 = vpop.f32.mrf.mxu0
  %v1254 = vadd.f32 0.0, %v1253
  %v1255 = vpop.f32.mrf.mxu0
  %v1256 = vpop.f32.mrf.mxu0
  %v1257 = vadd.f32 0.0, %v1256
  %v1258 = vpop.f32.mrf.mxu0
  %1259 = vmatprep.mubr.bf16.mxu0 0
  %1260 = vmatmul.mubr.bf16.gmra.mxu0 %v1206
  %v1261 = vpop.f32.mrf.mxu0
  %v1262 = vadd.f32 0.0, %v1261
  %v1263 = vpop.f32.mrf.mxu0
  %v1264 = vpop.f32.mrf.mxu0
  %v1265 = vadd.f32 0.0, %v1264
  %v1266 = vpop.f32.mrf.mxu0
  %1267 = vmatprep.mubr.bf16.mxu0 0
  %1268 = vmatmul.mubr.bf16.gmra.mxu0 %v1209
  %v1269 = vpop.f32.mrf.mxu0
  %v1270 = vadd.f32 0.0, %v1269
  %v1271 = vpop.f32.mrf.mxu0
  %v1272 = vpop.f32.mrf.mxu0
  %v1273 = vadd.f32 0.0, %v1272
  %v1274 = vpop.f32.mrf.mxu0
  %1275 = vdwg.mxu0
  %v1276 = vrcp.pop %v770
  %v1277 = vrcp.pop %v773
  %v1278 = vrcp.pop %v776
  %v1279 = vrcp.pop %v779
  %v1280 = vrcp.pop %v782
  %v1281 = vrcp.pop %v785
  %v1282 = vrcp.pop %v788
  %v1283 = vrcp.pop %v791
  %v1284 = vrcp.pop %v794
  %v1285 = vrcp.pop %v797
  %v1286 = vrcp.pop %v800
  %v1287 = vrcp.pop %v803
  %v1288 = vrcp.pop %v806
  %v1289 = vrcp.pop %v809
  %v1290 = vrcp.pop %v812
  %v1291 = vrcp.pop %v815
  %v1292 = vrcp.pop %v818
  %v1293 = vrcp.pop %v821
  %v1294 = vrcp.pop %v824
  %v1295 = vrcp.pop %v827
  %v1296 = vrcp.pop %v830
  %v1297 = vrcp.pop %v833
  %v1298 = vrcp.pop %v836
  %v1299 = vrcp.pop %v839
  %v1300 = vrcp.pop %v842
  %v1301 = vrcp.pop %v845
  %v1302 = vrcp.pop %v848
  %v1303 = vrcp.pop %v851
  %v1304 = vrcp.pop %v854
  %v1305 = vrcp.pop %v857
  %v1306 = vrcp.pop %v860
  %v1307 = vrcp.pop %v863
  %v1308 = vmul.f32 %v1015, %v1276
  %v1309 = vmul.f32 %v1018, %v1277
  %v1310 = vmul.f32 %v1023, %v1278
  %v1311 = vmul.f32 %v1026, %v1279
  %v1312 = vmul.f32 %v1031, %v1280
  %v1313 = vmul.f32 %v1034, %v1281
  %v1314 = vmul.f32 %v1039, %v1282
  %v1315 = vmul.f32 %v1042, %v1283
  %v1316 = vmul.f32 %v1092, %v1284
  %v1317 = vmul.f32 %v1095, %v1285
  %v1318 = vmul.f32 %v1100, %v1286
  %v1319 = vmul.f32 %v1103, %v1287
  %v1320 = vmul.f32 %v1108, %v1288
  %v1321 = vmul.f32 %v1111, %v1289
  %v1322 = vmul.f32 %v1116, %v1290
  %v1323 = vmul.f32 %v1119, %v1291
  %v1324 = vmul.f32 %v1169, %v1292
  %v1325 = vmul.f32 %v1172, %v1293
  %v1326 = vmul.f32 %v1177, %v1294
  %v1327 = vmul.f32 %v1180, %v1295
  %v1328 = vmul.f32 %v1185, %v1296
  %v1329 = vmul.f32 %v1188, %v1297
  %v1330 = vmul.f32 %v1193, %v1298
  %v1331 = vmul.f32 %v1196, %v1299
  %v1332 = vmul.f32 %v1246, %v1300
  %v1333 = vmul.f32 %v1249, %v1301
  %v1334 = vmul.f32 %v1254, %v1302
  %v1335 = vmul.f32 %v1257, %v1303
  %v1336 = vmul.f32 %v1262, %v1304
  %v1337 = vmul.f32 %v1265, %v1305
  %v1338 = vmul.f32 %v1270, %v1306
  %v1339 = vmul.f32 %v1273, %v1307
  %1348 = vrot.lane.b32.xlu0 %v1316, 8
  %v1349 = vpop.permute.xlu0 %1348
  %1350 = vrot.lane.b32.xlu0 %v1317, 8
  %v1351 = vpop.permute.xlu0 %1350
  %1352 = vrot.lane.b32.xlu0 %v1318, 8
  %v1353 = vpop.permute.xlu0 %1352
  %1354 = vrot.lane.b32.xlu0 %v1319, 8
  %v1355 = vpop.permute.xlu0 %1354
  %1356 = vrot.lane.b32.xlu0 %v1320, 8
  %v1357 = vpop.permute.xlu0 %1356
  %1358 = vrot.lane.b32.xlu0 %v1321, 8
  %v1359 = vpop.permute.xlu0 %1358
  %1360 = vrot.lane.b32.xlu0 %v1322, 8
  %v1361 = vpop.permute.xlu0 %1360
  %1362 = vrot.lane.b32.xlu0 %v1323, 8
  %v1363 = vpop.permute.xlu0 %1362
  %1380 = vrot.lane.b32.xlu0 %v1324, 16
  %v1381 = vpop.permute.xlu0 %1380
  %1382 = vrot.lane.b32.xlu0 %v1325, 16
  %v1383 = vpop.permute.xlu0 %1382
  %1384 = vrot.lane.b32.xlu0 %v1326, 16
  %v1385 = vpop.permute.xlu0 %1384
  %1386 = vrot.lane.b32.xlu0 %v1327, 16
  %v1387 = vpop.permute.xlu0 %1386
  %1388 = vrot.lane.b32.xlu0 %v1328, 16
  %v1389 = vpop.permute.xlu0 %1388
  %1390 = vrot.lane.b32.xlu0 %v1329, 16
  %v1391 = vpop.permute.xlu0 %1390
  %1392 = vrot.lane.b32.xlu0 %v1330, 16
  %v1393 = vpop.permute.xlu0 %1392
  %1394 = vrot.lane.b32.xlu0 %v1331, 16
  %v1395 = vpop.permute.xlu0 %1394
  %1412 = vrot.lane.b32.xlu0 %v1332, 24
  %v1413 = vpop.permute.xlu0 %1412
  %1414 = vrot.lane.b32.xlu0 %v1333, 24
  %v1415 = vpop.permute.xlu0 %1414
  %1416 = vrot.lane.b32.xlu0 %v1334, 24
  %v1417 = vpop.permute.xlu0 %1416
  %1418 = vrot.lane.b32.xlu0 %v1335, 24
  %v1419 = vpop.permute.xlu0 %1418
  %1420 = vrot.lane.b32.xlu0 %v1336, 24
  %v1421 = vpop.permute.xlu0 %1420
  %1422 = vrot.lane.b32.xlu0 %v1337, 24
  %v1423 = vpop.permute.xlu0 %1422
  %1424 = vrot.lane.b32.xlu0 %v1338, 24
  %v1425 = vpop.permute.xlu0 %1424
  %1426 = vrot.lane.b32.xlu0 %v1339, 24
  %v1427 = vpop.permute.xlu0 %1426
  %vm1436 = vcmask 64512
  %v1437 = vsel %vm1436, %v1308, %v1349
  %v1438 = vsel %vm1436, %v1309, %v1351
  %v1439 = vsel %vm1436, %v1310, %v1353
  %v1440 = vsel %vm1436, %v1311, %v1355
  %v1441 = vsel %vm1436, %v1312, %v1357
  %v1442 = vsel %vm1436, %v1313, %v1359
  %v1443 = vsel %vm1436, %v1314, %v1361
  %v1444 = vsel %vm1436, %v1315, %v1363
  %v1445 = vsel %vm84, %v1437, %v1381
  %v1446 = vsel %vm84, %v1438, %v1383
  %v1447 = vsel %vm84, %v1439, %v1385
  %v1448 = vsel %vm84, %v1440, %v1387
  %v1449 = vsel %vm84, %v1441, %v1389
  %v1450 = vsel %vm84, %v1442, %v1391
  %v1451 = vsel %vm84, %v1443, %v1393
  %v1452 = vsel %vm84, %v1444, %v1395
  %vm1453 = vcmask 195584
  %v1454 = vsel %vm1453, %v1445, %v1413
  %v1455 = vsel %vm1453, %v1446, %v1415
  %v1456 = vsel %vm1453, %v1447, %v1417
  %v1457 = vsel %vm1453, %v1448, %v1419
  %v1458 = vsel %vm1453, %v1449, %v1421
  %v1459 = vsel %vm1453, %v1450, %v1423
  %v1460 = vsel %vm1453, %v1451, %v1425
  %v1461 = vsel %vm1453, %v1452, %v1427
  %v1462 = vld [vmem:[%s3] sm:$0x1]
  %v1464 = vlaneseq
  %v1465 = vshrl.u32 %v1464, 7
  %v1466 = vsub.s32 0, %v1465
  %v1467 = vrot.slane %v1462, %v1466
  %v1469 = vadd.f32 %v1454, %v1467
  %v1470 = vadd.f32 %v1455, %v1467
  %v1471 = vadd.f32 %v1456, %v1467
  %v1472 = vadd.f32 %v1457, %v1467
  %v1473 = vadd.f32 %v1458, %v1467
  %v1474 = vadd.f32 %v1459, %v1467
  %v1475 = vadd.f32 %v1460, %v1467
  %v1476 = vadd.f32 %v1461, %v1467
  %v1477 = vmax.f32 %v1469, 0.0
  %v1478 = vmax.f32 %v1470, 0.0
  %v1479 = vmax.f32 %v1471, 0.0
  %v1480 = vmax.f32 %v1472, 0.0
  %v1481 = vmax.f32 %v1473, 0.0
  %v1482 = vmax.f32 %v1474, 0.0
  %v1483 = vmax.f32 %v1475, 0.0
  %v1484 = vmax.f32 %v1476, 0.0
  %v1485 = vpack.c.bf16 %v1478, %v1477
  %v1486 = vpack.c.bf16 %v1480, %v1479
  %v1487 = vpack.c.bf16 %v1482, %v1481
  %v1488 = vpack.c.bf16 %v1484, %v1483
  %v1489 = vld [vmem:[%s4] sm:$0xf]
  %v1490 = vld [vmem:[%s4 + $0x4] sm:$0xf]
  %v1491 = vld [vmem:[%s4 + $0x8] sm:$0xf]
  %v1492 = vld [vmem:[%s4 + $0xc] sm:$0xf]
  %v1497 = vunpack.c.l.b16 %v1489
  %v1498 = vunpack.c.l.b16 %v1490
  %v1499 = vunpack.c.l.b16 %v1491
  %v1500 = vunpack.c.l.b16 %v1492
  %v1501 = vpack.c.b16 %v1498, %v1497
  %v1502 = vpack.c.b16 %v1500, %v1499
  %vm1505 = vcmask 261120
  %v1507 = vsel %vm1505, %v1485, 0
  %v1510 = vsel %vm1505, %v1486, 0
  %v1513 = vsel %vm1505, %v1487, 0
  %v1516 = vsel %vm1505, %v1488, 0
  %1518 = vmatprep.subr.bf16.mxu0 0
  %1519 = vmatpush1.bf16.msra.mxu0 0
  %1520 = vmatprep.subr.bf16.mxu0 0
  %1521 = vmatpush1.bf16.msra.mxu0 0
  %1522 = vmatprep.subr.bf16.mxu0 0
  %1523 = vmatpush1.bf16.msra.mxu0 0
  %1524 = vmatprep.subr.bf16.mxu0 0
  %1525 = vmatpush1.bf16.msra.mxu0 0
  %1526 = vmatprep.subr.bf16.mxu0 0
  %1527 = vmatpush1.bf16.msra.mxu0 0
  %1528 = vmatprep.subr.bf16.mxu0 0
  %1529 = vmatpush1.bf16.msra.mxu0 0
  %1530 = vmatprep.subr.bf16.mxu0 0
  %1531 = vmatpush1.bf16.msra.mxu0 %v1502
  %1532 = vmatprep.subr.bf16.mxu0 0
  %1533 = vmatpush1.bf16.msra.mxu0 %v1501
  %1534 = vmatprep.subr.bf16.mxu0 0
  %1535 = vmatpush2.bf16.msra.mxu0 0
  %1536 = vmatprep.subr.bf16.mxu0 0
  %1537 = vmatpush2.bf16.msra.mxu0 0
  %1538 = vmatprep.subr.bf16.mxu0 0
  %1539 = vmatpush2.bf16.msra.mxu0 0
  %1540 = vmatprep.subr.bf16.mxu0 0
  %1541 = vmatpush2.bf16.msra.mxu0 0
  %1542 = vmatprep.subr.bf16.mxu0 0
  %1543 = vmatpush2.bf16.msra.mxu0 0
  %1544 = vmatprep.subr.bf16.mxu0 0
  %1545 = vmatpush2.bf16.msra.mxu0 0
  %1546 = vmatprep.subr.bf16.mxu0 0
  %1547 = vmatpush2.bf16.msra.mxu0 0
  %1548 = vmatprep.subr.bf16.mxu0 0
  %1549 = vmatpush2.bf16.msra.mxu0 0
  %1550 = vmatprep.mubr.bf16.mxu0 0
  %1551 = vmatmul.mubr.bf16.gmra.mxu0 %v1507
  %v1552 = vpop.f32.mrf.mxu0
  %v1553 = vadd.f32 0.0, %v1552
  %v1554 = vpop.f32.mrf.mxu0
  %v1555 = vpop.f32.mrf.mxu0
  %v1556 = vadd.f32 0.0, %v1555
  %v1557 = vpop.f32.mrf.mxu0
  %1558 = vmatprep.mubr.bf16.mxu0 0
  %1559 = vmatmul.mubr.bf16.gmra.mxu0 %v1510
  %v1560 = vpop.f32.mrf.mxu0
  %v1561 = vadd.f32 0.0, %v1560
  %v1562 = vpop.f32.mrf.mxu0
  %v1563 = vpop.f32.mrf.mxu0
  %v1564 = vadd.f32 0.0, %v1563
  %v1565 = vpop.f32.mrf.mxu0
  %1566 = vmatprep.mubr.bf16.mxu0 0
  %1567 = vmatmul.mubr.bf16.gmra.mxu0 %v1513
  %v1568 = vpop.f32.mrf.mxu0
  %v1569 = vadd.f32 0.0, %v1568
  %v1570 = vpop.f32.mrf.mxu0
  %v1571 = vpop.f32.mrf.mxu0
  %v1572 = vadd.f32 0.0, %v1571
  %v1573 = vpop.f32.mrf.mxu0
  %1574 = vmatprep.mubr.bf16.mxu0 0
  %1575 = vmatmul.mubr.bf16.gmra.mxu0 %v1516
  %v1576 = vpop.f32.mrf.mxu0
  %v1577 = vadd.f32 0.0, %v1576
  %v1578 = vpop.f32.mrf.mxu0
  %v1579 = vpop.f32.mrf.mxu0
  %v1580 = vadd.f32 0.0, %v1579
  %v1581 = vpop.f32.mrf.mxu0
  %1582 = vdwg.mxu0
  %1591 = vrot.lane.b32.xlu0 %v1553, 127
  %v1592 = vpop.permute.xlu0 %1591
  %1593 = vrot.lane.b32.xlu0 %v1556, 127
  %v1594 = vpop.permute.xlu0 %1593
  %1595 = vrot.lane.b32.xlu0 %v1561, 127
  %v1596 = vpop.permute.xlu0 %1595
  %1597 = vrot.lane.b32.xlu0 %v1564, 127
  %v1598 = vpop.permute.xlu0 %1597
  %1599 = vrot.lane.b32.xlu0 %v1569, 127
  %v1600 = vpop.permute.xlu0 %1599
  %1601 = vrot.lane.b32.xlu0 %v1572, 127
  %v1602 = vpop.permute.xlu0 %1601
  %1603 = vrot.lane.b32.xlu0 %v1577, 127
  %v1604 = vpop.permute.xlu0 %1603
  %1605 = vrot.lane.b32.xlu0 %v1580, 127
  %v1606 = vpop.permute.xlu0 %1605
  %1607 = vrot.lane.b32.xlu0 %v1553, 126
  %v1608 = vpop.permute.xlu0 %1607
  %1609 = vrot.lane.b32.xlu0 %v1556, 126
  %v1610 = vpop.permute.xlu0 %1609
  %1611 = vrot.lane.b32.xlu0 %v1561, 126
  %v1612 = vpop.permute.xlu0 %1611
  %1613 = vrot.lane.b32.xlu0 %v1564, 126
  %v1614 = vpop.permute.xlu0 %1613
  %1615 = vrot.lane.b32.xlu0 %v1569, 126
  %v1616 = vpop.permute.xlu0 %1615
  %1617 = vrot.lane.b32.xlu0 %v1572, 126
  %v1618 = vpop.permute.xlu0 %1617
  %1619 = vrot.lane.b32.xlu0 %v1577, 126
  %v1620 = vpop.permute.xlu0 %1619
  %1621 = vrot.lane.b32.xlu0 %v1580, 126
  %v1622 = vpop.permute.xlu0 %1621
  %1623 = vrot.lane.b32.xlu0 %v1553, 125
  %v1624 = vpop.permute.xlu0 %1623
  %1625 = vrot.lane.b32.xlu0 %v1556, 125
  %v1626 = vpop.permute.xlu0 %1625
  %1627 = vrot.lane.b32.xlu0 %v1561, 125
  %v1628 = vpop.permute.xlu0 %1627
  %1629 = vrot.lane.b32.xlu0 %v1564, 125
  %v1630 = vpop.permute.xlu0 %1629
  %1631 = vrot.lane.b32.xlu0 %v1569, 125
  %v1632 = vpop.permute.xlu0 %1631
  %1633 = vrot.lane.b32.xlu0 %v1572, 125
  %v1634 = vpop.permute.xlu0 %1633
  %1635 = vrot.lane.b32.xlu0 %v1577, 125
  %v1636 = vpop.permute.xlu0 %1635
  %1637 = vrot.lane.b32.xlu0 %v1580, 125
  %v1638 = vpop.permute.xlu0 %1637
  %1639 = vrot.lane.b32.xlu0 %v1553, 92
  %v1640 = vpop.permute.xlu0 %1639
  %1641 = vrot.lane.b32.xlu0 %v1556, 92
  %v1642 = vpop.permute.xlu0 %1641
  %1643 = vrot.lane.b32.xlu0 %v1561, 92
  %v1644 = vpop.permute.xlu0 %1643
  %1645 = vrot.lane.b32.xlu0 %v1564, 92
  %v1646 = vpop.permute.xlu0 %1645
  %1647 = vrot.lane.b32.xlu0 %v1569, 92
  %v1648 = vpop.permute.xlu0 %1647
  %1649 = vrot.lane.b32.xlu0 %v1572, 92
  %v1650 = vpop.permute.xlu0 %1649
  %1651 = vrot.lane.b32.xlu0 %v1577, 92
  %v1652 = vpop.permute.xlu0 %1651
  %1653 = vrot.lane.b32.xlu0 %v1580, 92
  %v1654 = vpop.permute.xlu0 %1653
  %1663 = vxpose.xlu0.b32.start [1/16] %v1640, 128
  %1664 = vxpose.xlu0.b32.cont [2/16] %v1642, 128
  %1665 = vxpose.xlu0.b32.cont [3/16] %v1644, 128
  %1666 = vxpose.xlu0.b32.cont [4/16] %v1646, 128
  %1667 = vxpose.xlu0.b32.cont [5/16] %v1648, 128
  %1668 = vxpose.xlu0.b32.cont [6/16] %v1650, 128
  %1669 = vxpose.xlu0.b32.cont [7/16] %v1652, 128
  %1670 = vxpose.xlu0.b32.cont [8/16] %v1654, 128
  %1671 = vxpose.xlu0.b32.cont [9/16] 0.0, 128
  %1672 = vxpose.xlu0.b32.cont [10/16] 0.0, 128
  %1673 = vxpose.xlu0.b32.cont [11/16] 0.0, 128
  %1674 = vxpose.xlu0.b32.cont [12/16] 0.0, 128
  %1675 = vxpose.xlu0.b32.cont [13/16] 0.0, 128
  %1676 = vxpose.xlu0.b32.cont [14/16] 0.0, 128
  %1677 = vxpose.xlu0.b32.cont [15/16] 0.0, 128
  %1678 = vxpose.xlu0.b32.end [16/16] 0.0, 128
  %v1679 = vpop.trf.xlu0
  %v1680 = vpop.trf.xlu0
  %v1681 = vpop.trf.xlu0
  %v1682 = vpop.trf.xlu0
  %v1683 = vpop.trf.xlu0
  %v1684 = vpop.trf.xlu0
  %v1685 = vpop.trf.xlu0
  %v1686 = vpop.trf.xlu0
  %v1687 = vpop.trf.xlu0
  %v1688 = vpop.trf.xlu0
  %v1689 = vpop.trf.xlu0
  %v1690 = vpop.trf.xlu0
  %v1691 = vpop.trf.xlu0
  %v1692 = vpop.trf.xlu0
  %v1693 = vpop.trf.xlu0
  %v1694 = vpop.trf.xlu0
  %v1697 = vunpack.c.l.s4 1966171168
  %v1698 = vunpack.c.0.s8 %v1697
  %v1699 = vlaneseq
  %v1700 = vshrl.u32 %v1699, 7
  %v1701 = vsub.s32 %v1698, %v1700
  %v1702 = vrot.slane %v1679, %v1701
  %v1703 = vcombine.high %v1702, %v1702
  %v1705 = vunpack.c.l.s4 1966171168
  %v1706 = vunpack.c.0.s8 %v1705
  %v1707 = vlaneseq
  %v1708 = vshrl.u32 %v1707, 7
  %v1709 = vsub.s32 %v1706, %v1708
  %v1710 = vrot.slane %v1702, %v1709
  %v1712 = vunpack.c.l.s4 1966171168
  %v1713 = vunpack.c.0.s8 %v1712
  %v1714 = vlaneseq
  %v1715 = vshrl.u32 %v1714, 7
  %v1716 = vsub.s32 %v1713, %v1715
  %v1717 = vrot.slane %v1703, %v1716
  %v1718 = vcombine.high %v1710, %v1710
  %v1719 = vcombine.high %v1717, %v1717
  %1720 = vset.pattern.permute.xlu0 32
  %1721 = vperm.xlu0 %1720, %v1553
  %v1722 = vpop.permute.xlu0 %1721
  %1724 = vset.pattern.permute.xlu0 32
  %1725 = vperm.xlu0 %1724, %v1556
  %v1726 = vpop.permute.xlu0 %1725
  %1728 = vset.pattern.permute.xlu0 32
  %1729 = vperm.xlu0 %1728, %v1561
  %v1730 = vpop.permute.xlu0 %1729
  %1732 = vset.pattern.permute.xlu0 32
  %1733 = vperm.xlu0 %1732, %v1564
  %v1734 = vpop.permute.xlu0 %1733
  %1736 = vset.pattern.permute.xlu0 32
  %1737 = vperm.xlu0 %1736, %v1569
  %v1738 = vpop.permute.xlu0 %1737
  %1740 = vset.pattern.permute.xlu0 32
  %1741 = vperm.xlu0 %1740, %v1572
  %v1742 = vpop.permute.xlu0 %1741
  %1744 = vset.pattern.permute.xlu0 32
  %1745 = vperm.xlu0 %1744, %v1577
  %v1746 = vpop.permute.xlu0 %1745
  %1748 = vset.pattern.permute.xlu0 32
  %1749 = vperm.xlu0 %1748, %v1580
  %v1750 = vpop.permute.xlu0 %1749
  %1752 = vset.pattern.permute.xlu0 32
  %1753 = vperm.xlu0 %1752, %v1592
  %v1754 = vpop.permute.xlu0 %1753
  %1756 = vset.pattern.permute.xlu0 32
  %1757 = vperm.xlu0 %1756, %v1594
  %v1758 = vpop.permute.xlu0 %1757
  %1760 = vset.pattern.permute.xlu0 32
  %1761 = vperm.xlu0 %1760, %v1596
  %v1762 = vpop.permute.xlu0 %1761
  %1764 = vset.pattern.permute.xlu0 32
  %1765 = vperm.xlu0 %1764, %v1598
  %v1766 = vpop.permute.xlu0 %1765
  %1768 = vset.pattern.permute.xlu0 32
  %1769 = vperm.xlu0 %1768, %v1600
  %v1770 = vpop.permute.xlu0 %1769
  %1772 = vset.pattern.permute.xlu0 32
  %1773 = vperm.xlu0 %1772, %v1602
  %v1774 = vpop.permute.xlu0 %1773
  %1776 = vset.pattern.permute.xlu0 32
  %1777 = vperm.xlu0 %1776, %v1604
  %v1778 = vpop.permute.xlu0 %1777
  %1780 = vset.pattern.permute.xlu0 32
  %1781 = vperm.xlu0 %1780, %v1606
  %v1782 = vpop.permute.xlu0 %1781
  %1784 = vset.pattern.permute.xlu0 32
  %1785 = vperm.xlu0 %1784, %v1608
  %v1786 = vpop.permute.xlu0 %1785
  %1788 = vset.pattern.permute.xlu0 32
  %1789 = vperm.xlu0 %1788, %v1610
  %v1790 = vpop.permute.xlu0 %1789
  %1792 = vset.pattern.permute.xlu0 32
  %1793 = vperm.xlu0 %1792, %v1612
  %v1794 = vpop.permute.xlu0 %1793
  %1796 = vset.pattern.permute.xlu0 32
  %1797 = vperm.xlu0 %1796, %v1614
  %v1798 = vpop.permute.xlu0 %1797
  %1800 = vset.pattern.permute.xlu0 32
  %1801 = vperm.xlu0 %1800, %v1616
  %v1802 = vpop.permute.xlu0 %1801
  %1804 = vset.pattern.permute.xlu0 32
  %1805 = vperm.xlu0 %1804, %v1618
  %v1806 = vpop.permute.xlu0 %1805
  %1808 = vset.pattern.permute.xlu0 32
  %1809 = vperm.xlu0 %1808, %v1620
  %v1810 = vpop.permute.xlu0 %1809
  %1812 = vset.pattern.permute.xlu0 32
  %1813 = vperm.xlu0 %1812, %v1622
  %v1814 = vpop.permute.xlu0 %1813
  %1816 = vset.pattern.permute.xlu0 32
  %1817 = vperm.xlu0 %1816, %v1624
  %v1818 = vpop.permute.xlu0 %1817
  %1820 = vset.pattern.permute.xlu0 32
  %1821 = vperm.xlu0 %1820, %v1626
  %v1822 = vpop.permute.xlu0 %1821
  %1824 = vset.pattern.permute.xlu0 32
  %1825 = vperm.xlu0 %1824, %v1628
  %v1826 = vpop.permute.xlu0 %1825
  %1828 = vset.pattern.permute.xlu0 32
  %1829 = vperm.xlu0 %1828, %v1630
  %v1830 = vpop.permute.xlu0 %1829
  %1832 = vset.pattern.permute.xlu0 32
  %1833 = vperm.xlu0 %1832, %v1632
  %v1834 = vpop.permute.xlu0 %1833
  %1836 = vset.pattern.permute.xlu0 32
  %1837 = vperm.xlu0 %1836, %v1634
  %v1838 = vpop.permute.xlu0 %1837
  %1840 = vset.pattern.permute.xlu0 32
  %1841 = vperm.xlu0 %1840, %v1636
  %v1842 = vpop.permute.xlu0 %1841
  %1844 = vset.pattern.permute.xlu0 32
  %1845 = vperm.xlu0 %1844, %v1638
  %v1846 = vpop.permute.xlu0 %1845
  %v1848 = vlaneseq
  %v1849 = vshrl.u32 %v1848, 7
  %v1850 = vsub.s32 0, %v1849
  %v1851 = vrot.slane %v1710, %v1850
  %v1852 = vlaneseq
  %v1853 = vshrl.u32 %v1852, 7
  %v1854 = vsub.s32 0, %v1853
  %v1855 = vrot.slane %v1717, %v1854
  %v1856 = vlaneseq
  %v1857 = vshrl.u32 %v1856, 7
  %v1858 = vsub.s32 0, %v1857
  %v1859 = vrot.slane %v1718, %v1858
  %v1860 = vlaneseq
  %v1861 = vshrl.u32 %v1860, 7
  %v1862 = vsub.s32 0, %v1861
  %v1863 = vrot.slane %v1719, %v1862
  %v1868 = vadd.f32 %v1722, %v1851
  %v1869 = vadd.f32 %v1726, %v1851
  %v1870 = vadd.f32 %v1730, %v1851
  %v1871 = vadd.f32 %v1734, %v1851
  %v1872 = vadd.f32 %v1738, %v1851
  %v1873 = vadd.f32 %v1742, %v1851
  %v1874 = vadd.f32 %v1746, %v1851
  %v1875 = vadd.f32 %v1750, %v1851
  %v1876 = vadd.f32 %v1754, %v1855
  %v1877 = vadd.f32 %v1758, %v1855
  %v1878 = vadd.f32 %v1762, %v1855
  %v1879 = vadd.f32 %v1766, %v1855
  %v1880 = vadd.f32 %v1770, %v1855
  %v1881 = vadd.f32 %v1774, %v1855
  %v1882 = vadd.f32 %v1778, %v1855
  %v1883 = vadd.f32 %v1782, %v1855
  %v1884 = vadd.f32 %v1786, %v1859
  %v1885 = vadd.f32 %v1790, %v1859
  %v1886 = vadd.f32 %v1794, %v1859
  %v1887 = vadd.f32 %v1798, %v1859
  %v1888 = vadd.f32 %v1802, %v1859
  %v1889 = vadd.f32 %v1806, %v1859
  %v1890 = vadd.f32 %v1810, %v1859
  %v1891 = vadd.f32 %v1814, %v1859
  %v1892 = vadd.f32 %v1818, %v1863
  %v1893 = vadd.f32 %v1822, %v1863
  %v1894 = vadd.f32 %v1826, %v1863
  %v1895 = vadd.f32 %v1830, %v1863
  %v1896 = vadd.f32 %v1834, %v1863
  %v1897 = vadd.f32 %v1838, %v1863
  %v1898 = vadd.f32 %v1842, %v1863
  %v1899 = vadd.f32 %v1846, %v1863
  %v1900 = vmul.f32 %v1868, 0.2
  %v1901 = vmul.f32 %v1869, 0.2
  %v1902 = vmul.f32 %v1870, 0.2
  %v1903 = vmul.f32 %v1871, 0.2
  %v1904 = vmul.f32 %v1872, 0.2
  %v1905 = vmul.f32 %v1873, 0.2
  %v1906 = vmul.f32 %v1874, 0.2
  %v1907 = vmul.f32 %v1875, 0.2
  %v1908 = vmul.f32 %v1876, 0.2
  %v1909 = vmul.f32 %v1877, 0.2
  %v1910 = vmul.f32 %v1878, 0.2
  %v1911 = vmul.f32 %v1879, 0.2
  %v1912 = vmul.f32 %v1880, 0.2
  %v1913 = vmul.f32 %v1881, 0.2
  %v1914 = vmul.f32 %v1882, 0.2
  %v1915 = vmul.f32 %v1883, 0.2
  %v1916 = vmul.f32 %v1884, 0.2
  %v1917 = vmul.f32 %v1885, 0.2
  %v1918 = vmul.f32 %v1886, 0.2
  %v1919 = vmul.f32 %v1887, 0.2
  %v1920 = vmul.f32 %v1888, 0.2
  %v1921 = vmul.f32 %v1889, 0.2
  %v1922 = vmul.f32 %v1890, 0.2
  %v1923 = vmul.f32 %v1891, 0.2
  %v1924 = vmul.f32 %v1892, 0.2
  %v1925 = vmul.f32 %v1893, 0.2
  %v1926 = vmul.f32 %v1894, 0.2
  %v1927 = vmul.f32 %v1895, 0.2
  %v1928 = vmul.f32 %v1896, 0.2
  %v1929 = vmul.f32 %v1897, 0.2
  %v1930 = vmul.f32 %v1898, 0.2
  %v1931 = vmul.f32 %v1899, 0.2
  %v1932 = vmax.f32 %v1868, %v1900
  %v1933 = vmax.f32 %v1869, %v1901
  %v1934 = vmax.f32 %v1870, %v1902
  %v1935 = vmax.f32 %v1871, %v1903
  %v1936 = vmax.f32 %v1872, %v1904
  %v1937 = vmax.f32 %v1873, %v1905
  %v1938 = vmax.f32 %v1874, %v1906
  %v1939 = vmax.f32 %v1875, %v1907
  %v1940 = vmax.f32 %v1876, %v1908
  %v1941 = vmax.f32 %v1877, %v1909
  %v1942 = vmax.f32 %v1878, %v1910
  %v1943 = vmax.f32 %v1879, %v1911
  %v1944 = vmax.f32 %v1880, %v1912
  %v1945 = vmax.f32 %v1881, %v1913
  %v1946 = vmax.f32 %v1882, %v1914
  %v1947 = vmax.f32 %v1883, %v1915
  %v1948 = vmax.f32 %v1884, %v1916
  %v1949 = vmax.f32 %v1885, %v1917
  %v1950 = vmax.f32 %v1886, %v1918
  %v1951 = vmax.f32 %v1887, %v1919
  %v1952 = vmax.f32 %v1888, %v1920
  %v1953 = vmax.f32 %v1889, %v1921
  %v1954 = vmax.f32 %v1890, %v1922
  %v1955 = vmax.f32 %v1891, %v1923
  %v1956 = vmax.f32 %v1892, %v1924
  %v1957 = vmax.f32 %v1893, %v1925
  %v1958 = vmax.f32 %v1894, %v1926
  %v1959 = vmax.f32 %v1895, %v1927
  %v1960 = vmax.f32 %v1896, %v1928
  %v1961 = vmax.f32 %v1897, %v1929
  %v1962 = vmax.f32 %v1898, %v1930
  %v1963 = vmax.f32 %v1899, %v1931
  %v1964 = vadd.f32 %v1932, %v56
  %v1965 = vadd.f32 %v1933, %v57
  %v1966 = vadd.f32 %v1934, %v58
  %v1967 = vadd.f32 %v1935, %v59
  %v1968 = vadd.f32 %v1936, %v60
  %v1969 = vadd.f32 %v1937, %v61
  %v1970 = vadd.f32 %v1938, %v62
  %v1971 = vadd.f32 %v1939, %v63
  %v1972 = vadd.f32 %v1940, %v56
  %v1973 = vadd.f32 %v1941, %v57
  %v1974 = vadd.f32 %v1942, %v58
  %v1975 = vadd.f32 %v1943, %v59
  %v1976 = vadd.f32 %v1944, %v60
  %v1977 = vadd.f32 %v1945, %v61
  %v1978 = vadd.f32 %v1946, %v62
  %v1979 = vadd.f32 %v1947, %v63
  %v1980 = vadd.f32 %v1948, %v56
  %v1981 = vadd.f32 %v1949, %v57
  %v1982 = vadd.f32 %v1950, %v58
  %v1983 = vadd.f32 %v1951, %v59
  %v1984 = vadd.f32 %v1952, %v60
  %v1985 = vadd.f32 %v1953, %v61
  %v1986 = vadd.f32 %v1954, %v62
  %v1987 = vadd.f32 %v1955, %v63
  %v1988 = vadd.f32 %v1956, %v56
  %v1989 = vadd.f32 %v1957, %v57
  %v1990 = vadd.f32 %v1958, %v58
  %v1991 = vadd.f32 %v1959, %v59
  %v1992 = vadd.f32 %v1960, %v60
  %v1993 = vadd.f32 %v1961, %v61
  %v1994 = vadd.f32 %v1962, %v62
  %v1995 = vadd.f32 %v1963, %v63
  %v1996 = vsel %vm575, %v1964, -inf
  %1997 = vmax.xlane.f32.xlu0 %v1996
  %v1998 = vpop.xlane.xlu0 %1997
  %v1999 = vsel %vm575, %v1965, -inf
  %2000 = vmax.xlane.f32.xlu0 %v1999
  %v2001 = vpop.xlane.xlu0 %2000
  %v2002 = vsel %vm575, %v1966, -inf
  %2003 = vmax.xlane.f32.xlu0 %v2002
  %v2004 = vpop.xlane.xlu0 %2003
  %v2005 = vsel %vm575, %v1967, -inf
  %2006 = vmax.xlane.f32.xlu0 %v2005
  %v2007 = vpop.xlane.xlu0 %2006
  %v2008 = vsel %vm575, %v1968, -inf
  %2009 = vmax.xlane.f32.xlu0 %v2008
  %v2010 = vpop.xlane.xlu0 %2009
  %v2011 = vsel %vm575, %v1969, -inf
  %2012 = vmax.xlane.f32.xlu0 %v2011
  %v2013 = vpop.xlane.xlu0 %2012
  %v2014 = vsel %vm575, %v1970, -inf
  %2015 = vmax.xlane.f32.xlu0 %v2014
  %v2016 = vpop.xlane.xlu0 %2015
  %v2017 = vsel %vm575, %v1971, -inf
  %2018 = vmax.xlane.f32.xlu0 %v2017
  %v2019 = vpop.xlane.xlu0 %2018
  %v2020 = vsel %vm575, %v1972, -inf
  %2021 = vmax.xlane.f32.xlu0 %v2020
  %v2022 = vpop.xlane.xlu0 %2021
  %v2023 = vsel %vm575, %v1973, -inf
  %2024 = vmax.xlane.f32.xlu0 %v2023
  %v2025 = vpop.xlane.xlu0 %2024
  %v2026 = vsel %vm575, %v1974, -inf
  %2027 = vmax.xlane.f32.xlu0 %v2026
  %v2028 = vpop.xlane.xlu0 %2027
  %v2029 = vsel %vm575, %v1975, -inf
  %2030 = vmax.xlane.f32.xlu0 %v2029
  %v2031 = vpop.xlane.xlu0 %2030
  %v2032 = vsel %vm575, %v1976, -inf
  %2033 = vmax.xlane.f32.xlu0 %v2032
  %v2034 = vpop.xlane.xlu0 %2033
  %v2035 = vsel %vm575, %v1977, -inf
  %2036 = vmax.xlane.f32.xlu0 %v2035
  %v2037 = vpop.xlane.xlu0 %2036
  %v2038 = vsel %vm575, %v1978, -inf
  %2039 = vmax.xlane.f32.xlu0 %v2038
  %v2040 = vpop.xlane.xlu0 %2039
  %v2041 = vsel %vm575, %v1979, -inf
  %2042 = vmax.xlane.f32.xlu0 %v2041
  %v2043 = vpop.xlane.xlu0 %2042
  %v2044 = vsel %vm575, %v1980, -inf
  %2045 = vmax.xlane.f32.xlu0 %v2044
  %v2046 = vpop.xlane.xlu0 %2045
  %v2047 = vsel %vm575, %v1981, -inf
  %2048 = vmax.xlane.f32.xlu0 %v2047
  %v2049 = vpop.xlane.xlu0 %2048
  %v2050 = vsel %vm575, %v1982, -inf
  %2051 = vmax.xlane.f32.xlu0 %v2050
  %v2052 = vpop.xlane.xlu0 %2051
  %v2053 = vsel %vm575, %v1983, -inf
  %2054 = vmax.xlane.f32.xlu0 %v2053
  %v2055 = vpop.xlane.xlu0 %2054
  %v2056 = vsel %vm575, %v1984, -inf
  %2057 = vmax.xlane.f32.xlu0 %v2056
  %v2058 = vpop.xlane.xlu0 %2057
  %v2059 = vsel %vm575, %v1985, -inf
  %2060 = vmax.xlane.f32.xlu0 %v2059
  %v2061 = vpop.xlane.xlu0 %2060
  %v2062 = vsel %vm575, %v1986, -inf
  %2063 = vmax.xlane.f32.xlu0 %v2062
  %v2064 = vpop.xlane.xlu0 %2063
  %v2065 = vsel %vm575, %v1987, -inf
  %2066 = vmax.xlane.f32.xlu0 %v2065
  %v2067 = vpop.xlane.xlu0 %2066
  %v2068 = vsel %vm575, %v1988, -inf
  %2069 = vmax.xlane.f32.xlu0 %v2068
  %v2070 = vpop.xlane.xlu0 %2069
  %v2071 = vsel %vm575, %v1989, -inf
  %2072 = vmax.xlane.f32.xlu0 %v2071
  %v2073 = vpop.xlane.xlu0 %2072
  %v2074 = vsel %vm575, %v1990, -inf
  %2075 = vmax.xlane.f32.xlu0 %v2074
  %v2076 = vpop.xlane.xlu0 %2075
  %v2077 = vsel %vm575, %v1991, -inf
  %2078 = vmax.xlane.f32.xlu0 %v2077
  %v2079 = vpop.xlane.xlu0 %2078
  %v2080 = vsel %vm575, %v1992, -inf
  %2081 = vmax.xlane.f32.xlu0 %v2080
  %v2082 = vpop.xlane.xlu0 %2081
  %v2083 = vsel %vm575, %v1993, -inf
  %2084 = vmax.xlane.f32.xlu0 %v2083
  %v2085 = vpop.xlane.xlu0 %2084
  %v2086 = vsel %vm575, %v1994, -inf
  %2087 = vmax.xlane.f32.xlu0 %v2086
  %v2088 = vpop.xlane.xlu0 %2087
  %v2089 = vsel %vm575, %v1995, -inf
  %2090 = vmax.xlane.f32.xlu0 %v2089
  %v2091 = vpop.xlane.xlu0 %2090
  %v2092 = vsub.f32 %v1964, %v1998
  %v2093 = vsub.f32 %v1965, %v2001
  %v2094 = vsub.f32 %v1966, %v2004
  %v2095 = vsub.f32 %v1967, %v2007
  %v2096 = vsub.f32 %v1968, %v2010
  %v2097 = vsub.f32 %v1969, %v2013
  %v2098 = vsub.f32 %v1970, %v2016
  %v2099 = vsub.f32 %v1971, %v2019
  %v2100 = vsub.f32 %v1972, %v2022
  %v2101 = vsub.f32 %v1973, %v2025
  %v2102 = vsub.f32 %v1974, %v2028
  %v2103 = vsub.f32 %v1975, %v2031
  %v2104 = vsub.f32 %v1976, %v2034
  %v2105 = vsub.f32 %v1977, %v2037
  %v2106 = vsub.f32 %v1978, %v2040
  %v2107 = vsub.f32 %v1979, %v2043
  %v2108 = vsub.f32 %v1980, %v2046
  %v2109 = vsub.f32 %v1981, %v2049
  %v2110 = vsub.f32 %v1982, %v2052
  %v2111 = vsub.f32 %v1983, %v2055
  %v2112 = vsub.f32 %v1984, %v2058
  %v2113 = vsub.f32 %v1985, %v2061
  %v2114 = vsub.f32 %v1986, %v2064
  %v2115 = vsub.f32 %v1987, %v2067
  %v2116 = vsub.f32 %v1988, %v2070
  %v2117 = vsub.f32 %v1989, %v2073
  %v2118 = vsub.f32 %v1990, %v2076
  %v2119 = vsub.f32 %v1991, %v2079
  %v2120 = vsub.f32 %v1992, %v2082
  %v2121 = vsub.f32 %v1993, %v2085
  %v2122 = vsub.f32 %v1994, %v2088
  %v2123 = vsub.f32 %v1995, %v2091
  %v2124 = vmul.f32 %v2092, 1.442695
  %v2125 = vpow.pop %v2124
  %v2126 = vmul.f32 %v2093, 1.442695
  %v2127 = vpow.pop %v2126
  %v2128 = vmul.f32 %v2094, 1.442695
  %v2129 = vpow.pop %v2128
  %v2130 = vmul.f32 %v2095, 1.442695
  %v2131 = vpow.pop %v2130
  %v2132 = vmul.f32 %v2096, 1.442695
  %v2133 = vpow.pop %v2132
  %v2134 = vmul.f32 %v2097, 1.442695
  %v2135 = vpow.pop %v2134
  %v2136 = vmul.f32 %v2098, 1.442695
  %v2137 = vpow.pop %v2136
  %v2138 = vmul.f32 %v2099, 1.442695
  %v2139 = vpow.pop %v2138
  %v2140 = vmul.f32 %v2100, 1.442695
  %v2141 = vpow.pop %v2140
  %v2142 = vmul.f32 %v2101, 1.442695
  %v2143 = vpow.pop %v2142
  %v2144 = vmul.f32 %v2102, 1.442695
  %v2145 = vpow.pop %v2144
  %v2146 = vmul.f32 %v2103, 1.442695
  %v2147 = vpow.pop %v2146
  %v2148 = vmul.f32 %v2104, 1.442695
  %v2149 = vpow.pop %v2148
  %v2150 = vmul.f32 %v2105, 1.442695
  %v2151 = vpow.pop %v2150
  %v2152 = vmul.f32 %v2106, 1.442695
  %v2153 = vpow.pop %v2152
  %v2154 = vmul.f32 %v2107, 1.442695
  %v2155 = vpow.pop %v2154
  %v2156 = vmul.f32 %v2108, 1.442695
  %v2157 = vpow.pop %v2156
  %v2158 = vmul.f32 %v2109, 1.442695
  %v2159 = vpow.pop %v2158
  %v2160 = vmul.f32 %v2110, 1.442695
  %v2161 = vpow.pop %v2160
  %v2162 = vmul.f32 %v2111, 1.442695
  %v2163 = vpow.pop %v2162
  %v2164 = vmul.f32 %v2112, 1.442695
  %v2165 = vpow.pop %v2164
  %v2166 = vmul.f32 %v2113, 1.442695
  %v2167 = vpow.pop %v2166
  %v2168 = vmul.f32 %v2114, 1.442695
  %v2169 = vpow.pop %v2168
  %v2170 = vmul.f32 %v2115, 1.442695
  %v2171 = vpow.pop %v2170
  %v2172 = vmul.f32 %v2116, 1.442695
  %v2173 = vpow.pop %v2172
  %v2174 = vmul.f32 %v2117, 1.442695
  %v2175 = vpow.pop %v2174
  %v2176 = vmul.f32 %v2118, 1.442695
  %v2177 = vpow.pop %v2176
  %v2178 = vmul.f32 %v2119, 1.442695
  %v2179 = vpow.pop %v2178
  %v2180 = vmul.f32 %v2120, 1.442695
  %v2181 = vpow.pop %v2180
  %v2182 = vmul.f32 %v2121, 1.442695
  %v2183 = vpow.pop %v2182
  %v2184 = vmul.f32 %v2122, 1.442695
  %v2185 = vpow.pop %v2184
  %v2186 = vmul.f32 %v2123, 1.442695
  %v2187 = vpow.pop %v2186
  %v2188 = vsel %vm575, %v2125, 0.0
  %2189 = vadd.xlane.f32.xlu0 %v2188
  %v2190 = vpop.xlane.xlu0 %2189
  %v2191 = vsel %vm575, %v2127, 0.0
  %2192 = vadd.xlane.f32.xlu0 %v2191
  %v2193 = vpop.xlane.xlu0 %2192
  %v2194 = vsel %vm575, %v2129, 0.0
  %2195 = vadd.xlane.f32.xlu0 %v2194
  %v2196 = vpop.xlane.xlu0 %2195
  %v2197 = vsel %vm575, %v2131, 0.0
  %2198 = vadd.xlane.f32.xlu0 %v2197
  %v2199 = vpop.xlane.xlu0 %2198
  %v2200 = vsel %vm575, %v2133, 0.0
  %2201 = vadd.xlane.f32.xlu0 %v2200
  %v2202 = vpop.xlane.xlu0 %2201
  %v2203 = vsel %vm575, %v2135, 0.0
  %2204 = vadd.xlane.f32.xlu0 %v2203
  %v2205 = vpop.xlane.xlu0 %2204
  %v2206 = vsel %vm575, %v2137, 0.0
  %2207 = vadd.xlane.f32.xlu0 %v2206
  %v2208 = vpop.xlane.xlu0 %2207
  %v2209 = vsel %vm575, %v2139, 0.0
  %2210 = vadd.xlane.f32.xlu0 %v2209
  %v2211 = vpop.xlane.xlu0 %2210
  %v2212 = vsel %vm575, %v2141, 0.0
  %2213 = vadd.xlane.f32.xlu0 %v2212
  %v2214 = vpop.xlane.xlu0 %2213
  %v2215 = vsel %vm575, %v2143, 0.0
  %2216 = vadd.xlane.f32.xlu0 %v2215
  %v2217 = vpop.xlane.xlu0 %2216
  %v2218 = vsel %vm575, %v2145, 0.0
  %2219 = vadd.xlane.f32.xlu0 %v2218
  %v2220 = vpop.xlane.xlu0 %2219
  %v2221 = vsel %vm575, %v2147, 0.0
  %2222 = vadd.xlane.f32.xlu0 %v2221
  %v2223 = vpop.xlane.xlu0 %2222
  %v2224 = vsel %vm575, %v2149, 0.0
  %2225 = vadd.xlane.f32.xlu0 %v2224
  %v2226 = vpop.xlane.xlu0 %2225
  %v2227 = vsel %vm575, %v2151, 0.0
  %2228 = vadd.xlane.f32.xlu0 %v2227
  %v2229 = vpop.xlane.xlu0 %2228
  %v2230 = vsel %vm575, %v2153, 0.0
  %2231 = vadd.xlane.f32.xlu0 %v2230
  %v2232 = vpop.xlane.xlu0 %2231
  %v2233 = vsel %vm575, %v2155, 0.0
  %2234 = vadd.xlane.f32.xlu0 %v2233
  %v2235 = vpop.xlane.xlu0 %2234
  %v2236 = vsel %vm575, %v2157, 0.0
  %2237 = vadd.xlane.f32.xlu0 %v2236
  %v2238 = vpop.xlane.xlu0 %2237
  %v2239 = vsel %vm575, %v2159, 0.0
  %2240 = vadd.xlane.f32.xlu0 %v2239
  %v2241 = vpop.xlane.xlu0 %2240
  %v2242 = vsel %vm575, %v2161, 0.0
  %2243 = vadd.xlane.f32.xlu0 %v2242
  %v2244 = vpop.xlane.xlu0 %2243
  %v2245 = vsel %vm575, %v2163, 0.0
  %2246 = vadd.xlane.f32.xlu0 %v2245
  %v2247 = vpop.xlane.xlu0 %2246
  %v2248 = vsel %vm575, %v2165, 0.0
  %2249 = vadd.xlane.f32.xlu0 %v2248
  %v2250 = vpop.xlane.xlu0 %2249
  %v2251 = vsel %vm575, %v2167, 0.0
  %2252 = vadd.xlane.f32.xlu0 %v2251
  %v2253 = vpop.xlane.xlu0 %2252
  %v2254 = vsel %vm575, %v2169, 0.0
  %2255 = vadd.xlane.f32.xlu0 %v2254
  %v2256 = vpop.xlane.xlu0 %2255
  %v2257 = vsel %vm575, %v2171, 0.0
  %2258 = vadd.xlane.f32.xlu0 %v2257
  %v2259 = vpop.xlane.xlu0 %2258
  %v2260 = vsel %vm575, %v2173, 0.0
  %2261 = vadd.xlane.f32.xlu0 %v2260
  %v2262 = vpop.xlane.xlu0 %2261
  %v2263 = vsel %vm575, %v2175, 0.0
  %2264 = vadd.xlane.f32.xlu0 %v2263
  %v2265 = vpop.xlane.xlu0 %2264
  %v2266 = vsel %vm575, %v2177, 0.0
  %2267 = vadd.xlane.f32.xlu0 %v2266
  %v2268 = vpop.xlane.xlu0 %2267
  %v2269 = vsel %vm575, %v2179, 0.0
  %2270 = vadd.xlane.f32.xlu0 %v2269
  %v2271 = vpop.xlane.xlu0 %2270
  %v2272 = vsel %vm575, %v2181, 0.0
  %2273 = vadd.xlane.f32.xlu0 %v2272
  %v2274 = vpop.xlane.xlu0 %2273
  %v2275 = vsel %vm575, %v2183, 0.0
  %2276 = vadd.xlane.f32.xlu0 %v2275
  %v2277 = vpop.xlane.xlu0 %2276
  %v2278 = vsel %vm575, %v2185, 0.0
  %2279 = vadd.xlane.f32.xlu0 %v2278
  %v2280 = vpop.xlane.xlu0 %2279
  %v2281 = vsel %vm575, %v2187, 0.0
  %2282 = vadd.xlane.f32.xlu0 %v2281
  %v2283 = vpop.xlane.xlu0 %2282
  %2284 = vrot.lane.b32.xlu0 %v1553, 120
  %v2285 = vpop.permute.xlu0 %2284
  %2286 = vrot.lane.b32.xlu0 %v1556, 120
  %v2287 = vpop.permute.xlu0 %2286
  %2288 = vrot.lane.b32.xlu0 %v1561, 120
  %v2289 = vpop.permute.xlu0 %2288
  %2290 = vrot.lane.b32.xlu0 %v1564, 120
  %v2291 = vpop.permute.xlu0 %2290
  %2292 = vrot.lane.b32.xlu0 %v1569, 120
  %v2293 = vpop.permute.xlu0 %2292
  %2294 = vrot.lane.b32.xlu0 %v1572, 120
  %v2295 = vpop.permute.xlu0 %2294
  %2296 = vrot.lane.b32.xlu0 %v1577, 120
  %v2297 = vpop.permute.xlu0 %2296
  %2298 = vrot.lane.b32.xlu0 %v1580, 120
  %v2299 = vpop.permute.xlu0 %2298
  %2308 = vrot.lane.b32.xlu0 %v1553, 112
  %v2309 = vpop.permute.xlu0 %2308
  %2310 = vrot.lane.b32.xlu0 %v1556, 112
  %v2311 = vpop.permute.xlu0 %2310
  %2312 = vrot.lane.b32.xlu0 %v1561, 112
  %v2313 = vpop.permute.xlu0 %2312
  %2314 = vrot.lane.b32.xlu0 %v1564, 112
  %v2315 = vpop.permute.xlu0 %2314
  %2316 = vrot.lane.b32.xlu0 %v1569, 112
  %v2317 = vpop.permute.xlu0 %2316
  %2318 = vrot.lane.b32.xlu0 %v1572, 112
  %v2319 = vpop.permute.xlu0 %2318
  %2320 = vrot.lane.b32.xlu0 %v1577, 112
  %v2321 = vpop.permute.xlu0 %2320
  %2322 = vrot.lane.b32.xlu0 %v1580, 112
  %v2323 = vpop.permute.xlu0 %2322
  %2332 = vrot.lane.b32.xlu0 %v1553, 104
  %v2333 = vpop.permute.xlu0 %2332
  %2334 = vrot.lane.b32.xlu0 %v1556, 104
  %v2335 = vpop.permute.xlu0 %2334
  %2336 = vrot.lane.b32.xlu0 %v1561, 104
  %v2337 = vpop.permute.xlu0 %2336
  %2338 = vrot.lane.b32.xlu0 %v1564, 104
  %v2339 = vpop.permute.xlu0 %2338
  %2340 = vrot.lane.b32.xlu0 %v1569, 104
  %v2341 = vpop.permute.xlu0 %2340
  %2342 = vrot.lane.b32.xlu0 %v1572, 104
  %v2343 = vpop.permute.xlu0 %2342
  %2344 = vrot.lane.b32.xlu0 %v1577, 104
  %v2345 = vpop.permute.xlu0 %2344
  %2346 = vrot.lane.b32.xlu0 %v1580, 104
  %v2347 = vpop.permute.xlu0 %2346
  %v2356 = vpack.c.bf16 %v2127, %v2125
  %v2357 = vpack.c.bf16 %v2131, %v2129
  %v2358 = vpack.c.bf16 %v2135, %v2133
  %v2359 = vpack.c.bf16 %v2139, %v2137
  %v2360 = vpack.c.bf16 %v2143, %v2141
  %v2361 = vpack.c.bf16 %v2147, %v2145
  %v2362 = vpack.c.bf16 %v2151, %v2149
  %v2363 = vpack.c.bf16 %v2155, %v2153
  %v2364 = vpack.c.bf16 %v2159, %v2157
  %v2365 = vpack.c.bf16 %v2163, %v2161
  %v2366 = vpack.c.bf16 %v2167, %v2165
  %v2367 = vpack.c.bf16 %v2171, %v2169
  %v2368 = vpack.c.bf16 %v2175, %v2173
  %v2369 = vpack.c.bf16 %v2179, %v2177
  %v2370 = vpack.c.bf16 %v2183, %v2181
  %v2371 = vpack.c.bf16 %v2187, %v2185
  %v2372 = vpack.c.bf16 %v1556, %v1553
  %v2373 = vpack.c.bf16 %v1564, %v1561
  %v2374 = vpack.c.bf16 %v1572, %v1569
  %v2375 = vpack.c.bf16 %v1580, %v1577
  %v2376 = vpack.c.bf16 %v2287, %v2285
  %v2377 = vpack.c.bf16 %v2291, %v2289
  %v2378 = vpack.c.bf16 %v2295, %v2293
  %v2379 = vpack.c.bf16 %v2299, %v2297
  %v2380 = vpack.c.bf16 %v2311, %v2309
  %v2381 = vpack.c.bf16 %v2315, %v2313
  %v2382 = vpack.c.bf16 %v2319, %v2317
  %v2383 = vpack.c.bf16 %v2323, %v2321
  %v2384 = vpack.c.bf16 %v2335, %v2333
  %v2385 = vpack.c.bf16 %v2339, %v2337
  %v2386 = vpack.c.bf16 %v2343, %v2341
  %v2387 = vpack.c.bf16 %v2347, %v2345
  %v2389 = vsel %vm575, %v2356, 0
  %v2392 = vsel %vm575, %v2357, 0
  %v2395 = vsel %vm575, %v2358, 0
  %v2398 = vsel %vm575, %v2359, 0
  %2400 = vmatprep.subr.bf16.mxu0 0
  %2401 = vmatpush1.bf16.msra.mxu0 0
  %2402 = vmatprep.subr.bf16.mxu0 0
  %2403 = vmatpush1.bf16.msra.mxu0 0
  %2404 = vmatprep.subr.bf16.mxu0 0
  %2405 = vmatpush1.bf16.msra.mxu0 0
  %2406 = vmatprep.subr.bf16.mxu0 0
  %2407 = vmatpush1.bf16.msra.mxu0 0
  %2408 = vmatprep.subr.bf16.mxu0 0
  %2409 = vmatpush1.bf16.msra.mxu0 %v2375
  %2410 = vmatprep.subr.bf16.mxu0 0
  %2411 = vmatpush1.bf16.msra.mxu0 %v2374
  %2412 = vmatprep.subr.bf16.mxu0 0
  %2413 = vmatpush1.bf16.msra.mxu0 %v2373
  %2414 = vmatprep.subr.bf16.mxu0 0
  %2415 = vmatpush1.bf16.msra.mxu0 %v2372
  %2416 = vmatprep.subr.bf16.mxu0 0
  %2417 = vmatpush2.bf16.msra.mxu0 0
  %2418 = vmatprep.subr.bf16.mxu0 0
  %2419 = vmatpush2.bf16.msra.mxu0 0
  %2420 = vmatprep.subr.bf16.mxu0 0
  %2421 = vmatpush2.bf16.msra.mxu0 0
  %2422 = vmatprep.subr.bf16.mxu0 0
  %2423 = vmatpush2.bf16.msra.mxu0 0
  %2424 = vmatprep.subr.bf16.mxu0 0
  %2425 = vmatpush2.bf16.msra.mxu0 0
  %2426 = vmatprep.subr.bf16.mxu0 0
  %2427 = vmatpush2.bf16.msra.mxu0 0
  %2428 = vmatprep.subr.bf16.mxu0 0
  %2429 = vmatpush2.bf16.msra.mxu0 0
  %2430 = vmatprep.subr.bf16.mxu0 0
  %2431 = vmatpush2.bf16.msra.mxu0 0
  %2432 = vmatprep.mubr.bf16.mxu0 0
  %2433 = vmatmul.mubr.bf16.gmra.mxu0 %v2389
  %v2434 = vpop.f32.mrf.mxu0
  %v2435 = vadd.f32 0.0, %v2434
  %v2436 = vpop.f32.mrf.mxu0
  %v2437 = vpop.f32.mrf.mxu0
  %v2438 = vadd.f32 0.0, %v2437
  %v2439 = vpop.f32.mrf.mxu0
  %2440 = vmatprep.mubr.bf16.mxu0 0
  %2441 = vmatmul.mubr.bf16.gmra.mxu0 %v2392
  %v2442 = vpop.f32.mrf.mxu0
  %v2443 = vadd.f32 0.0, %v2442
  %v2444 = vpop.f32.mrf.mxu0
  %v2445 = vpop.f32.mrf.mxu0
  %v2446 = vadd.f32 0.0, %v2445
  %v2447 = vpop.f32.mrf.mxu0
  %2448 = vmatprep.mubr.bf16.mxu0 0
  %2449 = vmatmul.mubr.bf16.gmra.mxu0 %v2395
  %v2450 = vpop.f32.mrf.mxu0
  %v2451 = vadd.f32 0.0, %v2450
  %v2452 = vpop.f32.mrf.mxu0
  %v2453 = vpop.f32.mrf.mxu0
  %v2454 = vadd.f32 0.0, %v2453
  %v2455 = vpop.f32.mrf.mxu0
  %2456 = vmatprep.mubr.bf16.mxu0 0
  %2457 = vmatmul.mubr.bf16.gmra.mxu0 %v2398
  %v2458 = vpop.f32.mrf.mxu0
  %v2459 = vadd.f32 0.0, %v2458
  %v2460 = vpop.f32.mrf.mxu0
  %v2461 = vpop.f32.mrf.mxu0
  %v2462 = vadd.f32 0.0, %v2461
  %v2463 = vpop.f32.mrf.mxu0
  %2464 = vdwg.mxu0
  %v2466 = vsel %vm575, %v2360, 0
  %v2469 = vsel %vm575, %v2361, 0
  %v2472 = vsel %vm575, %v2362, 0
  %v2475 = vsel %vm575, %v2363, 0
  %2477 = vmatprep.subr.bf16.mxu0 0
  %2478 = vmatpush1.bf16.msra.mxu0 0
  %2479 = vmatprep.subr.bf16.mxu0 0
  %2480 = vmatpush1.bf16.msra.mxu0 0
  %2481 = vmatprep.subr.bf16.mxu0 0
  %2482 = vmatpush1.bf16.msra.mxu0 0
  %2483 = vmatprep.subr.bf16.mxu0 0
  %2484 = vmatpush1.bf16.msra.mxu0 0
  %2485 = vmatprep.subr.bf16.mxu0 0
  %2486 = vmatpush1.bf16.msra.mxu0 %v2379
  %2487 = vmatprep.subr.bf16.mxu0 0
  %2488 = vmatpush1.bf16.msra.mxu0 %v2378
  %2489 = vmatprep.subr.bf16.mxu0 0
  %2490 = vmatpush1.bf16.msra.mxu0 %v2377
  %2491 = vmatprep.subr.bf16.mxu0 0
  %2492 = vmatpush1.bf16.msra.mxu0 %v2376
  %2493 = vmatprep.subr.bf16.mxu0 0
  %2494 = vmatpush2.bf16.msra.mxu0 0
  %2495 = vmatprep.subr.bf16.mxu0 0
  %2496 = vmatpush2.bf16.msra.mxu0 0
  %2497 = vmatprep.subr.bf16.mxu0 0
  %2498 = vmatpush2.bf16.msra.mxu0 0
  %2499 = vmatprep.subr.bf16.mxu0 0
  %2500 = vmatpush2.bf16.msra.mxu0 0
  %2501 = vmatprep.subr.bf16.mxu0 0
  %2502 = vmatpush2.bf16.msra.mxu0 0
  %2503 = vmatprep.subr.bf16.mxu0 0
  %2504 = vmatpush2.bf16.msra.mxu0 0
  %2505 = vmatprep.subr.bf16.mxu0 0
  %2506 = vmatpush2.bf16.msra.mxu0 0
  %2507 = vmatprep.subr.bf16.mxu0 0
  %2508 = vmatpush2.bf16.msra.mxu0 0
  %2509 = vmatprep.mubr.bf16.mxu0 0
  %2510 = vmatmul.mubr.bf16.gmra.mxu0 %v2466
  %v2511 = vpop.f32.mrf.mxu0
  %v2512 = vadd.f32 0.0, %v2511
  %v2513 = vpop.f32.mrf.mxu0
  %v2514 = vpop.f32.mrf.mxu0
  %v2515 = vadd.f32 0.0, %v2514
  %v2516 = vpop.f32.mrf.mxu0
  %2517 = vmatprep.mubr.bf16.mxu0 0
  %2518 = vmatmul.mubr.bf16.gmra.mxu0 %v2469
  %v2519 = vpop.f32.mrf.mxu0
  %v2520 = vadd.f32 0.0, %v2519
  %v2521 = vpop.f32.mrf.mxu0
  %v2522 = vpop.f32.mrf.mxu0
  %v2523 = vadd.f32 0.0, %v2522
  %v2524 = vpop.f32.mrf.mxu0
  %2525 = vmatprep.mubr.bf16.mxu0 0
  %2526 = vmatmul.mubr.bf16.gmra.mxu0 %v2472
  %v2527 = vpop.f32.mrf.mxu0
  %v2528 = vadd.f32 0.0, %v2527
  %v2529 = vpop.f32.mrf.mxu0
  %v2530 = vpop.f32.mrf.mxu0
  %v2531 = vadd.f32 0.0, %v2530
  %v2532 = vpop.f32.mrf.mxu0
  %2533 = vmatprep.mubr.bf16.mxu0 0
  %2534 = vmatmul.mubr.bf16.gmra.mxu0 %v2475
  %v2535 = vpop.f32.mrf.mxu0
  %v2536 = vadd.f32 0.0, %v2535
  %v2537 = vpop.f32.mrf.mxu0
  %v2538 = vpop.f32.mrf.mxu0
  %v2539 = vadd.f32 0.0, %v2538
  %v2540 = vpop.f32.mrf.mxu0
  %2541 = vdwg.mxu0
  %v2543 = vsel %vm575, %v2364, 0
  %v2546 = vsel %vm575, %v2365, 0
  %v2549 = vsel %vm575, %v2366, 0
  %v2552 = vsel %vm575, %v2367, 0
  %2554 = vmatprep.subr.bf16.mxu0 0
  %2555 = vmatpush1.bf16.msra.mxu0 0
  %2556 = vmatprep.subr.bf16.mxu0 0
  %2557 = vmatpush1.bf16.msra.mxu0 0
  %2558 = vmatprep.subr.bf16.mxu0 0
  %2559 = vmatpush1.bf16.msra.mxu0 0
  %2560 = vmatprep.subr.bf16.mxu0 0
  %2561 = vmatpush1.bf16.msra.mxu0 0
  %2562 = vmatprep.subr.bf16.mxu0 0
  %2563 = vmatpush1.bf16.msra.mxu0 %v2383
  %2564 = vmatprep.subr.bf16.mxu0 0
  %2565 = vmatpush1.bf16.msra.mxu0 %v2382
  %2566 = vmatprep.subr.bf16.mxu0 0
  %2567 = vmatpush1.bf16.msra.mxu0 %v2381
  %2568 = vmatprep.subr.bf16.mxu0 0
  %2569 = vmatpush1.bf16.msra.mxu0 %v2380
  %2570 = vmatprep.subr.bf16.mxu0 0
  %2571 = vmatpush2.bf16.msra.mxu0 0
  %2572 = vmatprep.subr.bf16.mxu0 0
  %2573 = vmatpush2.bf16.msra.mxu0 0
  %2574 = vmatprep.subr.bf16.mxu0 0
  %2575 = vmatpush2.bf16.msra.mxu0 0
  %2576 = vmatprep.subr.bf16.mxu0 0
  %2577 = vmatpush2.bf16.msra.mxu0 0
  %2578 = vmatprep.subr.bf16.mxu0 0
  %2579 = vmatpush2.bf16.msra.mxu0 0
  %2580 = vmatprep.subr.bf16.mxu0 0
  %2581 = vmatpush2.bf16.msra.mxu0 0
  %2582 = vmatprep.subr.bf16.mxu0 0
  %2583 = vmatpush2.bf16.msra.mxu0 0
  %2584 = vmatprep.subr.bf16.mxu0 0
  %2585 = vmatpush2.bf16.msra.mxu0 0
  %2586 = vmatprep.mubr.bf16.mxu0 0
  %2587 = vmatmul.mubr.bf16.gmra.mxu0 %v2543
  %v2588 = vpop.f32.mrf.mxu0
  %v2589 = vadd.f32 0.0, %v2588
  %v2590 = vpop.f32.mrf.mxu0
  %v2591 = vpop.f32.mrf.mxu0
  %v2592 = vadd.f32 0.0, %v2591
  %v2593 = vpop.f32.mrf.mxu0
  %2594 = vmatprep.mubr.bf16.mxu0 0
  %2595 = vmatmul.mubr.bf16.gmra.mxu0 %v2546
  %v2596 = vpop.f32.mrf.mxu0
  %v2597 = vadd.f32 0.0, %v2596
  %v2598 = vpop.f32.mrf.mxu0
  %v2599 = vpop.f32.mrf.mxu0
  %v2600 = vadd.f32 0.0, %v2599
  %v2601 = vpop.f32.mrf.mxu0
  %2602 = vmatprep.mubr.bf16.mxu0 0
  %2603 = vmatmul.mubr.bf16.gmra.mxu0 %v2549
  %v2604 = vpop.f32.mrf.mxu0
  %v2605 = vadd.f32 0.0, %v2604
  %v2606 = vpop.f32.mrf.mxu0
  %v2607 = vpop.f32.mrf.mxu0
  %v2608 = vadd.f32 0.0, %v2607
  %v2609 = vpop.f32.mrf.mxu0
  %2610 = vmatprep.mubr.bf16.mxu0 0
  %2611 = vmatmul.mubr.bf16.gmra.mxu0 %v2552
  %v2612 = vpop.f32.mrf.mxu0
  %v2613 = vadd.f32 0.0, %v2612
  %v2614 = vpop.f32.mrf.mxu0
  %v2615 = vpop.f32.mrf.mxu0
  %v2616 = vadd.f32 0.0, %v2615
  %v2617 = vpop.f32.mrf.mxu0
  %2618 = vdwg.mxu0
  %v2620 = vsel %vm575, %v2368, 0
  %v2623 = vsel %vm575, %v2369, 0
  %v2626 = vsel %vm575, %v2370, 0
  %v2629 = vsel %vm575, %v2371, 0
  %2631 = vmatprep.subr.bf16.mxu0 0
  %2632 = vmatpush1.bf16.msra.mxu0 0
  %2633 = vmatprep.subr.bf16.mxu0 0
  %2634 = vmatpush1.bf16.msra.mxu0 0
  %2635 = vmatprep.subr.bf16.mxu0 0
  %2636 = vmatpush1.bf16.msra.mxu0 0
  %2637 = vmatprep.subr.bf16.mxu0 0
  %2638 = vmatpush1.bf16.msra.mxu0 0
  %2639 = vmatprep.subr.bf16.mxu0 0
  %2640 = vmatpush1.bf16.msra.mxu0 %v2387
  %2641 = vmatprep.subr.bf16.mxu0 0
  %2642 = vmatpush1.bf16.msra.mxu0 %v2386
  %2643 = vmatprep.subr.bf16.mxu0 0
  %2644 = vmatpush1.bf16.msra.mxu0 %v2385
  %2645 = vmatprep.subr.bf16.mxu0 0
  %2646 = vmatpush1.bf16.msra.mxu0 %v2384
  %2647 = vmatprep.subr.bf16.mxu0 0
  %2648 = vmatpush2.bf16.msra.mxu0 0
  %2649 = vmatprep.subr.bf16.mxu0 0
  %2650 = vmatpush2.bf16.msra.mxu0 0
  %2651 = vmatprep.subr.bf16.mxu0 0
  %2652 = vmatpush2.bf16.msra.mxu0 0
  %2653 = vmatprep.subr.bf16.mxu0 0
  %2654 = vmatpush2.bf16.msra.mxu0 0
  %2655 = vmatprep.subr.bf16.mxu0 0
  %2656 = vmatpush2.bf16.msra.mxu0 0
  %2657 = vmatprep.subr.bf16.mxu0 0
  %2658 = vmatpush2.bf16.msra.mxu0 0
  %2659 = vmatprep.subr.bf16.mxu0 0
  %2660 = vmatpush2.bf16.msra.mxu0 0
  %2661 = vmatprep.subr.bf16.mxu0 0
  %2662 = vmatpush2.bf16.msra.mxu0 0
  %2663 = vmatprep.mubr.bf16.mxu0 0
  %2664 = vmatmul.mubr.bf16.gmra.mxu0 %v2620
  %v2665 = vpop.f32.mrf.mxu0
  %v2666 = vadd.f32 0.0, %v2665
  %v2667 = vpop.f32.mrf.mxu0
  %v2668 = vpop.f32.mrf.mxu0
  %v2669 = vadd.f32 0.0, %v2668
  %v2670 = vpop.f32.mrf.mxu0
  %2671 = vmatprep.mubr.bf16.mxu0 0
  %2672 = vmatmul.mubr.bf16.gmra.mxu0 %v2623
  %v2673 = vpop.f32.mrf.mxu0
  %v2674 = vadd.f32 0.0, %v2673
  %v2675 = vpop.f32.mrf.mxu0
  %v2676 = vpop.f32.mrf.mxu0
  %v2677 = vadd.f32 0.0, %v2676
  %v2678 = vpop.f32.mrf.mxu0
  %2679 = vmatprep.mubr.bf16.mxu0 0
  %2680 = vmatmul.mubr.bf16.gmra.mxu0 %v2626
  %v2681 = vpop.f32.mrf.mxu0
  %v2682 = vadd.f32 0.0, %v2681
  %v2683 = vpop.f32.mrf.mxu0
  %v2684 = vpop.f32.mrf.mxu0
  %v2685 = vadd.f32 0.0, %v2684
  %v2686 = vpop.f32.mrf.mxu0
  %2687 = vmatprep.mubr.bf16.mxu0 0
  %2688 = vmatmul.mubr.bf16.gmra.mxu0 %v2629
  %v2689 = vpop.f32.mrf.mxu0
  %v2690 = vadd.f32 0.0, %v2689
  %v2691 = vpop.f32.mrf.mxu0
  %v2692 = vpop.f32.mrf.mxu0
  %v2693 = vadd.f32 0.0, %v2692
  %v2694 = vpop.f32.mrf.mxu0
  %2695 = vdwg.mxu0
  %v2696 = vrcp.pop %v2190
  %v2697 = vrcp.pop %v2193
  %v2698 = vrcp.pop %v2196
  %v2699 = vrcp.pop %v2199
  %v2700 = vrcp.pop %v2202
  %v2701 = vrcp.pop %v2205
  %v2702 = vrcp.pop %v2208
  %v2703 = vrcp.pop %v2211
  %v2704 = vrcp.pop %v2214
  %v2705 = vrcp.pop %v2217
  %v2706 = vrcp.pop %v2220
  %v2707 = vrcp.pop %v2223
  %v2708 = vrcp.pop %v2226
  %v2709 = vrcp.pop %v2229
  %v2710 = vrcp.pop %v2232
  %v2711 = vrcp.pop %v2235
  %v2712 = vrcp.pop %v2238
  %v2713 = vrcp.pop %v2241
  %v2714 = vrcp.pop %v2244
  %v2715 = vrcp.pop %v2247
  %v2716 = vrcp.pop %v2250
  %v2717 = vrcp.pop %v2253
  %v2718 = vrcp.pop %v2256
  %v2719 = vrcp.pop %v2259
  %v2720 = vrcp.pop %v2262
  %v2721 = vrcp.pop %v2265
  %v2722 = vrcp.pop %v2268
  %v2723 = vrcp.pop %v2271
  %v2724 = vrcp.pop %v2274
  %v2725 = vrcp.pop %v2277
  %v2726 = vrcp.pop %v2280
  %v2727 = vrcp.pop %v2283
  %v2728 = vmul.f32 %v2435, %v2696
  %v2729 = vmul.f32 %v2438, %v2697
  %v2730 = vmul.f32 %v2443, %v2698
  %v2731 = vmul.f32 %v2446, %v2699
  %v2732 = vmul.f32 %v2451, %v2700
  %v2733 = vmul.f32 %v2454, %v2701
  %v2734 = vmul.f32 %v2459, %v2702
  %v2735 = vmul.f32 %v2462, %v2703
  %v2736 = vmul.f32 %v2512, %v2704
  %v2737 = vmul.f32 %v2515, %v2705
  %v2738 = vmul.f32 %v2520, %v2706
  %v2739 = vmul.f32 %v2523, %v2707
  %v2740 = vmul.f32 %v2528, %v2708
  %v2741 = vmul.f32 %v2531, %v2709
  %v2742 = vmul.f32 %v2536, %v2710
  %v2743 = vmul.f32 %v2539, %v2711
  %v2744 = vmul.f32 %v2589, %v2712
  %v2745 = vmul.f32 %v2592, %v2713
  %v2746 = vmul.f32 %v2597, %v2714
  %v2747 = vmul.f32 %v2600, %v2715
  %v2748 = vmul.f32 %v2605, %v2716
  %v2749 = vmul.f32 %v2608, %v2717
  %v2750 = vmul.f32 %v2613, %v2718
  %v2751 = vmul.f32 %v2616, %v2719
  %v2752 = vmul.f32 %v2666, %v2720
  %v2753 = vmul.f32 %v2669, %v2721
  %v2754 = vmul.f32 %v2674, %v2722
  %v2755 = vmul.f32 %v2677, %v2723
  %v2756 = vmul.f32 %v2682, %v2724
  %v2757 = vmul.f32 %v2685, %v2725
  %v2758 = vmul.f32 %v2690, %v2726
  %v2759 = vmul.f32 %v2693, %v2727
  %2768 = vrot.lane.b32.xlu0 %v2736, 8
  %v2769 = vpop.permute.xlu0 %2768
  %2770 = vrot.lane.b32.xlu0 %v2737, 8
  %v2771 = vpop.permute.xlu0 %2770
  %2772 = vrot.lane.b32.xlu0 %v2738, 8
  %v2773 = vpop.permute.xlu0 %2772
  %2774 = vrot.lane.b32.xlu0 %v2739, 8
  %v2775 = vpop.permute.xlu0 %2774
  %2776 = vrot.lane.b32.xlu0 %v2740, 8
  %v2777 = vpop.permute.xlu0 %2776
  %2778 = vrot.lane.b32.xlu0 %v2741, 8
  %v2779 = vpop.permute.xlu0 %2778
  %2780 = vrot.lane.b32.xlu0 %v2742, 8
  %v2781 = vpop.permute.xlu0 %2780
  %2782 = vrot.lane.b32.xlu0 %v2743, 8
  %v2783 = vpop.permute.xlu0 %2782
  %2800 = vrot.lane.b32.xlu0 %v2744, 16
  %v2801 = vpop.permute.xlu0 %2800
  %2802 = vrot.lane.b32.xlu0 %v2745, 16
  %v2803 = vpop.permute.xlu0 %2802
  %2804 = vrot.lane.b32.xlu0 %v2746, 16
  %v2805 = vpop.permute.xlu0 %2804
  %2806 = vrot.lane.b32.xlu0 %v2747, 16
  %v2807 = vpop.permute.xlu0 %2806
  %2808 = vrot.lane.b32.xlu0 %v2748, 16
  %v2809 = vpop.permute.xlu0 %2808
  %2810 = vrot.lane.b32.xlu0 %v2749, 16
  %v2811 = vpop.permute.xlu0 %2810
  %2812 = vrot.lane.b32.xlu0 %v2750, 16
  %v2813 = vpop.permute.xlu0 %2812
  %2814 = vrot.lane.b32.xlu0 %v2751, 16
  %v2815 = vpop.permute.xlu0 %2814
  %2832 = vrot.lane.b32.xlu0 %v2752, 24
  %v2833 = vpop.permute.xlu0 %2832
  %2834 = vrot.lane.b32.xlu0 %v2753, 24
  %v2835 = vpop.permute.xlu0 %2834
  %2836 = vrot.lane.b32.xlu0 %v2754, 24
  %v2837 = vpop.permute.xlu0 %2836
  %2838 = vrot.lane.b32.xlu0 %v2755, 24
  %v2839 = vpop.permute.xlu0 %2838
  %2840 = vrot.lane.b32.xlu0 %v2756, 24
  %v2841 = vpop.permute.xlu0 %2840
  %2842 = vrot.lane.b32.xlu0 %v2757, 24
  %v2843 = vpop.permute.xlu0 %2842
  %2844 = vrot.lane.b32.xlu0 %v2758, 24
  %v2845 = vpop.permute.xlu0 %2844
  %2846 = vrot.lane.b32.xlu0 %v2759, 24
  %v2847 = vpop.permute.xlu0 %2846
  %v2856 = vsel %vm1436, %v2728, %v2769
  %v2857 = vsel %vm1436, %v2729, %v2771
  %v2858 = vsel %vm1436, %v2730, %v2773
  %v2859 = vsel %vm1436, %v2731, %v2775
  %v2860 = vsel %vm1436, %v2732, %v2777
  %v2861 = vsel %vm1436, %v2733, %v2779
  %v2862 = vsel %vm1436, %v2734, %v2781
  %v2863 = vsel %vm1436, %v2735, %v2783
  %v2864 = vsel %vm84, %v2856, %v2801
  %v2865 = vsel %vm84, %v2857, %v2803
  %v2866 = vsel %vm84, %v2858, %v2805
  %v2867 = vsel %vm84, %v2859, %v2807
  %v2868 = vsel %vm84, %v2860, %v2809
  %v2869 = vsel %vm84, %v2861, %v2811
  %v2870 = vsel %vm84, %v2862, %v2813
  %v2871 = vsel %vm84, %v2863, %v2815
  %v2872 = vsel %vm1453, %v2864, %v2833
  %v2873 = vsel %vm1453, %v2865, %v2835
  %v2874 = vsel %vm1453, %v2866, %v2837
  %v2875 = vsel %vm1453, %v2867, %v2839
  %v2876 = vsel %vm1453, %v2868, %v2841
  %v2877 = vsel %vm1453, %v2869, %v2843
  %v2878 = vsel %vm1453, %v2870, %v2845
  %v2879 = vsel %vm1453, %v2871, %v2847
  %v2880 = vld [vmem:[%s5] sm:$0x1]
  %v2882 = vlaneseq
  %v2883 = vshrl.u32 %v2882, 7
  %v2884 = vsub.s32 0, %v2883
  %v2885 = vrot.slane %v2880, %v2884
  %v2887 = vadd.f32 %v2872, %v2885
  %v2888 = vadd.f32 %v2873, %v2885
  %v2889 = vadd.f32 %v2874, %v2885
  %v2890 = vadd.f32 %v2875, %v2885
  %v2891 = vadd.f32 %v2876, %v2885
  %v2892 = vadd.f32 %v2877, %v2885
  %v2893 = vadd.f32 %v2878, %v2885
  %v2894 = vadd.f32 %v2879, %v2885
  %v2895 = vmax.f32 %v2887, 0.0
  %v2896 = vmax.f32 %v2888, 0.0
  %v2897 = vmax.f32 %v2889, 0.0
  %v2898 = vmax.f32 %v2890, 0.0
  %v2899 = vmax.f32 %v2891, 0.0
  %v2900 = vmax.f32 %v2892, 0.0
  %v2901 = vmax.f32 %v2893, 0.0
  %v2902 = vmax.f32 %v2894, 0.0
  %v2903 = vpack.c.bf16 %v2896, %v2895
  %v2904 = vpack.c.bf16 %v2898, %v2897
  %v2905 = vpack.c.bf16 %v2900, %v2899
  %v2906 = vpack.c.bf16 %v2902, %v2901
  %v2907 = vld [vmem:[%s6] sm:$0xf]
  %v2908 = vld [vmem:[%s6 + $0x4] sm:$0xf]
  %v2909 = vld [vmem:[%s6 + $0x8] sm:$0xf]
  %v2910 = vld [vmem:[%s6 + $0xc] sm:$0xf]
  %v2915 = vunpack.c.l.b16 %v2907
  %v2916 = vunpack.c.l.b16 %v2908
  %v2917 = vunpack.c.l.b16 %v2909
  %v2918 = vunpack.c.l.b16 %v2910
  %v2919 = vpack.c.b16 %v2916, %v2915
  %v2920 = vpack.c.b16 %v2918, %v2917
  %v2924 = vsel %vm1505, %v2903, 0
  %v2927 = vsel %vm1505, %v2904, 0
  %v2930 = vsel %vm1505, %v2905, 0
  %v2933 = vsel %vm1505, %v2906, 0
  %2935 = vmatprep.subr.bf16.mxu0 0
  %2936 = vmatpush1.bf16.msra.mxu0 0
  %2937 = vmatprep.subr.bf16.mxu0 0
  %2938 = vmatpush1.bf16.msra.mxu0 0
  %2939 = vmatprep.subr.bf16.mxu0 0
  %2940 = vmatpush1.bf16.msra.mxu0 0
  %2941 = vmatprep.subr.bf16.mxu0 0
  %2942 = vmatpush1.bf16.msra.mxu0 0
  %2943 = vmatprep.subr.bf16.mxu0 0
  %2944 = vmatpush1.bf16.msra.mxu0 0
  %2945 = vmatprep.subr.bf16.mxu0 0
  %2946 = vmatpush1.bf16.msra.mxu0 0
  %2947 = vmatprep.subr.bf16.mxu0 0
  %2948 = vmatpush1.bf16.msra.mxu0 %v2920
  %2949 = vmatprep.subr.bf16.mxu0 0
  %2950 = vmatpush1.bf16.msra.mxu0 %v2919
  %2951 = vmatprep.subr.bf16.mxu0 0
  %2952 = vmatpush2.bf16.msra.mxu0 0
  %2953 = vmatprep.subr.bf16.mxu0 0
  %2954 = vmatpush2.bf16.msra.mxu0 0
  %2955 = vmatprep.subr.bf16.mxu0 0
  %2956 = vmatpush2.bf16.msra.mxu0 0
  %2957 = vmatprep.subr.bf16.mxu0 0
  %2958 = vmatpush2.bf16.msra.mxu0 0
  %2959 = vmatprep.subr.bf16.mxu0 0
  %2960 = vmatpush2.bf16.msra.mxu0 0
  %2961 = vmatprep.subr.bf16.mxu0 0
  %2962 = vmatpush2.bf16.msra.mxu0 0
  %2963 = vmatprep.subr.bf16.mxu0 0
  %2964 = vmatpush2.bf16.msra.mxu0 0
  %2965 = vmatprep.subr.bf16.mxu0 0
  %2966 = vmatpush2.bf16.msra.mxu0 0
  %2967 = vmatprep.mubr.bf16.mxu0 0
  %2968 = vmatmul.mubr.bf16.gmra.mxu0 %v2924
  %v2969 = vpop.f32.mrf.mxu0
  %v2970 = vadd.f32 0.0, %v2969
  %v2971 = vpop.f32.mrf.mxu0
  %v2972 = vpop.f32.mrf.mxu0
  %v2973 = vadd.f32 0.0, %v2972
  %v2974 = vpop.f32.mrf.mxu0
  %2975 = vmatprep.mubr.bf16.mxu0 0
  %2976 = vmatmul.mubr.bf16.gmra.mxu0 %v2927
  %v2977 = vpop.f32.mrf.mxu0
  %v2978 = vadd.f32 0.0, %v2977
  %v2979 = vpop.f32.mrf.mxu0
  %v2980 = vpop.f32.mrf.mxu0
  %v2981 = vadd.f32 0.0, %v2980
  %v2982 = vpop.f32.mrf.mxu0
  %2983 = vmatprep.mubr.bf16.mxu0 0
  %2984 = vmatmul.mubr.bf16.gmra.mxu0 %v2930
  %v2985 = vpop.f32.mrf.mxu0
  %v2986 = vadd.f32 0.0, %v2985
  %v2987 = vpop.f32.mrf.mxu0
  %v2988 = vpop.f32.mrf.mxu0
  %v2989 = vadd.f32 0.0, %v2988
  %v2990 = vpop.f32.mrf.mxu0
  %2991 = vmatprep.mubr.bf16.mxu0 0
  %2992 = vmatmul.mubr.bf16.gmra.mxu0 %v2933
  %v2993 = vpop.f32.mrf.mxu0
  %v2994 = vadd.f32 0.0, %v2993
  %v2995 = vpop.f32.mrf.mxu0
  %v2996 = vpop.f32.mrf.mxu0
  %v2997 = vadd.f32 0.0, %v2996
  %v2998 = vpop.f32.mrf.mxu0
  %2999 = vdwg.mxu0
  %3008 = vrot.lane.b32.xlu0 %v2970, 119
  %v3009 = vpop.permute.xlu0 %3008
  %3010 = vrot.lane.b32.xlu0 %v2973, 119
  %v3011 = vpop.permute.xlu0 %3010
  %3012 = vrot.lane.b32.xlu0 %v2978, 119
  %v3013 = vpop.permute.xlu0 %3012
  %3014 = vrot.lane.b32.xlu0 %v2981, 119
  %v3015 = vpop.permute.xlu0 %3014
  %3016 = vrot.lane.b32.xlu0 %v2986, 119
  %v3017 = vpop.permute.xlu0 %3016
  %3018 = vrot.lane.b32.xlu0 %v2989, 119
  %v3019 = vpop.permute.xlu0 %3018
  %3020 = vrot.lane.b32.xlu0 %v2994, 119
  %v3021 = vpop.permute.xlu0 %3020
  %3022 = vrot.lane.b32.xlu0 %v2997, 119
  %v3023 = vpop.permute.xlu0 %3022
  %3032 = vxpose.xlu0.b32.start [1/16] %v3009, 128
  %3033 = vxpose.xlu0.b32.cont [2/16] %v3011, 128
  %3034 = vxpose.xlu0.b32.cont [3/16] %v3013, 128
  %3035 = vxpose.xlu0.b32.cont [4/16] %v3015, 128
  %3036 = vxpose.xlu0.b32.cont [5/16] %v3017, 128
  %3037 = vxpose.xlu0.b32.cont [6/16] %v3019, 128
  %3038 = vxpose.xlu0.b32.cont [7/16] %v3021, 128
  %3039 = vxpose.xlu0.b32.cont [8/16] %v3023, 128
  %3040 = vxpose.xlu0.b32.cont [9/16] 0.0, 128
  %3041 = vxpose.xlu0.b32.cont [10/16] 0.0, 128
  %3042 = vxpose.xlu0.b32.cont [11/16] 0.0, 128
  %3043 = vxpose.xlu0.b32.cont [12/16] 0.0, 128
  %3044 = vxpose.xlu0.b32.cont [13/16] 0.0, 128
  %3045 = vxpose.xlu0.b32.cont [14/16] 0.0, 128
  %3046 = vxpose.xlu0.b32.cont [15/16] 0.0, 128
  %3047 = vxpose.xlu0.b32.end [16/16] 0.0, 128
  %v3048 = vpop.trf.xlu0
  %v3049 = vpop.trf.xlu0
  %v3050 = vpop.trf.xlu0
  %v3051 = vpop.trf.xlu0
  %v3052 = vpop.trf.xlu0
  %v3053 = vpop.trf.xlu0
  %v3054 = vpop.trf.xlu0
  %v3055 = vpop.trf.xlu0
  %v3056 = vpop.trf.xlu0
  %v3057 = vpop.trf.xlu0
  %v3058 = vpop.trf.xlu0
  %v3059 = vpop.trf.xlu0
  %v3060 = vpop.trf.xlu0
  %v3061 = vpop.trf.xlu0
  %v3062 = vpop.trf.xlu0
  %v3063 = vpop.trf.xlu0
  %3064 = vset.pattern.permute.xlu0 8
  %3065 = vperm.xlu0 %3064, %v2970
  %v3066 = vpop.permute.xlu0 %3065
  %3068 = vset.pattern.permute.xlu0 8
  %3069 = vperm.xlu0 %3068, %v2973
  %v3070 = vpop.permute.xlu0 %3069
  %3072 = vset.pattern.permute.xlu0 8
  %3073 = vperm.xlu0 %3072, %v2978
  %v3074 = vpop.permute.xlu0 %3073
  %3076 = vset.pattern.permute.xlu0 8
  %3077 = vperm.xlu0 %3076, %v2981
  %v3078 = vpop.permute.xlu0 %3077
  %3080 = vset.pattern.permute.xlu0 8
  %3081 = vperm.xlu0 %3080, %v2986
  %v3082 = vpop.permute.xlu0 %3081
  %3084 = vset.pattern.permute.xlu0 8
  %3085 = vperm.xlu0 %3084, %v2989
  %v3086 = vpop.permute.xlu0 %3085
  %3088 = vset.pattern.permute.xlu0 8
  %3089 = vperm.xlu0 %3088, %v2994
  %v3090 = vpop.permute.xlu0 %3089
  %3092 = vset.pattern.permute.xlu0 8
  %3093 = vperm.xlu0 %3092, %v2997
  %v3094 = vpop.permute.xlu0 %3093
  %v3096 = vlaneseq
  %v3097 = vshrl.u32 %v3096, 7
  %v3098 = vsub.s32 0, %v3097
  %v3099 = vrot.slane %v3048, %v3098
  %v3100 = vadd.f32 %v3066, %v3099
  %v3101 = vadd.f32 %v3070, %v3099
  %v3102 = vadd.f32 %v3074, %v3099
  %v3103 = vadd.f32 %v3078, %v3099
  %v3104 = vadd.f32 %v3082, %v3099
  %v3105 = vadd.f32 %v3086, %v3099
  %v3106 = vadd.f32 %v3090, %v3099
  %v3107 = vadd.f32 %v3094, %v3099
  %v3108 = vmul.f32 %v3100, 0.2
  %v3109 = vmul.f32 %v3101, 0.2
  %v3110 = vmul.f32 %v3102, 0.2
  %v3111 = vmul.f32 %v3103, 0.2
  %v3112 = vmul.f32 %v3104, 0.2
  %v3113 = vmul.f32 %v3105, 0.2
  %v3114 = vmul.f32 %v3106, 0.2
  %v3115 = vmul.f32 %v3107, 0.2
  %v3116 = vmax.f32 %v3100, %v3108
  %v3117 = vmax.f32 %v3101, %v3109
  %v3118 = vmax.f32 %v3102, %v3110
  %v3119 = vmax.f32 %v3103, %v3111
  %v3120 = vmax.f32 %v3104, %v3112
  %v3121 = vmax.f32 %v3105, %v3113
  %v3122 = vmax.f32 %v3106, %v3114
  %v3123 = vmax.f32 %v3107, %v3115
  %v3124 = vadd.f32 %v3116, %v56
  %v3125 = vadd.f32 %v3117, %v57
  %v3126 = vadd.f32 %v3118, %v58
  %v3127 = vadd.f32 %v3119, %v59
  %v3128 = vadd.f32 %v3120, %v60
  %v3129 = vadd.f32 %v3121, %v61
  %v3130 = vadd.f32 %v3122, %v62
  %v3131 = vadd.f32 %v3123, %v63
  %v3132 = vsel %vm575, %v3124, -inf
  %3133 = vmax.xlane.f32.xlu0 %v3132
  %v3134 = vpop.xlane.xlu0 %3133
  %v3135 = vsel %vm575, %v3125, -inf
  %3136 = vmax.xlane.f32.xlu0 %v3135
  %v3137 = vpop.xlane.xlu0 %3136
  %v3138 = vsel %vm575, %v3126, -inf
  %3139 = vmax.xlane.f32.xlu0 %v3138
  %v3140 = vpop.xlane.xlu0 %3139
  %v3141 = vsel %vm575, %v3127, -inf
  %3142 = vmax.xlane.f32.xlu0 %v3141
  %v3143 = vpop.xlane.xlu0 %3142
  %v3144 = vsel %vm575, %v3128, -inf
  %3145 = vmax.xlane.f32.xlu0 %v3144
  %v3146 = vpop.xlane.xlu0 %3145
  %v3147 = vsel %vm575, %v3129, -inf
  %3148 = vmax.xlane.f32.xlu0 %v3147
  %v3149 = vpop.xlane.xlu0 %3148
  %v3150 = vsel %vm575, %v3130, -inf
  %3151 = vmax.xlane.f32.xlu0 %v3150
  %v3152 = vpop.xlane.xlu0 %3151
  %v3153 = vsel %vm575, %v3131, -inf
  %3154 = vmax.xlane.f32.xlu0 %v3153
  %v3155 = vpop.xlane.xlu0 %3154
  %v3156 = vsub.f32 %v3124, %v3134
  %v3157 = vsub.f32 %v3125, %v3137
  %v3158 = vsub.f32 %v3126, %v3140
  %v3159 = vsub.f32 %v3127, %v3143
  %v3160 = vsub.f32 %v3128, %v3146
  %v3161 = vsub.f32 %v3129, %v3149
  %v3162 = vsub.f32 %v3130, %v3152
  %v3163 = vsub.f32 %v3131, %v3155
  %v3164 = vmul.f32 %v3156, 1.442695
  %v3165 = vpow.pop %v3164
  %v3166 = vmul.f32 %v3157, 1.442695
  %v3167 = vpow.pop %v3166
  %v3168 = vmul.f32 %v3158, 1.442695
  %v3169 = vpow.pop %v3168
  %v3170 = vmul.f32 %v3159, 1.442695
  %v3171 = vpow.pop %v3170
  %v3172 = vmul.f32 %v3160, 1.442695
  %v3173 = vpow.pop %v3172
  %v3174 = vmul.f32 %v3161, 1.442695
  %v3175 = vpow.pop %v3174
  %v3176 = vmul.f32 %v3162, 1.442695
  %v3177 = vpow.pop %v3176
  %v3178 = vmul.f32 %v3163, 1.442695
  %v3179 = vpow.pop %v3178
  %v3180 = vsel %vm575, %v3165, 0.0
  %3181 = vadd.xlane.f32.xlu0 %v3180
  %v3182 = vpop.xlane.xlu0 %3181
  %v3183 = vsel %vm575, %v3167, 0.0
  %3184 = vadd.xlane.f32.xlu0 %v3183
  %v3185 = vpop.xlane.xlu0 %3184
  %v3186 = vsel %vm575, %v3169, 0.0
  %3187 = vadd.xlane.f32.xlu0 %v3186
  %v3188 = vpop.xlane.xlu0 %3187
  %v3189 = vsel %vm575, %v3171, 0.0
  %3190 = vadd.xlane.f32.xlu0 %v3189
  %v3191 = vpop.xlane.xlu0 %3190
  %v3192 = vsel %vm575, %v3173, 0.0
  %3193 = vadd.xlane.f32.xlu0 %v3192
  %v3194 = vpop.xlane.xlu0 %3193
  %v3195 = vsel %vm575, %v3175, 0.0
  %3196 = vadd.xlane.f32.xlu0 %v3195
  %v3197 = vpop.xlane.xlu0 %3196
  %v3198 = vsel %vm575, %v3177, 0.0
  %3199 = vadd.xlane.f32.xlu0 %v3198
  %v3200 = vpop.xlane.xlu0 %3199
  %v3201 = vsel %vm575, %v3179, 0.0
  %3202 = vadd.xlane.f32.xlu0 %v3201
  %v3203 = vpop.xlane.xlu0 %3202
  %v3204 = vpack.c.bf16 %v3167, %v3165
  %v3205 = vpack.c.bf16 %v3171, %v3169
  %v3206 = vpack.c.bf16 %v3175, %v3173
  %v3207 = vpack.c.bf16 %v3179, %v3177
  %v3208 = vpack.c.bf16 %v2973, %v2970
  %v3209 = vpack.c.bf16 %v2981, %v2978
  %v3210 = vpack.c.bf16 %v2989, %v2986
  %v3211 = vpack.c.bf16 %v2997, %v2994
  %v3213 = vsel %vm575, %v3204, 0
  %v3216 = vsel %vm575, %v3205, 0
  %v3219 = vsel %vm575, %v3206, 0
  %v3222 = vsel %vm575, %v3207, 0
  %3224 = vmatprep.subr.bf16.mxu0 0
  %3225 = vmatpush1.bf16.msra.mxu0 0
  %3226 = vmatprep.subr.bf16.mxu0 0
  %3227 = vmatpush1.bf16.msra.mxu0 0
  %3228 = vmatprep.subr.bf16.mxu0 0
  %3229 = vmatpush1.bf16.msra.mxu0 0
  %3230 = vmatprep.subr.bf16.mxu0 0
  %3231 = vmatpush1.bf16.msra.mxu0 0
  %3232 = vmatprep.subr.bf16.mxu0 0
  %3233 = vmatpush1.bf16.msra.mxu0 %v3211
  %3234 = vmatprep.subr.bf16.mxu0 0
  %3235 = vmatpush1.bf16.msra.mxu0 %v3210
  %3236 = vmatprep.subr.bf16.mxu0 0
  %3237 = vmatpush1.bf16.msra.mxu0 %v3209
  %3238 = vmatprep.subr.bf16.mxu0 0
  %3239 = vmatpush1.bf16.msra.mxu0 %v3208
  %3240 = vmatprep.subr.bf16.mxu0 0
  %3241 = vmatpush2.bf16.msra.mxu0 0
  %3242 = vmatprep.subr.bf16.mxu0 0
  %3243 = vmatpush2.bf16.msra.mxu0 0
  %3244 = vmatprep.subr.bf16.mxu0 0
  %3245 = vmatpush2.bf16.msra.mxu0 0
  %3246 = vmatprep.subr.bf16.mxu0 0
  %3247 = vmatpush2.bf16.msra.mxu0 0
  %3248 = vmatprep.subr.bf16.mxu0 0
  %3249 = vmatpush2.bf16.msra.mxu0 0
  %3250 = vmatprep.subr.bf16.mxu0 0
  %3251 = vmatpush2.bf16.msra.mxu0 0
  %3252 = vmatprep.subr.bf16.mxu0 0
  %3253 = vmatpush2.bf16.msra.mxu0 0
  %3254 = vmatprep.subr.bf16.mxu0 0
  %3255 = vmatpush2.bf16.msra.mxu0 0
  %3256 = vmatprep.mubr.bf16.mxu0 0
  %3257 = vmatmul.mubr.bf16.gmra.mxu0 %v3213
  %v3258 = vpop.f32.mrf.mxu0
  %v3259 = vadd.f32 0.0, %v3258
  %v3260 = vpop.f32.mrf.mxu0
  %v3261 = vpop.f32.mrf.mxu0
  %v3262 = vadd.f32 0.0, %v3261
  %v3263 = vpop.f32.mrf.mxu0
  %3264 = vmatprep.mubr.bf16.mxu0 0
  %3265 = vmatmul.mubr.bf16.gmra.mxu0 %v3216
  %v3266 = vpop.f32.mrf.mxu0
  %v3267 = vadd.f32 0.0, %v3266
  %v3268 = vpop.f32.mrf.mxu0
  %v3269 = vpop.f32.mrf.mxu0
  %v3270 = vadd.f32 0.0, %v3269
  %v3271 = vpop.f32.mrf.mxu0
  %3272 = vmatprep.mubr.bf16.mxu0 0
  %3273 = vmatmul.mubr.bf16.gmra.mxu0 %v3219
  %v3274 = vpop.f32.mrf.mxu0
  %v3275 = vadd.f32 0.0, %v3274
  %v3276 = vpop.f32.mrf.mxu0
  %v3277 = vpop.f32.mrf.mxu0
  %v3278 = vadd.f32 0.0, %v3277
  %v3279 = vpop.f32.mrf.mxu0
  %3280 = vmatprep.mubr.bf16.mxu0 0
  %3281 = vmatmul.mubr.bf16.gmra.mxu0 %v3222
  %v3282 = vpop.f32.mrf.mxu0
  %v3283 = vadd.f32 0.0, %v3282
  %v3284 = vpop.f32.mrf.mxu0
  %v3285 = vpop.f32.mrf.mxu0
  %v3286 = vadd.f32 0.0, %v3285
  %v3287 = vpop.f32.mrf.mxu0
  %3288 = vdwg.mxu0
  %v3289 = vrcp.pop %v3182
  %v3290 = vrcp.pop %v3185
  %v3291 = vrcp.pop %v3188
  %v3292 = vrcp.pop %v3191
  %v3293 = vrcp.pop %v3194
  %v3294 = vrcp.pop %v3197
  %v3295 = vrcp.pop %v3200
  %v3296 = vrcp.pop %v3203
  %v3297 = vmul.f32 %v3259, %v3289
  %v3298 = vmul.f32 %v3262, %v3290
  %v3299 = vmul.f32 %v3267, %v3291
  %v3300 = vmul.f32 %v3270, %v3292
  %v3301 = vmul.f32 %v3275, %v3293
  %v3302 = vmul.f32 %v3278, %v3294
  %v3303 = vmul.f32 %v3283, %v3295
  %v3304 = vmul.f32 %v3286, %v3296
  %v3305 = vld [vmem:[%s7] sm:$0x1]
  %v3307 = vlaneseq
  %v3308 = vshrl.u32 %v3307, 7
  %v3309 = vsub.s32 0, %v3308
  %v3310 = vrot.slane %v3305, %v3309
  %v3312 = vadd.f32 %v3297, %v3310
  %v3313 = vadd.f32 %v3298, %v3310
  %v3314 = vadd.f32 %v3299, %v3310
  %v3315 = vadd.f32 %v3300, %v3310
  %v3316 = vadd.f32 %v3301, %v3310
  %v3317 = vadd.f32 %v3302, %v3310
  %v3318 = vadd.f32 %v3303, %v3310
  %v3319 = vadd.f32 %v3304, %v3310
  %3320 = vst.msk [vmem:[%s8] sm:$0xff] %vm1436, %v3312
  %3321 = vst.msk [vmem:[%s8 + $0x8] sm:$0xff] %vm1436, %v3313
  %3322 = vst.msk [vmem:[%s8 + $0x10] sm:$0xff] %vm1436, %v3314
  %3323 = vst.msk [vmem:[%s8 + $0x18] sm:$0xff] %vm1436, %v3315
  %3324 = vst.msk [vmem:[%s8 + $0x20] sm:$0xff] %vm1436, %v3316
  %3325 = vst.msk [vmem:[%s8 + $0x28] sm:$0xff] %vm1436, %v3317
  %3326 = vst.msk [vmem:[%s8 + $0x30] sm:$0xff] %vm1436, %v3318
  %3327 = vst.msk [vmem:[%s8 + $0x38] sm:$0xff] %vm1436, %v3319
  // Predicated region
  $region34: #{standgatx_forward.1} parent=0 // pred_check
    _
  $region35: #{standgatx_forward.1} parent=0 // pred_check_branch
    %3329 = sbr.rel (0) target = $region37
  $region36: #{standgatx_forward.1} parent=0 // pred_region
    _
  $region37: #{standgatx_forward.1} parent=0 // pred_fallthru
    _
  // Predicated region
  $region38: #{standgatx_forward.1} parent=0 // pred_check
    _
  $region39: #{standgatx_forward.1} parent=0 // pred_check_branch
    %3331 = sbr.rel (0) target = $region41
  $region40: #{standgatx_forward.1} parent=0 // pred_region
    _
  $region41: #{standgatx_forward.1} parent=0 // pred_fallthru
    _

</llo_original>
